<compile_context>
chip_gen: v5e
topology: v5e:2x2
jax: 0.10.0
libtpu: 0.0.40
codegen_flags: <defaults>
</compile_context>

<pallas_src>
import functools

import jax
import jax.numpy as jnp
from jax.experimental import pallas as pl
from jax.experimental.pallas import tpu as pltpu

_EPS = 1e-7
_LANE = 128


def _round_up(x, m):
    return ((x + m - 1) // m) * m


# --------------------------------------------------------------------------
# Stage 1: log-map at the origin + one fused tangent-space linear layer.
# w_cat = [Ww | 0 | Wb | 0] zero-padded so each half is a lane-dense 128-wide
# slab; b_cat likewise.  Grid: (row tiles,), "parallel".
# --------------------------------------------------------------------------
def _tangent_kernel(x_s_ref, w_ref, b_ref, uw_ref, ub_ref, *, d_pad):
    x_s = x_s_ref[...]                                   # (tm, d_in) f32
    r2 = jnp.sum(x_s * x_s, axis=-1, keepdims=True)
    r = jnp.sqrt(r2)
    # log_o of an on-manifold Lorentz point: u = (asinh(r)/r) * x_s.
    # For r <= EPS the where() falls back to scale = 1, so the plain-log
    # asinh's small-r cancellation never matters.
    asinh_r = jnp.log(r + jnp.sqrt(r2 + 1.0))
    scale = jnp.where(r > _EPS, asinh_r / jnp.maximum(r, _EPS), 1.0)
    u = scale * x_s                                      # keep f32: K is tiny

    # Single fused MXU pass for both linear layers (Lorentz "matrix mult").
    h = jnp.dot(u, w_ref[...], preferred_element_type=jnp.float32) + b_ref[...]

    # The reference applies log_o(exp_o(.)) here; identity at the origin for
    # zero-time tangent vectors -> dropped (no semantic change).
    uw_ref[...] = h[:, :d_pad].astype(jnp.bfloat16)      # feeds stage-2 MXU
    ub_ref[...] = h[:, d_pad:]                           # f32 for the epilogue


# --------------------------------------------------------------------------
# Stage 2: tiled aggregation  D^{-1} (A @ u_w)  + exp-map epilogue.
# grid = (row tiles i [parallel], adjacency column tiles k [arbitrary]).
# u_w is VMEM-resident (constant index_map); the f32 output block doubles as
# the accumulator (resident across k since its index_map ignores k).
# --------------------------------------------------------------------------
def _agg_kernel(adj_ref, uw_ref, ub_ref, invdeg_ref, out_ref, *, tile_k):
    k = pl.program_id(1)

    @pl.when(k == 0)
    def _():
        out_ref[...] = jnp.zeros_like(out_ref)

    start = pl.multiple_of(k * tile_k, tile_k)
    uw_blk = uw_ref[pl.ds(start, tile_k), :]             # slice of resident u_w
    out_ref[...] += jnp.dot(adj_ref[...], uw_blk,
                            preferred_element_type=jnp.float32)

    @pl.when(k == pl.num_programs(1) - 1)
    def _():
        # tangent-space sum (time coordinate is identically 0)
        v = out_ref[...] * invdeg_ref[...] + ub_ref[...]
        # exp-map at the origin: spatial part = sinh(||v||)/||v|| * v
        r2 = jnp.sum(v * v, axis=-1, keepdims=True)
        r = jnp.sqrt(r2)
        rc = jnp.minimum(r, 80.0)                        # f32 exp overflow guard
        sinh_r = 0.5 * (jnp.exp(rc) - jnp.exp(-rc))      # exact sinh
        s = jnp.where(r > _EPS, sinh_r / jnp.maximum(r, _EPS), 1.0)
        out_ref[...] = s * v


# --------------------------------------------------------------------------
# Wrapper
# --------------------------------------------------------------------------
@jax.jit
def hgcn_layer(features, edge_index, ww, bw, wb, bb):
    """features: (n, input_dim + 1) Lorentz points; edge_index: (2, E) int32."""
    n = features.shape[0]
    d_in = features.shape[1] - 1
    d_out = ww.shape[1]
    d_pad = _round_up(d_out, _LANE)                      # lane-dense feature slab

    # Adaptive tiles (always divide n_pad; bigger graphs get bigger tiles).
    tile_m = 256 if n <= 256 else 512
    n_pad = _round_up(n, tile_m)
    tile_k = max(t for t in (2048, 1024, 512, 256) if n_pad % t == 0)

    # ---- glue: dense adjacency + inverse-degree vector from edge_index ----
    # Built directly in bf16 (0/1 scatter-add is exact) -> single n^2 pass.
    # TODO(synk): for large sparse graphs replace the dense O(n^2) adjacency
    # with a CSR / scalar-prefetch gather aggregation kernel.
    row = edge_index[0]
    col = edge_index[1]
    adj = jnp.zeros((n_pad, n_pad), jnp.bfloat16).at[row, col].add(1.0)
    deg = jnp.zeros((n_pad,), jnp.float32).at[row].add(1.0)
    inv_deg = (1.0 / jnp.maximum(deg, 1.0)).reshape(n_pad, 1)

    x_s = jnp.pad(features[:, 1:], ((0, n_pad - n), (0, 0)))

    # Fused, zero-padded weight/bias: [Ww | 0 | Wb | 0] -> (d_in, 2*d_pad).
    w_cat = jnp.zeros((d_in, 2 * d_pad), jnp.float32)
    w_cat = w_cat.at[:, :d_out].set(ww)
    w_cat = w_cat.at[:, d_pad:d_pad + d_out].set(wb)
    b_cat = jnp.zeros((1, 2 * d_pad), jnp.float32)
    b_cat = b_cat.at[:, :d_out].set(bw)
    b_cat = b_cat.at[:, d_pad:d_pad + d_out].set(bb)

    # ---------------- stage 1: log-map + fused linear ----------------
    u_w, u_b = pl.pallas_call(
        functools.partial(_tangent_kernel, d_pad=d_pad),
        out_shape=(
            jax.ShapeDtypeStruct((n_pad, d_pad), jnp.bfloat16),
            jax.ShapeDtypeStruct((n_pad, d_pad), jnp.float32),
        ),
        grid_spec=pltpu.PrefetchScalarGridSpec(
            num_scalar_prefetch=0,
            grid=(n_pad // tile_m,),
            in_specs=[
                pl.BlockSpec((tile_m, d_in), lambda i: (i, 0)),
                pl.BlockSpec((d_in, 2 * d_pad), lambda i: (0, 0)),
                pl.BlockSpec((1, 2 * d_pad), lambda i: (0, 0)),
            ],
            out_specs=(
                pl.BlockSpec((tile_m, d_pad), lambda i: (i, 0)),
                pl.BlockSpec((tile_m, d_pad), lambda i: (i, 0)),
            ),
        ),
        compiler_params=pltpu.CompilerParams(
            dimension_semantics=("parallel",),
            vmem_limit_bytes=32 * 1024 * 1024,
        ),
    )(x_s, w_cat, b_cat)

    # ---------------- stage 2: D^{-1} A u_w + exp-map ----------------
    # VMEM budget (worst tile plan): adj 2*tile_m*tile_k*2 + resident u_w
    # 2*n_pad*d_pad*2 + u_b/out double buffers — kept under a 48 MiB cap so
    # the same plan fits v7x's 64 MiB as well as v5e/v6e.
    out_s = pl.pallas_call(
        functools.partial(_agg_kernel, tile_k=tile_k),
        out_shape=jax.ShapeDtypeStruct((n_pad, d_pad), jnp.float32),
        grid_spec=pltpu.PrefetchScalarGridSpec(
            num_scalar_prefetch=0,
            grid=(n_pad // tile_m, n_pad // tile_k),
            in_specs=[
                pl.BlockSpec((tile_m, tile_k), lambda i, k: (i, k)),  # A tile
                pl.BlockSpec((n_pad, d_pad), lambda i, k: (0, 0)),    # resident u_w
                pl.BlockSpec((tile_m, d_pad), lambda i, k: (i, 0)),   # u_b
                pl.BlockSpec((tile_m, 1), lambda i, k: (i, 0)),       # 1/deg
            ],
            out_specs=pl.BlockSpec((tile_m, d_pad), lambda i, k: (i, 0)),
        ),
        compiler_params=pltpu.CompilerParams(
            dimension_semantics=("parallel", "arbitrary"),
            vmem_limit_bytes=48 * 1024 * 1024,
        ),
    )(adj, u_w, u_b, inv_deg)

    out_s = out_s[:n, :d_out]
    # Time coordinate re-derived on the hyperboloid: cosh(r) = sqrt(1 + sinh(r)^2).
    out_t = jnp.sqrt(1.0 + jnp.sum(out_s * out_s, axis=-1, keepdims=True))
    return jnp.concatenate([out_t, out_s], axis=-1)      # (n, output_dim + 1)


if __name__ == "__main__":
    n = 200            # number of graph nodes (not a tile multiple -> exercises padding)
    input_dim = 16
    output_dim = 32

    key = jax.random.PRNGKey(0)
    k_feat, k_ww, k_bw, k_wb, k_bb, k_biasw, k_biasb = jax.random.split(key, 7)

    # Input Lorentz points: spatial part random, time coord = sqrt(1 + ||x_s||^2).
    x_spatial = 0.1 * jax.random.normal(k_feat, (n, input_dim), jnp.float32)
    x_time = jnp.sqrt(1.0 + jnp.sum(x_spatial * x_spatial, -1, keepdims=True))
    features = jnp.concatenate([x_time, x_spatial], axis=-1)   # (n, input_dim + 1)

    # Ring graph edge_index (2, E), both directions.
    src = jnp.arange(n, dtype=jnp.int32)
    edge_index = jnp.concatenate(
        [jnp.stack([src, (src + 1) % n]), jnp.stack([src, (src - 1) % n])], axis=1
    )

    # Deterministic parameter init (layerW / layerB of the module).
    scale = 1.0 / jnp.sqrt(jnp.float32(input_dim))
    ww = scale * jax.random.normal(k_ww, (input_dim, output_dim), jnp.float32)
    bw = scale * jax.random.normal(k_bw, (1, output_dim), jnp.float32)
    wb = scale * jax.random.normal(k_wb, (input_dim, output_dim), jnp.float32)
    bb = scale * jax.random.normal(k_bb, (1, output_dim), jnp.float32)
    # biasW / biasB exist in the module but are unused in its forward(); kept for parity.
    _biasW = jax.random.normal(k_biasw, (output_dim + 1, 1), jnp.float32)
    _biasB = jax.random.normal(k_biasb, (output_dim + 1, 1), jnp.float32)

    out = hgcn_layer(features, edge_index, ww, bw, wb, bb)
    jax.block_until_ready(out)
    assert out.shape == (n, output_dim + 1)
    assert bool(jnp.all(jnp.isfinite(out)))
    print("KERNEL_OK")
</pallas_src>

<mosaic_0001>
module attributes {stable_mosaic.version = 11 : i64} {
  func.func @_tangent_kernel(%arg0: i32, %arg1: memref<256x16xf32, #tpu.memory_space<vmem>>, %arg2: memref<16x256xf32, #tpu.memory_space<vmem>>, %arg3: memref<1x256xf32, #tpu.memory_space<vmem>>, %arg4: memref<256x128xbf16, #tpu.memory_space<vmem>>, %arg5: memref<256x128xf32, #tpu.memory_space<vmem>>) attributes {dimension_semantics = [#tpu.dimension_semantics<parallel>], iteration_bounds = array<i64: 1>, scalar_prefetch = 0 : i64, scratch_operands = 0 : i64, tpu.core_type = #tpu.core_type<tc>, window_params = [{transform_indices = @transform_0, window_bounds = array<i64: 256, 16>}, {pipeline_mode = #tpu.pipeline_mode<synchronous>, transform_indices = @transform_1, window_bounds = array<i64: 16, 256>}, {pipeline_mode = #tpu.pipeline_mode<synchronous>, transform_indices = @transform_2, window_bounds = array<i64: 1, 256>}, {transform_indices = @transform_3, window_bounds = array<i64: 256, 128>}, {transform_indices = @transform_4, window_bounds = array<i64: 256, 128>}]} {
    %c0 = arith.constant 0 : index
    %c0_0 = arith.constant 0 : index
    %0 = vector.load %arg1[%c0, %c0_0] : memref<256x16xf32, #tpu.memory_space<vmem>>, vector<256x16xf32>
    %1 = arith.mulf %0, %0 : vector<256x16xf32>
    %cst = arith.constant dense<0.000000e+00> : vector<256xf32>
    %2 = vector.multi_reduction <add>, %1, %cst [1] : vector<256x16xf32> to vector<256xf32>
    %3 = vector.shape_cast %2 : vector<256xf32> to vector<256x1xf32>
    %4 = math.sqrt %3 : vector<256x1xf32>
    %cst_1 = arith.constant 1.000000e+00 : f32
    %5 = vector.broadcast %cst_1 : f32 to vector<256x1xf32>
    %6 = arith.addf %3, %5 : vector<256x1xf32>
    %7 = math.sqrt %6 : vector<256x1xf32>
    %8 = arith.addf %4, %7 : vector<256x1xf32>
    %9 = math.log %8 : vector<256x1xf32>
    %cst_2 = arith.constant 1.000000e-07 : f32
    %10 = vector.broadcast %cst_2 : f32 to vector<256x1xf32>
    %11 = arith.cmpf ogt, %4, %10 : vector<256x1xf32>
    %cst_3 = arith.constant 1.000000e-07 : f32
    %12 = vector.broadcast %cst_3 : f32 to vector<256x1xf32>
    %13 = arith.maximumf %4, %12 : vector<256x1xf32>
    %14 = arith.divf %9, %13 : vector<256x1xf32>
    %cst_4 = arith.constant 1.000000e+00 : f32
    %15 = vector.broadcast %cst_4 : f32 to vector<256x1xf32>
    %16 = arith.select %11, %14, %15 : vector<256x1xi1>, vector<256x1xf32>
    %17 = vector.broadcast %16 : vector<256x1xf32> to vector<256x16xf32>
    %18 = arith.mulf %17, %0 : vector<256x16xf32>
    %c0_5 = arith.constant 0 : index
    %c0_6 = arith.constant 0 : index
    %19 = vector.load %arg2[%c0_5, %c0_6] : memref<16x256xf32, #tpu.memory_space<vmem>>, vector<16x256xf32>
    %cst_7 = arith.constant dense<0.000000e+00> : vector<256x256xf32>
    %20 = tpu.matmul %18, %19, %cst_7 {dimension_numbers = #tpu.dot_dimension_numbers<[1], [0], [0], [1], [0, 0, 1, 1], [], []>} : vector<256x16xf32>, vector<16x256xf32>, vector<256x256xf32> -> vector<256x256xf32>
    %c0_8 = arith.constant 0 : index
    %c0_9 = arith.constant 0 : index
    %21 = vector.load %arg3[%c0_8, %c0_9] : memref<1x256xf32, #tpu.memory_space<vmem>>, vector<1x256xf32>
    %22 = vector.broadcast %21 : vector<1x256xf32> to vector<256x256xf32>
    %23 = arith.addf %20, %22 : vector<256x256xf32>
    %24 = vector.extract_strided_slice %23 {offsets = [0, 0], sizes = [256, 128], strides = [1, 1]} : vector<256x256xf32> to vector<256x128xf32>
    %25 = arith.truncf %24 : vector<256x128xf32> to vector<256x128xbf16>
    %c0_10 = arith.constant 0 : index
    %c0_11 = arith.constant 0 : index
    %26 = vector.load %arg4[%c0_10, %c0_11] : memref<256x128xbf16, #tpu.memory_space<vmem>>, vector<256x128xbf16>
    tpu.vector_store %arg4[%c0_10, %c0_11], %25 {strides = array<i32>} : memref<256x128xbf16, #tpu.memory_space<vmem>>, vector<256x128xbf16>,
    %27 = vector.extract_strided_slice %23 {offsets = [0, 128], sizes = [256, 128], strides = [1, 1]} : vector<256x256xf32> to vector<256x128xf32>
    %c0_12 = arith.constant 0 : index
    %c0_13 = arith.constant 0 : index
    %28 = vector.load %arg5[%c0_12, %c0_13] : memref<256x128xf32, #tpu.memory_space<vmem>>, vector<256x128xf32>
    tpu.vector_store %arg5[%c0_12, %c0_13], %27 {strides = array<i32>} : memref<256x128xf32, #tpu.memory_space<vmem>>, vector<256x128xf32>,
    return
  }
  func.func @transform_0(%arg0: i32) -> (i32, i32) {
    %c0_i32 = arith.constant 0 : i32
    %c0_i32_0 = arith.constant 0 : i32
    return %arg0, %c0_i32 : i32, i32
  }
  func.func @transform_1(%arg0: i32) -> (i32, i32) {
    %c0_i32 = arith.constant 0 : i32
    %c0_i32_0 = arith.constant 0 : i32
    %c0_i32_1 = arith.constant 0 : i32
    return %c0_i32, %c0_i32_0 : i32, i32
  }
  func.func @transform_2(%arg0: i32) -> (i32, i32) {
    %c0_i32 = arith.constant 0 : i32
    %c0_i32_0 = arith.constant 0 : i32
    %c0_i32_1 = arith.constant 0 : i32
    return %c0_i32, %c0_i32_0 : i32, i32
  }
  func.func @transform_3(%arg0: i32) -> (i32, i32) {
    %c0_i32 = arith.constant 0 : i32
    %c0_i32_0 = arith.constant 0 : i32
    return %arg0, %c0_i32 : i32, i32
  }
  func.func @transform_4(%arg0: i32) -> (i32, i32) {
    %c0_i32 = arith.constant 0 : i32
    %c0_i32_0 = arith.constant 0 : i32
    return %arg0, %c0_i32 : i32, i32
  }
}

module attributes {stable_mosaic.version = 11 : i64} {
  func.func @_agg_kernel(%arg0: i32, %arg1: i32, %arg2: memref<256x256xbf16, #tpu.memory_space<vmem>>, %arg3: memref<256x128xbf16, #tpu.memory_space<vmem>>, %arg4: memref<256x128xf32, #tpu.memory_space<vmem>>, %arg5: memref<256x1xf32, #tpu.memory_space<vmem>>, %arg6: memref<256x128xf32, #tpu.memory_space<vmem>>) attributes {dimension_semantics = [#tpu.dimension_semantics<parallel>, #tpu.dimension_semantics<arbitrary>], iteration_bounds = array<i64: 1, 1>, scalar_prefetch = 0 : i64, scratch_operands = 0 : i64, tpu.core_type = #tpu.core_type<tc>, window_params = [{transform_indices = @transform_0, window_bounds = array<i64: 256, 256>}, {pipeline_mode = #tpu.pipeline_mode<synchronous>, transform_indices = @transform_1, window_bounds = array<i64: 256, 128>}, {transform_indices = @transform_2, window_bounds = array<i64: 256, 128>}, {transform_indices = @transform_3, window_bounds = array<i64: 256, 1>}, {transform_indices = @transform_4, window_bounds = array<i64: 256, 128>}]} {
    %c0_i32 = arith.constant 0 : i32
    %0 = arith.cmpi eq, %arg1, %c0_i32 : i32
    %1 = arith.extui %0 : i1 to i32
    %c0_i32_0 = arith.constant 0 : i32
    %2 = arith.cmpi ne, %1, %c0_i32_0 : i32
    scf.if %2 {
      %cst_9 = arith.constant 0.000000e+00 : f32
      %15 = vector.broadcast %cst_9 : f32 to vector<256x128xf32>
      %c0_10 = arith.constant 0 : index
      %c0_11 = arith.constant 0 : index
      %16 = vector.load %arg6[%c0_10, %c0_11] : memref<256x128xf32, #tpu.memory_space<vmem>>, vector<256x128xf32>
      tpu.vector_store %arg6[%c0_10, %c0_11], %15 {strides = array<i32>} : memref<256x128xf32, #tpu.memory_space<vmem>>, vector<256x128xf32>,
    } else {
    }
    %c256_i32 = arith.constant 256 : i32
    %3 = arith.muli %arg1, %c256_i32 : i32
    %4 = tpu.assume_multiple %3, 256 : i32
    %5 = arith.index_cast %4 : i32 to index
    %c0 = arith.constant 0 : index
    %6 = vector.load %arg3[%5, %c0] : memref<256x128xbf16, #tpu.memory_space<vmem>>, vector<256x128xbf16>
    %c0_1 = arith.constant 0 : index
    %c0_2 = arith.constant 0 : index
    %7 = vector.load %arg6[%c0_1, %c0_2] : memref<256x128xf32, #tpu.memory_space<vmem>>, vector<256x128xf32>
    %c0_3 = arith.constant 0 : index
    %c0_4 = arith.constant 0 : index
    %8 = vector.load %arg2[%c0_3, %c0_4] : memref<256x256xbf16, #tpu.memory_space<vmem>>, vector<256x256xbf16>
    %cst = arith.constant dense<0.000000e+00> : vector<256x128xf32>
    %9 = tpu.matmul %8, %6, %cst {dimension_numbers = #tpu.dot_dimension_numbers<[1], [0], [0], [1], [0, 0, 1, 1], [], []>} : vector<256x256xbf16>, vector<256x128xbf16>, vector<256x128xf32> -> vector<256x128xf32>
    %10 = arith.addf %7, %9 : vector<256x128xf32>
    %c0_5 = arith.constant 0 : index
    %c0_6 = arith.constant 0 : index
    %11 = vector.load %arg6[%c0_5, %c0_6] : memref<256x128xf32, #tpu.memory_space<vmem>>, vector<256x128xf32>
    tpu.vector_store %arg6[%c0_5, %c0_6], %10 {strides = array<i32>} : memref<256x128xf32, #tpu.memory_space<vmem>>, vector<256x128xf32>,
    %c0_i32_7 = arith.constant 0 : i32
    %12 = arith.cmpi eq, %arg1, %c0_i32_7 : i32
    %13 = arith.extui %12 : i1 to i32
    %c0_i32_8 = arith.constant 0 : i32
    %14 = arith.cmpi ne, %13, %c0_i32_8 : i32
    scf.if %14 {
      %c0_9 = arith.constant 0 : index
      %c0_10 = arith.constant 0 : index
      %15 = vector.load %arg6[%c0_9, %c0_10] : memref<256x128xf32, #tpu.memory_space<vmem>>, vector<256x128xf32>
      %c0_11 = arith.constant 0 : index
      %c0_12 = arith.constant 0 : index
      %16 = vector.load %arg5[%c0_11, %c0_12] : memref<256x1xf32, #tpu.memory_space<vmem>>, vector<256x1xf32>
      %17 = vector.broadcast %16 : vector<256x1xf32> to vector<256x128xf32>
      %18 = arith.mulf %15, %17 : vector<256x128xf32>
      %c0_13 = arith.constant 0 : index
      %c0_14 = arith.constant 0 : index
      %19 = vector.load %arg4[%c0_13, %c0_14] : memref<256x128xf32, #tpu.memory_space<vmem>>, vector<256x128xf32>
      %20 = arith.addf %18, %19 : vector<256x128xf32>
      %21 = arith.mulf %20, %20 : vector<256x128xf32>
      %cst_15 = arith.constant dense<0.000000e+00> : vector<256xf32>
      %22 = vector.multi_reduction <add>, %21, %cst_15 [1] : vector<256x128xf32> to vector<256xf32>
      %23 = vector.shape_cast %22 : vector<256xf32> to vector<256x1xf32>
      %24 = math.sqrt %23 : vector<256x1xf32>
      %cst_16 = arith.constant 8.000000e+01 : f32
      %25 = vector.broadcast %cst_16 : f32 to vector<256x1xf32>
      %26 = arith.minimumf %24, %25 : vector<256x1xf32>
      %27 = math.exp %26 : vector<256x1xf32>
      %cst_17 = arith.constant 0.000000e+00 : f32
      %28 = vector.broadcast %cst_17 : f32 to vector<256x1xf32>
      %29 = arith.subf %28, %26 : vector<256x1xf32>
      %30 = math.exp %29 : vector<256x1xf32>
      %31 = arith.subf %27, %30 : vector<256x1xf32>
      %cst_18 = arith.constant 5.000000e-01 : f32
      %32 = vector.broadcast %cst_18 : f32 to vector<256x1xf32>
      %33 = arith.mulf %32, %31 : vector<256x1xf32>
      %cst_19 = arith.constant 1.000000e-07 : f32
      %34 = vector.broadcast %cst_19 : f32 to vector<256x1xf32>
      %35 = arith.cmpf ogt, %24, %34 : vector<256x1xf32>
      %cst_20 = arith.constant 1.000000e-07 : f32
      %36 = vector.broadcast %cst_20 : f32 to vector<256x1xf32>
      %37 = arith.maximumf %24, %36 : vector<256x1xf32>
      %38 = arith.divf %33, %37 : vector<256x1xf32>
      %cst_21 = arith.constant 1.000000e+00 : f32
      %39 = vector.broadcast %cst_21 : f32 to vector<256x1xf32>
      %40 = arith.select %35, %38, %39 : vector<256x1xi1>, vector<256x1xf32>
      %41 = vector.broadcast %40 : vector<256x1xf32> to vector<256x128xf32>
      %42 = arith.mulf %41, %20 : vector<256x128xf32>
      %c0_22 = arith.constant 0 : index
      %c0_23 = arith.constant 0 : index
      %43 = vector.load %arg6[%c0_22, %c0_23] : memref<256x128xf32, #tpu.memory_space<vmem>>, vector<256x128xf32>
      tpu.vector_store %arg6[%c0_22, %c0_23], %42 {strides = array<i32>} : memref<256x128xf32, #tpu.memory_space<vmem>>, vector<256x128xf32>,
    } else {
    }
    return
  }
  func.func @transform_0(%arg0: i32, %arg1: i32) -> (i32, i32) {
    %c0_i32 = arith.constant 0 : i32
    return %arg0, %arg1 : i32, i32
  }
  func.func @transform_1(%arg0: i32, %arg1: i32) -> (i32, i32) {
    %c0_i32 = arith.constant 0 : i32
    %c0_i32_0 = arith.constant 0 : i32
    %c0_i32_1 = arith.constant 0 : i32
    return %c0_i32, %c0_i32_0 : i32, i32
  }
  func.func @transform_2(%arg0: i32, %arg1: i32) -> (i32, i32) {
    %c0_i32 = arith.constant 0 : i32
    %c0_i32_0 = arith.constant 0 : i32
    return %arg0, %c0_i32 : i32, i32
  }
  func.func @transform_3(%arg0: i32, %arg1: i32) -> (i32, i32) {
    %c0_i32 = arith.constant 0 : i32
    %c0_i32_0 = arith.constant 0 : i32
    return %arg0, %c0_i32 : i32, i32
  }
  func.func @transform_4(%arg0: i32, %arg1: i32) -> (i32, i32) {
    %c0_i32 = arith.constant 0 : i32
    %c0_i32_0 = arith.constant 0 : i32
    return %arg0, %c0_i32 : i32, i32
  }
}

</mosaic_0001>

<llo_original>
// kernel: hgcn_layer.2
$region0: #{hgcn_layer.2}
  #allocation0 [shape = 'u32[]', space=smem, size = 0x4, offset = 0x4, fixed_abs, tag = 'smem constant byte address 0x4 - core index']
  #allocation1 [shape = 'u32[72,128]{1,0:T(1,128)}', space=vmem, size = 0x9000, scoped, tag = 'internal scratch']
  %s0 = inlined_call_operand.vmem [shape: f32[256,16], index: 0, kind: input, shape index: {}]
  %s1 = inlined_call_operand.vmem [shape: f32[16,256], index: 1, kind: input, shape index: {}]
  %s2 = inlined_call_operand.vmem [shape: f32[1,256], index: 2, kind: input, shape index: {}]
  %s3 = inlined_call_operand.vmem [shape: bf16[256,128], index: 3, kind: output, shape index: {0}]
  %s4 = inlined_call_operand.vmem [shape: f32[256,128], index: 4, kind: output, shape index: {1}]
  %5 = xla_tuple %s3, %s4
  %s6 = sld [smem:[#allocation0]]
  $region30: #{hgcn_layer.2} parent=0
    _
  %s8 = ssub.s32 1, %s6
  %s9 = scalar_select 0, %s8, %s6
  // Predicated region
  $region2: #{hgcn_layer.2} parent=0 // pred_check
    _
  $region3: #{hgcn_layer.2} parent=0 // pred_check_branch
    %11 = sbr.rel (0) target = $region5
  $region4: #{hgcn_layer.2} parent=0 // pred_region
    _
  $region5: #{hgcn_layer.2} parent=0 // pred_fallthru
    _
  // Predicated region
  $region6: #{hgcn_layer.2} parent=0 // pred_check
    _
  $region7: #{hgcn_layer.2} parent=0 // pred_check_branch
    %13 = sbr.rel (0) target = $region9
  $region8: #{hgcn_layer.2} parent=0 // pred_region
    _
  $region9: #{hgcn_layer.2} parent=0 // pred_fallthru
    _
  // Predicated region
  $region10: #{hgcn_layer.2} parent=0 // pred_check
    _
  $region11: #{hgcn_layer.2} parent=0 // pred_check_branch
    %15 = sbr.rel (0) target = $region13
  $region12: #{hgcn_layer.2} parent=0 // pred_region
    _
  $region13: #{hgcn_layer.2} parent=0 // pred_fallthru
    _
  %v16 = vld [vmem:[%s0] sm:$0xff]
  %v17 = vld [vmem:[%s0 + $0x8] sm:$0xff]
  %v18 = vld [vmem:[%s0 + $0x10] sm:$0xff]
  %v19 = vld [vmem:[%s0 + $0x18] sm:$0xff]
  %v20 = vld [vmem:[%s0 + $0x20] sm:$0xff]
  %v21 = vld [vmem:[%s0 + $0x28] sm:$0xff]
  %v22 = vld [vmem:[%s0 + $0x30] sm:$0xff]
  %v23 = vld [vmem:[%s0 + $0x38] sm:$0xff]
  %v24 = vld [vmem:[%s0 + $0x40] sm:$0xff]
  %v25 = vld [vmem:[%s0 + $0x48] sm:$0xff]
  %v26 = vld [vmem:[%s0 + $0x50] sm:$0xff]
  %v27 = vld [vmem:[%s0 + $0x58] sm:$0xff]
  %v28 = vld [vmem:[%s0 + $0x60] sm:$0xff]
  %v29 = vld [vmem:[%s0 + $0x68] sm:$0xff]
  %v30 = vld [vmem:[%s0 + $0x70] sm:$0xff]
  %v31 = vld [vmem:[%s0 + $0x78] sm:$0xff]
  %v32 = vld [vmem:[%s0 + $0x80] sm:$0xff]
  %v33 = vld [vmem:[%s0 + $0x88] sm:$0xff]
  %v34 = vld [vmem:[%s0 + $0x90] sm:$0xff]
  %v35 = vld [vmem:[%s0 + $0x98] sm:$0xff]
  %v36 = vld [vmem:[%s0 + $0xa0] sm:$0xff]
  %v37 = vld [vmem:[%s0 + $0xa8] sm:$0xff]
  %v38 = vld [vmem:[%s0 + $0xb0] sm:$0xff]
  %v39 = vld [vmem:[%s0 + $0xb8] sm:$0xff]
  %v40 = vld [vmem:[%s0 + $0xc0] sm:$0xff]
  %v41 = vld [vmem:[%s0 + $0xc8] sm:$0xff]
  %v42 = vld [vmem:[%s0 + $0xd0] sm:$0xff]
  %v43 = vld [vmem:[%s0 + $0xd8] sm:$0xff]
  %v44 = vld [vmem:[%s0 + $0xe0] sm:$0xff]
  %v45 = vld [vmem:[%s0 + $0xe8] sm:$0xff]
  %v46 = vld [vmem:[%s0 + $0xf0] sm:$0xff]
  %v47 = vld [vmem:[%s0 + $0xf8] sm:$0xff]
  %v48 = vmul.f32 %v16, %v16
  %v49 = vmul.f32 %v17, %v17
  %v50 = vmul.f32 %v18, %v18
  %v51 = vmul.f32 %v19, %v19
  %v52 = vmul.f32 %v20, %v20
  %v53 = vmul.f32 %v21, %v21
  %v54 = vmul.f32 %v22, %v22
  %v55 = vmul.f32 %v23, %v23
  %v56 = vmul.f32 %v24, %v24
  %v57 = vmul.f32 %v25, %v25
  %v58 = vmul.f32 %v26, %v26
  %v59 = vmul.f32 %v27, %v27
  %v60 = vmul.f32 %v28, %v28
  %v61 = vmul.f32 %v29, %v29
  %v62 = vmul.f32 %v30, %v30
  %v63 = vmul.f32 %v31, %v31
  %v64 = vmul.f32 %v32, %v32
  %v65 = vmul.f32 %v33, %v33
  %v66 = vmul.f32 %v34, %v34
  %v67 = vmul.f32 %v35, %v35
  %v68 = vmul.f32 %v36, %v36
  %v69 = vmul.f32 %v37, %v37
  %v70 = vmul.f32 %v38, %v38
  %v71 = vmul.f32 %v39, %v39
  %v72 = vmul.f32 %v40, %v40
  %v73 = vmul.f32 %v41, %v41
  %v74 = vmul.f32 %v42, %v42
  %v75 = vmul.f32 %v43, %v43
  %v76 = vmul.f32 %v44, %v44
  %v77 = vmul.f32 %v45, %v45
  %v78 = vmul.f32 %v46, %v46
  %v79 = vmul.f32 %v47, %v47
  %vm80 = vcmask 130048
  %v81 = vsel %vm80, %v48, 0.0
  %82 = vadd.xlane.f32.xlu0 %v81
  %v83 = vpop.xlane.xlu0 %82
  %v84 = vsel %vm80, %v49, 0.0
  %85 = vadd.xlane.f32.xlu0 %v84
  %v86 = vpop.xlane.xlu0 %85
  %v87 = vsel %vm80, %v50, 0.0
  %88 = vadd.xlane.f32.xlu0 %v87
  %v89 = vpop.xlane.xlu0 %88
  %v90 = vsel %vm80, %v51, 0.0
  %91 = vadd.xlane.f32.xlu0 %v90
  %v92 = vpop.xlane.xlu0 %91
  %v93 = vsel %vm80, %v52, 0.0
  %94 = vadd.xlane.f32.xlu0 %v93
  %v95 = vpop.xlane.xlu0 %94
  %v96 = vsel %vm80, %v53, 0.0
  %97 = vadd.xlane.f32.xlu0 %v96
  %v98 = vpop.xlane.xlu0 %97
  %v99 = vsel %vm80, %v54, 0.0
  %100 = vadd.xlane.f32.xlu0 %v99
  %v101 = vpop.xlane.xlu0 %100
  %v102 = vsel %vm80, %v55, 0.0
  %103 = vadd.xlane.f32.xlu0 %v102
  %v104 = vpop.xlane.xlu0 %103
  %v105 = vsel %vm80, %v56, 0.0
  %106 = vadd.xlane.f32.xlu0 %v105
  %v107 = vpop.xlane.xlu0 %106
  %v108 = vsel %vm80, %v57, 0.0
  %109 = vadd.xlane.f32.xlu0 %v108
  %v110 = vpop.xlane.xlu0 %109
  %v111 = vsel %vm80, %v58, 0.0
  %112 = vadd.xlane.f32.xlu0 %v111
  %v113 = vpop.xlane.xlu0 %112
  %v114 = vsel %vm80, %v59, 0.0
  %115 = vadd.xlane.f32.xlu0 %v114
  %v116 = vpop.xlane.xlu0 %115
  %v117 = vsel %vm80, %v60, 0.0
  %118 = vadd.xlane.f32.xlu0 %v117
  %v119 = vpop.xlane.xlu0 %118
  %v120 = vsel %vm80, %v61, 0.0
  %121 = vadd.xlane.f32.xlu0 %v120
  %v122 = vpop.xlane.xlu0 %121
  %v123 = vsel %vm80, %v62, 0.0
  %124 = vadd.xlane.f32.xlu0 %v123
  %v125 = vpop.xlane.xlu0 %124
  %v126 = vsel %vm80, %v63, 0.0
  %127 = vadd.xlane.f32.xlu0 %v126
  %v128 = vpop.xlane.xlu0 %127
  %v129 = vsel %vm80, %v64, 0.0
  %130 = vadd.xlane.f32.xlu0 %v129
  %v131 = vpop.xlane.xlu0 %130
  %v132 = vsel %vm80, %v65, 0.0
  %133 = vadd.xlane.f32.xlu0 %v132
  %v134 = vpop.xlane.xlu0 %133
  %v135 = vsel %vm80, %v66, 0.0
  %136 = vadd.xlane.f32.xlu0 %v135
  %v137 = vpop.xlane.xlu0 %136
  %v138 = vsel %vm80, %v67, 0.0
  %139 = vadd.xlane.f32.xlu0 %v138
  %v140 = vpop.xlane.xlu0 %139
  %v141 = vsel %vm80, %v68, 0.0
  %142 = vadd.xlane.f32.xlu0 %v141
  %v143 = vpop.xlane.xlu0 %142
  %v144 = vsel %vm80, %v69, 0.0
  %145 = vadd.xlane.f32.xlu0 %v144
  %v146 = vpop.xlane.xlu0 %145
  %v147 = vsel %vm80, %v70, 0.0
  %148 = vadd.xlane.f32.xlu0 %v147
  %v149 = vpop.xlane.xlu0 %148
  %v150 = vsel %vm80, %v71, 0.0
  %151 = vadd.xlane.f32.xlu0 %v150
  %v152 = vpop.xlane.xlu0 %151
  %v153 = vsel %vm80, %v72, 0.0
  %154 = vadd.xlane.f32.xlu0 %v153
  %v155 = vpop.xlane.xlu0 %154
  %v156 = vsel %vm80, %v73, 0.0
  %157 = vadd.xlane.f32.xlu0 %v156
  %v158 = vpop.xlane.xlu0 %157
  %v159 = vsel %vm80, %v74, 0.0
  %160 = vadd.xlane.f32.xlu0 %v159
  %v161 = vpop.xlane.xlu0 %160
  %v162 = vsel %vm80, %v75, 0.0
  %163 = vadd.xlane.f32.xlu0 %v162
  %v164 = vpop.xlane.xlu0 %163
  %v165 = vsel %vm80, %v76, 0.0
  %166 = vadd.xlane.f32.xlu0 %v165
  %v167 = vpop.xlane.xlu0 %166
  %v168 = vsel %vm80, %v77, 0.0
  %169 = vadd.xlane.f32.xlu0 %v168
  %v170 = vpop.xlane.xlu0 %169
  %v171 = vsel %vm80, %v78, 0.0
  %172 = vadd.xlane.f32.xlu0 %v171
  %v173 = vpop.xlane.xlu0 %172
  %v174 = vsel %vm80, %v79, 0.0
  %175 = vadd.xlane.f32.xlu0 %v174
  %v176 = vpop.xlane.xlu0 %175
  %v177 = vrsqrt.pop %v83
  %v178 = vmul.f32 %v177, %v83
  %v179 = vmul.f32 %v178, %v177
  %v180 = vmul.f32 0.5, %v179
  %v181 = vsub.f32 1.5, %v180
  %v182 = vmul.f32 %v177, %v181
  %v183 = vmul.f32 %v83, %v182
  %vm184 = vcmp.eq.f32.partialorder %v83, inf
  %v185 = vsel %vm184, %v83, %v183
  %vm186 = vcmp.eq.f32.partialorder %v83, 0.0
  %v187 = vand.u32 %v83, 2147483648
  %v188 = vsel %vm186, %v187, %v185
  %v189 = vrsqrt.pop %v86
  %v190 = vmul.f32 %v189, %v86
  %v191 = vmul.f32 %v190, %v189
  %v192 = vmul.f32 0.5, %v191
  %v193 = vsub.f32 1.5, %v192
  %v194 = vmul.f32 %v189, %v193
  %v195 = vmul.f32 %v86, %v194
  %vm196 = vcmp.eq.f32.partialorder %v86, inf
  %v197 = vsel %vm196, %v86, %v195
  %vm198 = vcmp.eq.f32.partialorder %v86, 0.0
  %v199 = vand.u32 %v86, 2147483648
  %v200 = vsel %vm198, %v199, %v197
  %v201 = vrsqrt.pop %v89
  %v202 = vmul.f32 %v201, %v89
  %v203 = vmul.f32 %v202, %v201
  %v204 = vmul.f32 0.5, %v203
  %v205 = vsub.f32 1.5, %v204
  %v206 = vmul.f32 %v201, %v205
  %v207 = vmul.f32 %v89, %v206
  %vm208 = vcmp.eq.f32.partialorder %v89, inf
  %v209 = vsel %vm208, %v89, %v207
  %vm210 = vcmp.eq.f32.partialorder %v89, 0.0
  %v211 = vand.u32 %v89, 2147483648
  %v212 = vsel %vm210, %v211, %v209
  %v213 = vrsqrt.pop %v92
  %v214 = vmul.f32 %v213, %v92
  %v215 = vmul.f32 %v214, %v213
  %v216 = vmul.f32 0.5, %v215
  %v217 = vsub.f32 1.5, %v216
  %v218 = vmul.f32 %v213, %v217
  %v219 = vmul.f32 %v92, %v218
  %vm220 = vcmp.eq.f32.partialorder %v92, inf
  %v221 = vsel %vm220, %v92, %v219
  %vm222 = vcmp.eq.f32.partialorder %v92, 0.0
  %v223 = vand.u32 %v92, 2147483648
  %v224 = vsel %vm222, %v223, %v221
  %v225 = vrsqrt.pop %v95
  %v226 = vmul.f32 %v225, %v95
  %v227 = vmul.f32 %v226, %v225
  %v228 = vmul.f32 0.5, %v227
  %v229 = vsub.f32 1.5, %v228
  %v230 = vmul.f32 %v225, %v229
  %v231 = vmul.f32 %v95, %v230
  %vm232 = vcmp.eq.f32.partialorder %v95, inf
  %v233 = vsel %vm232, %v95, %v231
  %vm234 = vcmp.eq.f32.partialorder %v95, 0.0
  %v235 = vand.u32 %v95, 2147483648
  %v236 = vsel %vm234, %v235, %v233
  %v237 = vrsqrt.pop %v98
  %v238 = vmul.f32 %v237, %v98
  %v239 = vmul.f32 %v238, %v237
  %v240 = vmul.f32 0.5, %v239
  %v241 = vsub.f32 1.5, %v240
  %v242 = vmul.f32 %v237, %v241
  %v243 = vmul.f32 %v98, %v242
  %vm244 = vcmp.eq.f32.partialorder %v98, inf
  %v245 = vsel %vm244, %v98, %v243
  %vm246 = vcmp.eq.f32.partialorder %v98, 0.0
  %v247 = vand.u32 %v98, 2147483648
  %v248 = vsel %vm246, %v247, %v245
  %v249 = vrsqrt.pop %v101
  %v250 = vmul.f32 %v249, %v101
  %v251 = vmul.f32 %v250, %v249
  %v252 = vmul.f32 0.5, %v251
  %v253 = vsub.f32 1.5, %v252
  %v254 = vmul.f32 %v249, %v253
  %v255 = vmul.f32 %v101, %v254
  %vm256 = vcmp.eq.f32.partialorder %v101, inf
  %v257 = vsel %vm256, %v101, %v255
  %vm258 = vcmp.eq.f32.partialorder %v101, 0.0
  %v259 = vand.u32 %v101, 2147483648
  %v260 = vsel %vm258, %v259, %v257
  %v261 = vrsqrt.pop %v104
  %v262 = vmul.f32 %v261, %v104
  %v263 = vmul.f32 %v262, %v261
  %v264 = vmul.f32 0.5, %v263
  %v265 = vsub.f32 1.5, %v264
  %v266 = vmul.f32 %v261, %v265
  %v267 = vmul.f32 %v104, %v266
  %vm268 = vcmp.eq.f32.partialorder %v104, inf
  %v269 = vsel %vm268, %v104, %v267
  %vm270 = vcmp.eq.f32.partialorder %v104, 0.0
  %v271 = vand.u32 %v104, 2147483648
  %v272 = vsel %vm270, %v271, %v269
  %v273 = vrsqrt.pop %v107
  %v274 = vmul.f32 %v273, %v107
  %v275 = vmul.f32 %v274, %v273
  %v276 = vmul.f32 0.5, %v275
  %v277 = vsub.f32 1.5, %v276
  %v278 = vmul.f32 %v273, %v277
  %v279 = vmul.f32 %v107, %v278
  %vm280 = vcmp.eq.f32.partialorder %v107, inf
  %v281 = vsel %vm280, %v107, %v279
  %vm282 = vcmp.eq.f32.partialorder %v107, 0.0
  %v283 = vand.u32 %v107, 2147483648
  %v284 = vsel %vm282, %v283, %v281
  %v285 = vrsqrt.pop %v110
  %v286 = vmul.f32 %v285, %v110
  %v287 = vmul.f32 %v286, %v285
  %v288 = vmul.f32 0.5, %v287
  %v289 = vsub.f32 1.5, %v288
  %v290 = vmul.f32 %v285, %v289
  %v291 = vmul.f32 %v110, %v290
  %vm292 = vcmp.eq.f32.partialorder %v110, inf
  %v293 = vsel %vm292, %v110, %v291
  %vm294 = vcmp.eq.f32.partialorder %v110, 0.0
  %v295 = vand.u32 %v110, 2147483648
  %v296 = vsel %vm294, %v295, %v293
  %v297 = vrsqrt.pop %v113
  %v298 = vmul.f32 %v297, %v113
  %v299 = vmul.f32 %v298, %v297
  %v300 = vmul.f32 0.5, %v299
  %v301 = vsub.f32 1.5, %v300
  %v302 = vmul.f32 %v297, %v301
  %v303 = vmul.f32 %v113, %v302
  %vm304 = vcmp.eq.f32.partialorder %v113, inf
  %v305 = vsel %vm304, %v113, %v303
  %vm306 = vcmp.eq.f32.partialorder %v113, 0.0
  %v307 = vand.u32 %v113, 2147483648
  %v308 = vsel %vm306, %v307, %v305
  %v309 = vrsqrt.pop %v116
  %v310 = vmul.f32 %v309, %v116
  %v311 = vmul.f32 %v310, %v309
  %v312 = vmul.f32 0.5, %v311
  %v313 = vsub.f32 1.5, %v312
  %v314 = vmul.f32 %v309, %v313
  %v315 = vmul.f32 %v116, %v314
  %vm316 = vcmp.eq.f32.partialorder %v116, inf
  %v317 = vsel %vm316, %v116, %v315
  %vm318 = vcmp.eq.f32.partialorder %v116, 0.0
  %v319 = vand.u32 %v116, 2147483648
  %v320 = vsel %vm318, %v319, %v317
  %v321 = vrsqrt.pop %v119
  %v322 = vmul.f32 %v321, %v119
  %v323 = vmul.f32 %v322, %v321
  %v324 = vmul.f32 0.5, %v323
  %v325 = vsub.f32 1.5, %v324
  %v326 = vmul.f32 %v321, %v325
  %v327 = vmul.f32 %v119, %v326
  %vm328 = vcmp.eq.f32.partialorder %v119, inf
  %v329 = vsel %vm328, %v119, %v327
  %vm330 = vcmp.eq.f32.partialorder %v119, 0.0
  %v331 = vand.u32 %v119, 2147483648
  %v332 = vsel %vm330, %v331, %v329
  %v333 = vrsqrt.pop %v122
  %v334 = vmul.f32 %v333, %v122
  %v335 = vmul.f32 %v334, %v333
  %v336 = vmul.f32 0.5, %v335
  %v337 = vsub.f32 1.5, %v336
  %v338 = vmul.f32 %v333, %v337
  %v339 = vmul.f32 %v122, %v338
  %vm340 = vcmp.eq.f32.partialorder %v122, inf
  %v341 = vsel %vm340, %v122, %v339
  %vm342 = vcmp.eq.f32.partialorder %v122, 0.0
  %v343 = vand.u32 %v122, 2147483648
  %v344 = vsel %vm342, %v343, %v341
  %v345 = vrsqrt.pop %v125
  %v346 = vmul.f32 %v345, %v125
  %v347 = vmul.f32 %v346, %v345
  %v348 = vmul.f32 0.5, %v347
  %v349 = vsub.f32 1.5, %v348
  %v350 = vmul.f32 %v345, %v349
  %v351 = vmul.f32 %v125, %v350
  %vm352 = vcmp.eq.f32.partialorder %v125, inf
  %v353 = vsel %vm352, %v125, %v351
  %vm354 = vcmp.eq.f32.partialorder %v125, 0.0
  %v355 = vand.u32 %v125, 2147483648
  %v356 = vsel %vm354, %v355, %v353
  %v357 = vrsqrt.pop %v128
  %v358 = vmul.f32 %v357, %v128
  %v359 = vmul.f32 %v358, %v357
  %v360 = vmul.f32 0.5, %v359
  %v361 = vsub.f32 1.5, %v360
  %v362 = vmul.f32 %v357, %v361
  %v363 = vmul.f32 %v128, %v362
  %vm364 = vcmp.eq.f32.partialorder %v128, inf
  %v365 = vsel %vm364, %v128, %v363
  %vm366 = vcmp.eq.f32.partialorder %v128, 0.0
  %v367 = vand.u32 %v128, 2147483648
  %v368 = vsel %vm366, %v367, %v365
  %v369 = vrsqrt.pop %v131
  %v370 = vmul.f32 %v369, %v131
  %v371 = vmul.f32 %v370, %v369
  %v372 = vmul.f32 0.5, %v371
  %v373 = vsub.f32 1.5, %v372
  %v374 = vmul.f32 %v369, %v373
  %v375 = vmul.f32 %v131, %v374
  %vm376 = vcmp.eq.f32.partialorder %v131, inf
  %v377 = vsel %vm376, %v131, %v375
  %vm378 = vcmp.eq.f32.partialorder %v131, 0.0
  %v379 = vand.u32 %v131, 2147483648
  %v380 = vsel %vm378, %v379, %v377
  %v381 = vrsqrt.pop %v134
  %v382 = vmul.f32 %v381, %v134
  %v383 = vmul.f32 %v382, %v381
  %v384 = vmul.f32 0.5, %v383
  %v385 = vsub.f32 1.5, %v384
  %v386 = vmul.f32 %v381, %v385
  %v387 = vmul.f32 %v134, %v386
  %vm388 = vcmp.eq.f32.partialorder %v134, inf
  %v389 = vsel %vm388, %v134, %v387
  %vm390 = vcmp.eq.f32.partialorder %v134, 0.0
  %v391 = vand.u32 %v134, 2147483648
  %v392 = vsel %vm390, %v391, %v389
  %v393 = vrsqrt.pop %v137
  %v394 = vmul.f32 %v393, %v137
  %v395 = vmul.f32 %v394, %v393
  %v396 = vmul.f32 0.5, %v395
  %v397 = vsub.f32 1.5, %v396
  %v398 = vmul.f32 %v393, %v397
  %v399 = vmul.f32 %v137, %v398
  %vm400 = vcmp.eq.f32.partialorder %v137, inf
  %v401 = vsel %vm400, %v137, %v399
  %vm402 = vcmp.eq.f32.partialorder %v137, 0.0
  %v403 = vand.u32 %v137, 2147483648
  %v404 = vsel %vm402, %v403, %v401
  %v405 = vrsqrt.pop %v140
  %v406 = vmul.f32 %v405, %v140
  %v407 = vmul.f32 %v406, %v405
  %v408 = vmul.f32 0.5, %v407
  %v409 = vsub.f32 1.5, %v408
  %v410 = vmul.f32 %v405, %v409
  %v411 = vmul.f32 %v140, %v410
  %vm412 = vcmp.eq.f32.partialorder %v140, inf
  %v413 = vsel %vm412, %v140, %v411
  %vm414 = vcmp.eq.f32.partialorder %v140, 0.0
  %v415 = vand.u32 %v140, 2147483648
  %v416 = vsel %vm414, %v415, %v413
  %v417 = vrsqrt.pop %v143
  %v418 = vmul.f32 %v417, %v143
  %v419 = vmul.f32 %v418, %v417
  %v420 = vmul.f32 0.5, %v419
  %v421 = vsub.f32 1.5, %v420
  %v422 = vmul.f32 %v417, %v421
  %v423 = vmul.f32 %v143, %v422
  %vm424 = vcmp.eq.f32.partialorder %v143, inf
  %v425 = vsel %vm424, %v143, %v423
  %vm426 = vcmp.eq.f32.partialorder %v143, 0.0
  %v427 = vand.u32 %v143, 2147483648
  %v428 = vsel %vm426, %v427, %v425
  %v429 = vrsqrt.pop %v146
  %v430 = vmul.f32 %v429, %v146
  %v431 = vmul.f32 %v430, %v429
  %v432 = vmul.f32 0.5, %v431
  %v433 = vsub.f32 1.5, %v432
  %v434 = vmul.f32 %v429, %v433
  %v435 = vmul.f32 %v146, %v434
  %vm436 = vcmp.eq.f32.partialorder %v146, inf
  %v437 = vsel %vm436, %v146, %v435
  %vm438 = vcmp.eq.f32.partialorder %v146, 0.0
  %v439 = vand.u32 %v146, 2147483648
  %v440 = vsel %vm438, %v439, %v437
  %v441 = vrsqrt.pop %v149
  %v442 = vmul.f32 %v441, %v149
  %v443 = vmul.f32 %v442, %v441
  %v444 = vmul.f32 0.5, %v443
  %v445 = vsub.f32 1.5, %v444
  %v446 = vmul.f32 %v441, %v445
  %v447 = vmul.f32 %v149, %v446
  %vm448 = vcmp.eq.f32.partialorder %v149, inf
  %v449 = vsel %vm448, %v149, %v447
  %vm450 = vcmp.eq.f32.partialorder %v149, 0.0
  %v451 = vand.u32 %v149, 2147483648
  %v452 = vsel %vm450, %v451, %v449
  %v453 = vrsqrt.pop %v152
  %v454 = vmul.f32 %v453, %v152
  %v455 = vmul.f32 %v454, %v453
  %v456 = vmul.f32 0.5, %v455
  %v457 = vsub.f32 1.5, %v456
  %v458 = vmul.f32 %v453, %v457
  %v459 = vmul.f32 %v152, %v458
  %vm460 = vcmp.eq.f32.partialorder %v152, inf
  %v461 = vsel %vm460, %v152, %v459
  %vm462 = vcmp.eq.f32.partialorder %v152, 0.0
  %v463 = vand.u32 %v152, 2147483648
  %v464 = vsel %vm462, %v463, %v461
  %v465 = vrsqrt.pop %v155
  %v466 = vmul.f32 %v465, %v155
  %v467 = vmul.f32 %v466, %v465
  %v468 = vmul.f32 0.5, %v467
  %v469 = vsub.f32 1.5, %v468
  %v470 = vmul.f32 %v465, %v469
  %v471 = vmul.f32 %v155, %v470
  %vm472 = vcmp.eq.f32.partialorder %v155, inf
  %v473 = vsel %vm472, %v155, %v471
  %vm474 = vcmp.eq.f32.partialorder %v155, 0.0
  %v475 = vand.u32 %v155, 2147483648
  %v476 = vsel %vm474, %v475, %v473
  %v477 = vrsqrt.pop %v158
  %v478 = vmul.f32 %v477, %v158
  %v479 = vmul.f32 %v478, %v477
  %v480 = vmul.f32 0.5, %v479
  %v481 = vsub.f32 1.5, %v480
  %v482 = vmul.f32 %v477, %v481
  %v483 = vmul.f32 %v158, %v482
  %vm484 = vcmp.eq.f32.partialorder %v158, inf
  %v485 = vsel %vm484, %v158, %v483
  %vm486 = vcmp.eq.f32.partialorder %v158, 0.0
  %v487 = vand.u32 %v158, 2147483648
  %v488 = vsel %vm486, %v487, %v485
  %v489 = vrsqrt.pop %v161
  %v490 = vmul.f32 %v489, %v161
  %v491 = vmul.f32 %v490, %v489
  %v492 = vmul.f32 0.5, %v491
  %v493 = vsub.f32 1.5, %v492
  %v494 = vmul.f32 %v489, %v493
  %v495 = vmul.f32 %v161, %v494
  %vm496 = vcmp.eq.f32.partialorder %v161, inf
  %v497 = vsel %vm496, %v161, %v495
  %vm498 = vcmp.eq.f32.partialorder %v161, 0.0
  %v499 = vand.u32 %v161, 2147483648
  %v500 = vsel %vm498, %v499, %v497
  %v501 = vrsqrt.pop %v164
  %v502 = vmul.f32 %v501, %v164
  %v503 = vmul.f32 %v502, %v501
  %v504 = vmul.f32 0.5, %v503
  %v505 = vsub.f32 1.5, %v504
  %v506 = vmul.f32 %v501, %v505
  %v507 = vmul.f32 %v164, %v506
  %vm508 = vcmp.eq.f32.partialorder %v164, inf
  %v509 = vsel %vm508, %v164, %v507
  %vm510 = vcmp.eq.f32.partialorder %v164, 0.0
  %v511 = vand.u32 %v164, 2147483648
  %v512 = vsel %vm510, %v511, %v509
  %v513 = vrsqrt.pop %v167
  %v514 = vmul.f32 %v513, %v167
  %v515 = vmul.f32 %v514, %v513
  %v516 = vmul.f32 0.5, %v515
  %v517 = vsub.f32 1.5, %v516
  %v518 = vmul.f32 %v513, %v517
  %v519 = vmul.f32 %v167, %v518
  %vm520 = vcmp.eq.f32.partialorder %v167, inf
  %v521 = vsel %vm520, %v167, %v519
  %vm522 = vcmp.eq.f32.partialorder %v167, 0.0
  %v523 = vand.u32 %v167, 2147483648
  %v524 = vsel %vm522, %v523, %v521
  %v525 = vrsqrt.pop %v170
  %v526 = vmul.f32 %v525, %v170
  %v527 = vmul.f32 %v526, %v525
  %v528 = vmul.f32 0.5, %v527
  %v529 = vsub.f32 1.5, %v528
  %v530 = vmul.f32 %v525, %v529
  %v531 = vmul.f32 %v170, %v530
  %vm532 = vcmp.eq.f32.partialorder %v170, inf
  %v533 = vsel %vm532, %v170, %v531
  %vm534 = vcmp.eq.f32.partialorder %v170, 0.0
  %v535 = vand.u32 %v170, 2147483648
  %v536 = vsel %vm534, %v535, %v533
  %v537 = vrsqrt.pop %v173
  %v538 = vmul.f32 %v537, %v173
  %v539 = vmul.f32 %v538, %v537
  %v540 = vmul.f32 0.5, %v539
  %v541 = vsub.f32 1.5, %v540
  %v542 = vmul.f32 %v537, %v541
  %v543 = vmul.f32 %v173, %v542
  %vm544 = vcmp.eq.f32.partialorder %v173, inf
  %v545 = vsel %vm544, %v173, %v543
  %vm546 = vcmp.eq.f32.partialorder %v173, 0.0
  %v547 = vand.u32 %v173, 2147483648
  %v548 = vsel %vm546, %v547, %v545
  %v549 = vrsqrt.pop %v176
  %v550 = vmul.f32 %v549, %v176
  %v551 = vmul.f32 %v550, %v549
  %v552 = vmul.f32 0.5, %v551
  %v553 = vsub.f32 1.5, %v552
  %v554 = vmul.f32 %v549, %v553
  %v555 = vmul.f32 %v176, %v554
  %vm556 = vcmp.eq.f32.partialorder %v176, inf
  %v557 = vsel %vm556, %v176, %v555
  %vm558 = vcmp.eq.f32.partialorder %v176, 0.0
  %v559 = vand.u32 %v176, 2147483648
  %v560 = vsel %vm558, %v559, %v557
  %v561 = vadd.f32 %v83, 1.0
  %v562 = vadd.f32 %v86, 1.0
  %v563 = vadd.f32 %v89, 1.0
  %v564 = vadd.f32 %v92, 1.0
  %v565 = vadd.f32 %v95, 1.0
  %v566 = vadd.f32 %v98, 1.0
  %v567 = vadd.f32 %v101, 1.0
  %v568 = vadd.f32 %v104, 1.0
  %v569 = vadd.f32 %v107, 1.0
  %v570 = vadd.f32 %v110, 1.0
  %v571 = vadd.f32 %v113, 1.0
  %v572 = vadd.f32 %v116, 1.0
  %v573 = vadd.f32 %v119, 1.0
  %v574 = vadd.f32 %v122, 1.0
  %v575 = vadd.f32 %v125, 1.0
  %v576 = vadd.f32 %v128, 1.0
  %v577 = vadd.f32 %v131, 1.0
  %v578 = vadd.f32 %v134, 1.0
  %v579 = vadd.f32 %v137, 1.0
  %v580 = vadd.f32 %v140, 1.0
  %v581 = vadd.f32 %v143, 1.0
  %v582 = vadd.f32 %v146, 1.0
  %v583 = vadd.f32 %v149, 1.0
  %v584 = vadd.f32 %v152, 1.0
  %v585 = vadd.f32 %v155, 1.0
  %v586 = vadd.f32 %v158, 1.0
  %v587 = vadd.f32 %v161, 1.0
  %v588 = vadd.f32 %v164, 1.0
  %v589 = vadd.f32 %v167, 1.0
  %v590 = vadd.f32 %v170, 1.0
  %v591 = vadd.f32 %v173, 1.0
  %v592 = vadd.f32 %v176, 1.0
  %v593 = vrsqrt.pop %v561
  %v594 = vmul.f32 %v593, %v561
  %v595 = vmul.f32 %v594, %v593
  %v596 = vmul.f32 0.5, %v595
  %v597 = vsub.f32 1.5, %v596
  %v598 = vmul.f32 %v593, %v597
  %v599 = vmul.f32 %v561, %v598
  %vm600 = vcmp.eq.f32.partialorder %v561, inf
  %v601 = vsel %vm600, %v561, %v599
  %vm602 = vcmp.eq.f32.partialorder %v561, 0.0
  %v603 = vand.u32 %v561, 2147483648
  %v604 = vsel %vm602, %v603, %v601
  %v605 = vrsqrt.pop %v562
  %v606 = vmul.f32 %v605, %v562
  %v607 = vmul.f32 %v606, %v605
  %v608 = vmul.f32 0.5, %v607
  %v609 = vsub.f32 1.5, %v608
  %v610 = vmul.f32 %v605, %v609
  %v611 = vmul.f32 %v562, %v610
  %vm612 = vcmp.eq.f32.partialorder %v562, inf
  %v613 = vsel %vm612, %v562, %v611
  %vm614 = vcmp.eq.f32.partialorder %v562, 0.0
  %v615 = vand.u32 %v562, 2147483648
  %v616 = vsel %vm614, %v615, %v613
  %v617 = vrsqrt.pop %v563
  %v618 = vmul.f32 %v617, %v563
  %v619 = vmul.f32 %v618, %v617
  %v620 = vmul.f32 0.5, %v619
  %v621 = vsub.f32 1.5, %v620
  %v622 = vmul.f32 %v617, %v621
  %v623 = vmul.f32 %v563, %v622
  %vm624 = vcmp.eq.f32.partialorder %v563, inf
  %v625 = vsel %vm624, %v563, %v623
  %vm626 = vcmp.eq.f32.partialorder %v563, 0.0
  %v627 = vand.u32 %v563, 2147483648
  %v628 = vsel %vm626, %v627, %v625
  %v629 = vrsqrt.pop %v564
  %v630 = vmul.f32 %v629, %v564
  %v631 = vmul.f32 %v630, %v629
  %v632 = vmul.f32 0.5, %v631
  %v633 = vsub.f32 1.5, %v632
  %v634 = vmul.f32 %v629, %v633
  %v635 = vmul.f32 %v564, %v634
  %vm636 = vcmp.eq.f32.partialorder %v564, inf
  %v637 = vsel %vm636, %v564, %v635
  %vm638 = vcmp.eq.f32.partialorder %v564, 0.0
  %v639 = vand.u32 %v564, 2147483648
  %v640 = vsel %vm638, %v639, %v637
  %v641 = vrsqrt.pop %v565
  %v642 = vmul.f32 %v641, %v565
  %v643 = vmul.f32 %v642, %v641
  %v644 = vmul.f32 0.5, %v643
  %v645 = vsub.f32 1.5, %v644
  %v646 = vmul.f32 %v641, %v645
  %v647 = vmul.f32 %v565, %v646
  %vm648 = vcmp.eq.f32.partialorder %v565, inf
  %v649 = vsel %vm648, %v565, %v647
  %vm650 = vcmp.eq.f32.partialorder %v565, 0.0
  %v651 = vand.u32 %v565, 2147483648
  %v652 = vsel %vm650, %v651, %v649
  %v653 = vrsqrt.pop %v566
  %v654 = vmul.f32 %v653, %v566
  %v655 = vmul.f32 %v654, %v653
  %v656 = vmul.f32 0.5, %v655
  %v657 = vsub.f32 1.5, %v656
  %v658 = vmul.f32 %v653, %v657
  %v659 = vmul.f32 %v566, %v658
  %vm660 = vcmp.eq.f32.partialorder %v566, inf
  %v661 = vsel %vm660, %v566, %v659
  %vm662 = vcmp.eq.f32.partialorder %v566, 0.0
  %v663 = vand.u32 %v566, 2147483648
  %v664 = vsel %vm662, %v663, %v661
  %v665 = vrsqrt.pop %v567
  %v666 = vmul.f32 %v665, %v567
  %v667 = vmul.f32 %v666, %v665
  %v668 = vmul.f32 0.5, %v667
  %v669 = vsub.f32 1.5, %v668
  %v670 = vmul.f32 %v665, %v669
  %v671 = vmul.f32 %v567, %v670
  %vm672 = vcmp.eq.f32.partialorder %v567, inf
  %v673 = vsel %vm672, %v567, %v671
  %vm674 = vcmp.eq.f32.partialorder %v567, 0.0
  %v675 = vand.u32 %v567, 2147483648
  %v676 = vsel %vm674, %v675, %v673
  %v677 = vrsqrt.pop %v568
  %v678 = vmul.f32 %v677, %v568
  %v679 = vmul.f32 %v678, %v677
  %v680 = vmul.f32 0.5, %v679
  %v681 = vsub.f32 1.5, %v680
  %v682 = vmul.f32 %v677, %v681
  %v683 = vmul.f32 %v568, %v682
  %vm684 = vcmp.eq.f32.partialorder %v568, inf
  %v685 = vsel %vm684, %v568, %v683
  %vm686 = vcmp.eq.f32.partialorder %v568, 0.0
  %v687 = vand.u32 %v568, 2147483648
  %v688 = vsel %vm686, %v687, %v685
  %v689 = vrsqrt.pop %v569
  %v690 = vmul.f32 %v689, %v569
  %v691 = vmul.f32 %v690, %v689
  %v692 = vmul.f32 0.5, %v691
  %v693 = vsub.f32 1.5, %v692
  %v694 = vmul.f32 %v689, %v693
  %v695 = vmul.f32 %v569, %v694
  %vm696 = vcmp.eq.f32.partialorder %v569, inf
  %v697 = vsel %vm696, %v569, %v695
  %vm698 = vcmp.eq.f32.partialorder %v569, 0.0
  %v699 = vand.u32 %v569, 2147483648
  %v700 = vsel %vm698, %v699, %v697
  %v701 = vrsqrt.pop %v570
  %v702 = vmul.f32 %v701, %v570
  %v703 = vmul.f32 %v702, %v701
  %v704 = vmul.f32 0.5, %v703
  %v705 = vsub.f32 1.5, %v704
  %v706 = vmul.f32 %v701, %v705
  %v707 = vmul.f32 %v570, %v706
  %vm708 = vcmp.eq.f32.partialorder %v570, inf
  %v709 = vsel %vm708, %v570, %v707
  %vm710 = vcmp.eq.f32.partialorder %v570, 0.0
  %v711 = vand.u32 %v570, 2147483648
  %v712 = vsel %vm710, %v711, %v709
  %v713 = vrsqrt.pop %v571
  %v714 = vmul.f32 %v713, %v571
  %v715 = vmul.f32 %v714, %v713
  %v716 = vmul.f32 0.5, %v715
  %v717 = vsub.f32 1.5, %v716
  %v718 = vmul.f32 %v713, %v717
  %v719 = vmul.f32 %v571, %v718
  %vm720 = vcmp.eq.f32.partialorder %v571, inf
  %v721 = vsel %vm720, %v571, %v719
  %vm722 = vcmp.eq.f32.partialorder %v571, 0.0
  %v723 = vand.u32 %v571, 2147483648
  %v724 = vsel %vm722, %v723, %v721
  %v725 = vrsqrt.pop %v572
  %v726 = vmul.f32 %v725, %v572
  %v727 = vmul.f32 %v726, %v725
  %v728 = vmul.f32 0.5, %v727
  %v729 = vsub.f32 1.5, %v728
  %v730 = vmul.f32 %v725, %v729
  %v731 = vmul.f32 %v572, %v730
  %vm732 = vcmp.eq.f32.partialorder %v572, inf
  %v733 = vsel %vm732, %v572, %v731
  %vm734 = vcmp.eq.f32.partialorder %v572, 0.0
  %v735 = vand.u32 %v572, 2147483648
  %v736 = vsel %vm734, %v735, %v733
  %v737 = vrsqrt.pop %v573
  %v738 = vmul.f32 %v737, %v573
  %v739 = vmul.f32 %v738, %v737
  %v740 = vmul.f32 0.5, %v739
  %v741 = vsub.f32 1.5, %v740
  %v742 = vmul.f32 %v737, %v741
  %v743 = vmul.f32 %v573, %v742
  %vm744 = vcmp.eq.f32.partialorder %v573, inf
  %v745 = vsel %vm744, %v573, %v743
  %vm746 = vcmp.eq.f32.partialorder %v573, 0.0
  %v747 = vand.u32 %v573, 2147483648
  %v748 = vsel %vm746, %v747, %v745
  %v749 = vrsqrt.pop %v574
  %v750 = vmul.f32 %v749, %v574
  %v751 = vmul.f32 %v750, %v749
  %v752 = vmul.f32 0.5, %v751
  %v753 = vsub.f32 1.5, %v752
  %v754 = vmul.f32 %v749, %v753
  %v755 = vmul.f32 %v574, %v754
  %vm756 = vcmp.eq.f32.partialorder %v574, inf
  %v757 = vsel %vm756, %v574, %v755
  %vm758 = vcmp.eq.f32.partialorder %v574, 0.0
  %v759 = vand.u32 %v574, 2147483648
  %v760 = vsel %vm758, %v759, %v757
  %v761 = vrsqrt.pop %v575
  %v762 = vmul.f32 %v761, %v575
  %v763 = vmul.f32 %v762, %v761
  %v764 = vmul.f32 0.5, %v763
  %v765 = vsub.f32 1.5, %v764
  %v766 = vmul.f32 %v761, %v765
  %v767 = vmul.f32 %v575, %v766
  %vm768 = vcmp.eq.f32.partialorder %v575, inf
  %v769 = vsel %vm768, %v575, %v767
  %vm770 = vcmp.eq.f32.partialorder %v575, 0.0
  %v771 = vand.u32 %v575, 2147483648
  %v772 = vsel %vm770, %v771, %v769
  %v773 = vrsqrt.pop %v576
  %v774 = vmul.f32 %v773, %v576
  %v775 = vmul.f32 %v774, %v773
  %v776 = vmul.f32 0.5, %v775
  %v777 = vsub.f32 1.5, %v776
  %v778 = vmul.f32 %v773, %v777
  %v779 = vmul.f32 %v576, %v778
  %vm780 = vcmp.eq.f32.partialorder %v576, inf
  %v781 = vsel %vm780, %v576, %v779
  %vm782 = vcmp.eq.f32.partialorder %v576, 0.0
  %v783 = vand.u32 %v576, 2147483648
  %v784 = vsel %vm782, %v783, %v781
  %v785 = vrsqrt.pop %v577
  %v786 = vmul.f32 %v785, %v577
  %v787 = vmul.f32 %v786, %v785
  %v788 = vmul.f32 0.5, %v787
  %v789 = vsub.f32 1.5, %v788
  %v790 = vmul.f32 %v785, %v789
  %v791 = vmul.f32 %v577, %v790
  %vm792 = vcmp.eq.f32.partialorder %v577, inf
  %v793 = vsel %vm792, %v577, %v791
  %vm794 = vcmp.eq.f32.partialorder %v577, 0.0
  %v795 = vand.u32 %v577, 2147483648
  %v796 = vsel %vm794, %v795, %v793
  %v797 = vrsqrt.pop %v578
  %v798 = vmul.f32 %v797, %v578
  %v799 = vmul.f32 %v798, %v797
  %v800 = vmul.f32 0.5, %v799
  %v801 = vsub.f32 1.5, %v800
  %v802 = vmul.f32 %v797, %v801
  %v803 = vmul.f32 %v578, %v802
  %vm804 = vcmp.eq.f32.partialorder %v578, inf
  %v805 = vsel %vm804, %v578, %v803
  %vm806 = vcmp.eq.f32.partialorder %v578, 0.0
  %v807 = vand.u32 %v578, 2147483648
  %v808 = vsel %vm806, %v807, %v805
  %v809 = vrsqrt.pop %v579
  %v810 = vmul.f32 %v809, %v579
  %v811 = vmul.f32 %v810, %v809
  %v812 = vmul.f32 0.5, %v811
  %v813 = vsub.f32 1.5, %v812
  %v814 = vmul.f32 %v809, %v813
  %v815 = vmul.f32 %v579, %v814
  %vm816 = vcmp.eq.f32.partialorder %v579, inf
  %v817 = vsel %vm816, %v579, %v815
  %vm818 = vcmp.eq.f32.partialorder %v579, 0.0
  %v819 = vand.u32 %v579, 2147483648
  %v820 = vsel %vm818, %v819, %v817
  %v821 = vrsqrt.pop %v580
  %v822 = vmul.f32 %v821, %v580
  %v823 = vmul.f32 %v822, %v821
  %v824 = vmul.f32 0.5, %v823
  %v825 = vsub.f32 1.5, %v824
  %v826 = vmul.f32 %v821, %v825
  %v827 = vmul.f32 %v580, %v826
  %vm828 = vcmp.eq.f32.partialorder %v580, inf
  %v829 = vsel %vm828, %v580, %v827
  %vm830 = vcmp.eq.f32.partialorder %v580, 0.0
  %v831 = vand.u32 %v580, 2147483648
  %v832 = vsel %vm830, %v831, %v829
  %v833 = vrsqrt.pop %v581
  %v834 = vmul.f32 %v833, %v581
  %v835 = vmul.f32 %v834, %v833
  %v836 = vmul.f32 0.5, %v835
  %v837 = vsub.f32 1.5, %v836
  %v838 = vmul.f32 %v833, %v837
  %v839 = vmul.f32 %v581, %v838
  %vm840 = vcmp.eq.f32.partialorder %v581, inf
  %v841 = vsel %vm840, %v581, %v839
  %vm842 = vcmp.eq.f32.partialorder %v581, 0.0
  %v843 = vand.u32 %v581, 2147483648
  %v844 = vsel %vm842, %v843, %v841
  %v845 = vrsqrt.pop %v582
  %v846 = vmul.f32 %v845, %v582
  %v847 = vmul.f32 %v846, %v845
  %v848 = vmul.f32 0.5, %v847
  %v849 = vsub.f32 1.5, %v848
  %v850 = vmul.f32 %v845, %v849
  %v851 = vmul.f32 %v582, %v850
  %vm852 = vcmp.eq.f32.partialorder %v582, inf
  %v853 = vsel %vm852, %v582, %v851
  %vm854 = vcmp.eq.f32.partialorder %v582, 0.0
  %v855 = vand.u32 %v582, 2147483648
  %v856 = vsel %vm854, %v855, %v853
  %v857 = vrsqrt.pop %v583
  %v858 = vmul.f32 %v857, %v583
  %v859 = vmul.f32 %v858, %v857
  %v860 = vmul.f32 0.5, %v859
  %v861 = vsub.f32 1.5, %v860
  %v862 = vmul.f32 %v857, %v861
  %v863 = vmul.f32 %v583, %v862
  %vm864 = vcmp.eq.f32.partialorder %v583, inf
  %v865 = vsel %vm864, %v583, %v863
  %vm866 = vcmp.eq.f32.partialorder %v583, 0.0
  %v867 = vand.u32 %v583, 2147483648
  %v868 = vsel %vm866, %v867, %v865
  %v869 = vrsqrt.pop %v584
  %v870 = vmul.f32 %v869, %v584
  %v871 = vmul.f32 %v870, %v869
  %v872 = vmul.f32 0.5, %v871
  %v873 = vsub.f32 1.5, %v872
  %v874 = vmul.f32 %v869, %v873
  %v875 = vmul.f32 %v584, %v874
  %vm876 = vcmp.eq.f32.partialorder %v584, inf
  %v877 = vsel %vm876, %v584, %v875
  %vm878 = vcmp.eq.f32.partialorder %v584, 0.0
  %v879 = vand.u32 %v584, 2147483648
  %v880 = vsel %vm878, %v879, %v877
  %v881 = vrsqrt.pop %v585
  %v882 = vmul.f32 %v881, %v585
  %v883 = vmul.f32 %v882, %v881
  %v884 = vmul.f32 0.5, %v883
  %v885 = vsub.f32 1.5, %v884
  %v886 = vmul.f32 %v881, %v885
  %v887 = vmul.f32 %v585, %v886
  %vm888 = vcmp.eq.f32.partialorder %v585, inf
  %v889 = vsel %vm888, %v585, %v887
  %vm890 = vcmp.eq.f32.partialorder %v585, 0.0
  %v891 = vand.u32 %v585, 2147483648
  %v892 = vsel %vm890, %v891, %v889
  %v893 = vrsqrt.pop %v586
  %v894 = vmul.f32 %v893, %v586
  %v895 = vmul.f32 %v894, %v893
  %v896 = vmul.f32 0.5, %v895
  %v897 = vsub.f32 1.5, %v896
  %v898 = vmul.f32 %v893, %v897
  %v899 = vmul.f32 %v586, %v898
  %vm900 = vcmp.eq.f32.partialorder %v586, inf
  %v901 = vsel %vm900, %v586, %v899
  %vm902 = vcmp.eq.f32.partialorder %v586, 0.0
  %v903 = vand.u32 %v586, 2147483648
  %v904 = vsel %vm902, %v903, %v901
  %v905 = vrsqrt.pop %v587
  %v906 = vmul.f32 %v905, %v587
  %v907 = vmul.f32 %v906, %v905
  %v908 = vmul.f32 0.5, %v907
  %v909 = vsub.f32 1.5, %v908
  %v910 = vmul.f32 %v905, %v909
  %v911 = vmul.f32 %v587, %v910
  %vm912 = vcmp.eq.f32.partialorder %v587, inf
  %v913 = vsel %vm912, %v587, %v911
  %vm914 = vcmp.eq.f32.partialorder %v587, 0.0
  %v915 = vand.u32 %v587, 2147483648
  %v916 = vsel %vm914, %v915, %v913
  %v917 = vrsqrt.pop %v588
  %v918 = vmul.f32 %v917, %v588
  %v919 = vmul.f32 %v918, %v917
  %v920 = vmul.f32 0.5, %v919
  %v921 = vsub.f32 1.5, %v920
  %v922 = vmul.f32 %v917, %v921
  %v923 = vmul.f32 %v588, %v922
  %vm924 = vcmp.eq.f32.partialorder %v588, inf
  %v925 = vsel %vm924, %v588, %v923
  %vm926 = vcmp.eq.f32.partialorder %v588, 0.0
  %v927 = vand.u32 %v588, 2147483648
  %v928 = vsel %vm926, %v927, %v925
  %v929 = vrsqrt.pop %v589
  %v930 = vmul.f32 %v929, %v589
  %v931 = vmul.f32 %v930, %v929
  %v932 = vmul.f32 0.5, %v931
  %v933 = vsub.f32 1.5, %v932
  %v934 = vmul.f32 %v929, %v933
  %v935 = vmul.f32 %v589, %v934
  %vm936 = vcmp.eq.f32.partialorder %v589, inf
  %v937 = vsel %vm936, %v589, %v935
  %vm938 = vcmp.eq.f32.partialorder %v589, 0.0
  %v939 = vand.u32 %v589, 2147483648
  %v940 = vsel %vm938, %v939, %v937
  %v941 = vrsqrt.pop %v590
  %v942 = vmul.f32 %v941, %v590
  %v943 = vmul.f32 %v942, %v941
  %v944 = vmul.f32 0.5, %v943
  %v945 = vsub.f32 1.5, %v944
  %v946 = vmul.f32 %v941, %v945
  %v947 = vmul.f32 %v590, %v946
  %vm948 = vcmp.eq.f32.partialorder %v590, inf
  %v949 = vsel %vm948, %v590, %v947
  %vm950 = vcmp.eq.f32.partialorder %v590, 0.0
  %v951 = vand.u32 %v590, 2147483648
  %v952 = vsel %vm950, %v951, %v949
  %v953 = vrsqrt.pop %v591
  %v954 = vmul.f32 %v953, %v591
  %v955 = vmul.f32 %v954, %v953
  %v956 = vmul.f32 0.5, %v955
  %v957 = vsub.f32 1.5, %v956
  %v958 = vmul.f32 %v953, %v957
  %v959 = vmul.f32 %v591, %v958
  %vm960 = vcmp.eq.f32.partialorder %v591, inf
  %v961 = vsel %vm960, %v591, %v959
  %vm962 = vcmp.eq.f32.partialorder %v591, 0.0
  %v963 = vand.u32 %v591, 2147483648
  %v964 = vsel %vm962, %v963, %v961
  %v965 = vrsqrt.pop %v592
  %v966 = vmul.f32 %v965, %v592
  %v967 = vmul.f32 %v966, %v965
  %v968 = vmul.f32 0.5, %v967
  %v969 = vsub.f32 1.5, %v968
  %v970 = vmul.f32 %v965, %v969
  %v971 = vmul.f32 %v592, %v970
  %vm972 = vcmp.eq.f32.partialorder %v592, inf
  %v973 = vsel %vm972, %v592, %v971
  %vm974 = vcmp.eq.f32.partialorder %v592, 0.0
  %v975 = vand.u32 %v592, 2147483648
  %v976 = vsel %vm974, %v975, %v973
  %v977 = vadd.f32 %v188, %v604
  %v978 = vadd.f32 %v200, %v616
  %v979 = vadd.f32 %v212, %v628
  %v980 = vadd.f32 %v224, %v640
  %v981 = vadd.f32 %v236, %v652
  %v982 = vadd.f32 %v248, %v664
  %v983 = vadd.f32 %v260, %v676
  %v984 = vadd.f32 %v272, %v688
  %v985 = vadd.f32 %v284, %v700
  %v986 = vadd.f32 %v296, %v712
  %v987 = vadd.f32 %v308, %v724
  %v988 = vadd.f32 %v320, %v736
  %v989 = vadd.f32 %v332, %v748
  %v990 = vadd.f32 %v344, %v760
  %v991 = vadd.f32 %v356, %v772
  %v992 = vadd.f32 %v368, %v784
  %v993 = vadd.f32 %v380, %v796
  %v994 = vadd.f32 %v392, %v808
  %v995 = vadd.f32 %v404, %v820
  %v996 = vadd.f32 %v416, %v832
  %v997 = vadd.f32 %v428, %v844
  %v998 = vadd.f32 %v440, %v856
  %v999 = vadd.f32 %v452, %v868
  %v1000 = vadd.f32 %v464, %v880
  %v1001 = vadd.f32 %v476, %v892
  %v1002 = vadd.f32 %v488, %v904
  %v1003 = vadd.f32 %v500, %v916
  %v1004 = vadd.f32 %v512, %v928
  %v1005 = vadd.f32 %v524, %v940
  %v1006 = vadd.f32 %v536, %v952
  %v1007 = vadd.f32 %v548, %v964
  %v1008 = vadd.f32 %v560, %v976
  %v1009 = vlog2.pop %v977
  %v1010 = vmul.f32 %v1009, 0.6931472
  %v1011 = vlog2.pop %v978
  %v1012 = vmul.f32 %v1011, 0.6931472
  %v1013 = vlog2.pop %v979
  %v1014 = vmul.f32 %v1013, 0.6931472
  %v1015 = vlog2.pop %v980
  %v1016 = vmul.f32 %v1015, 0.6931472
  %v1017 = vlog2.pop %v981
  %v1018 = vmul.f32 %v1017, 0.6931472
  %v1019 = vlog2.pop %v982
  %v1020 = vmul.f32 %v1019, 0.6931472
  %v1021 = vlog2.pop %v983
  %v1022 = vmul.f32 %v1021, 0.6931472
  %v1023 = vlog2.pop %v984
  %v1024 = vmul.f32 %v1023, 0.6931472
  %v1025 = vlog2.pop %v985
  %v1026 = vmul.f32 %v1025, 0.6931472
  %v1027 = vlog2.pop %v986
  %v1028 = vmul.f32 %v1027, 0.6931472
  %v1029 = vlog2.pop %v987
  %v1030 = vmul.f32 %v1029, 0.6931472
  %v1031 = vlog2.pop %v988
  %v1032 = vmul.f32 %v1031, 0.6931472
  %v1033 = vlog2.pop %v989
  %v1034 = vmul.f32 %v1033, 0.6931472
  %v1035 = vlog2.pop %v990
  %v1036 = vmul.f32 %v1035, 0.6931472
  %v1037 = vlog2.pop %v991
  %v1038 = vmul.f32 %v1037, 0.6931472
  %v1039 = vlog2.pop %v992
  %v1040 = vmul.f32 %v1039, 0.6931472
  %v1041 = vlog2.pop %v993
  %v1042 = vmul.f32 %v1041, 0.6931472
  %v1043 = vlog2.pop %v994
  %v1044 = vmul.f32 %v1043, 0.6931472
  %v1045 = vlog2.pop %v995
  %v1046 = vmul.f32 %v1045, 0.6931472
  %v1047 = vlog2.pop %v996
  %v1048 = vmul.f32 %v1047, 0.6931472
  %v1049 = vlog2.pop %v997
  %v1050 = vmul.f32 %v1049, 0.6931472
  %v1051 = vlog2.pop %v998
  %v1052 = vmul.f32 %v1051, 0.6931472
  %v1053 = vlog2.pop %v999
  %v1054 = vmul.f32 %v1053, 0.6931472
  %v1055 = vlog2.pop %v1000
  %v1056 = vmul.f32 %v1055, 0.6931472
  %v1057 = vlog2.pop %v1001
  %v1058 = vmul.f32 %v1057, 0.6931472
  %v1059 = vlog2.pop %v1002
  %v1060 = vmul.f32 %v1059, 0.6931472
  %v1061 = vlog2.pop %v1003
  %v1062 = vmul.f32 %v1061, 0.6931472
  %v1063 = vlog2.pop %v1004
  %v1064 = vmul.f32 %v1063, 0.6931472
  %v1065 = vlog2.pop %v1005
  %v1066 = vmul.f32 %v1065, 0.6931472
  %v1067 = vlog2.pop %v1006
  %v1068 = vmul.f32 %v1067, 0.6931472
  %v1069 = vlog2.pop %v1007
  %v1070 = vmul.f32 %v1069, 0.6931472
  %v1071 = vlog2.pop %v1008
  %v1072 = vmul.f32 %v1071, 0.6931472
  %vm1073 = vcmp.gt.f32.partialorder %v188, 1e-07
  %vm1074 = vcmp.gt.f32.partialorder %v200, 1e-07
  %vm1075 = vcmp.gt.f32.partialorder %v212, 1e-07
  %vm1076 = vcmp.gt.f32.partialorder %v224, 1e-07
  %vm1077 = vcmp.gt.f32.partialorder %v236, 1e-07
  %vm1078 = vcmp.gt.f32.partialorder %v248, 1e-07
  %vm1079 = vcmp.gt.f32.partialorder %v260, 1e-07
  %vm1080 = vcmp.gt.f32.partialorder %v272, 1e-07
  %vm1081 = vcmp.gt.f32.partialorder %v284, 1e-07
  %vm1082 = vcmp.gt.f32.partialorder %v296, 1e-07
  %vm1083 = vcmp.gt.f32.partialorder %v308, 1e-07
  %vm1084 = vcmp.gt.f32.partialorder %v320, 1e-07
  %vm1085 = vcmp.gt.f32.partialorder %v332, 1e-07
  %vm1086 = vcmp.gt.f32.partialorder %v344, 1e-07
  %vm1087 = vcmp.gt.f32.partialorder %v356, 1e-07
  %vm1088 = vcmp.gt.f32.partialorder %v368, 1e-07
  %vm1089 = vcmp.gt.f32.partialorder %v380, 1e-07
  %vm1090 = vcmp.gt.f32.partialorder %v392, 1e-07
  %vm1091 = vcmp.gt.f32.partialorder %v404, 1e-07
  %vm1092 = vcmp.gt.f32.partialorder %v416, 1e-07
  %vm1093 = vcmp.gt.f32.partialorder %v428, 1e-07
  %vm1094 = vcmp.gt.f32.partialorder %v440, 1e-07
  %vm1095 = vcmp.gt.f32.partialorder %v452, 1e-07
  %vm1096 = vcmp.gt.f32.partialorder %v464, 1e-07
  %vm1097 = vcmp.gt.f32.partialorder %v476, 1e-07
  %vm1098 = vcmp.gt.f32.partialorder %v488, 1e-07
  %vm1099 = vcmp.gt.f32.partialorder %v500, 1e-07
  %vm1100 = vcmp.gt.f32.partialorder %v512, 1e-07
  %vm1101 = vcmp.gt.f32.partialorder %v524, 1e-07
  %vm1102 = vcmp.gt.f32.partialorder %v536, 1e-07
  %vm1103 = vcmp.gt.f32.partialorder %v548, 1e-07
  %vm1104 = vcmp.gt.f32.partialorder %v560, 1e-07
  %v1105 = vmax.f32 %v188, 1e-07
  %v1106 = vmax.f32 %v200, 1e-07
  %v1107 = vmax.f32 %v212, 1e-07
  %v1108 = vmax.f32 %v224, 1e-07
  %v1109 = vmax.f32 %v236, 1e-07
  %v1110 = vmax.f32 %v248, 1e-07
  %v1111 = vmax.f32 %v260, 1e-07
  %v1112 = vmax.f32 %v272, 1e-07
  %v1113 = vmax.f32 %v284, 1e-07
  %v1114 = vmax.f32 %v296, 1e-07
  %v1115 = vmax.f32 %v308, 1e-07
  %v1116 = vmax.f32 %v320, 1e-07
  %v1117 = vmax.f32 %v332, 1e-07
  %v1118 = vmax.f32 %v344, 1e-07
  %v1119 = vmax.f32 %v356, 1e-07
  %v1120 = vmax.f32 %v368, 1e-07
  %v1121 = vmax.f32 %v380, 1e-07
  %v1122 = vmax.f32 %v392, 1e-07
  %v1123 = vmax.f32 %v404, 1e-07
  %v1124 = vmax.f32 %v416, 1e-07
  %v1125 = vmax.f32 %v428, 1e-07
  %v1126 = vmax.f32 %v440, 1e-07
  %v1127 = vmax.f32 %v452, 1e-07
  %v1128 = vmax.f32 %v464, 1e-07
  %v1129 = vmax.f32 %v476, 1e-07
  %v1130 = vmax.f32 %v488, 1e-07
  %v1131 = vmax.f32 %v500, 1e-07
  %v1132 = vmax.f32 %v512, 1e-07
  %v1133 = vmax.f32 %v524, 1e-07
  %v1134 = vmax.f32 %v536, 1e-07
  %v1135 = vmax.f32 %v548, 1e-07
  %v1136 = vmax.f32 %v560, 1e-07
  %v1137 = vrcp.pop %v1105
  %v1138 = vmul.f32 %v1105, %v1137
  %v1139 = vsub.f32 1.0, %v1138
  %v1140 = vmul.f32 %v1137, %v1139
  %v1141 = vadd.f32 %v1137, %v1140
  %vm1142 = vweird.f32 %v1105
  %vm1143 = vweird.f32 %v1137
  %vm1144 = vmor %vm1142, %vm1143
  %v1145 = vsel %vm1144, %v1137, %v1141
  %v1146 = vand.u32 2147483647, %v1105
  %vm1147 = vcmp.eq.f32.partialorder %v1146, 8.507059e+37
  %v1148 = vand.u32 %v1105, 2147483648
  %v1149 = vor.u32 1.1754944e-38, %v1148
  %v1150 = vsel %vm1147, %v1149, %v1145
  %v1151 = vmul.f32 %v1010, %v1150
  %v1152 = vrcp.pop %v1106
  %v1153 = vmul.f32 %v1106, %v1152
  %v1154 = vsub.f32 1.0, %v1153
  %v1155 = vmul.f32 %v1152, %v1154
  %v1156 = vadd.f32 %v1152, %v1155
  %vm1157 = vweird.f32 %v1106
  %vm1158 = vweird.f32 %v1152
  %vm1159 = vmor %vm1157, %vm1158
  %v1160 = vsel %vm1159, %v1152, %v1156
  %v1161 = vand.u32 2147483647, %v1106
  %vm1162 = vcmp.eq.f32.partialorder %v1161, 8.507059e+37
  %v1163 = vand.u32 %v1106, 2147483648
  %v1164 = vor.u32 1.1754944e-38, %v1163
  %v1165 = vsel %vm1162, %v1164, %v1160
  %v1166 = vmul.f32 %v1012, %v1165
  %v1167 = vrcp.pop %v1107
  %v1168 = vmul.f32 %v1107, %v1167
  %v1169 = vsub.f32 1.0, %v1168
  %v1170 = vmul.f32 %v1167, %v1169
  %v1171 = vadd.f32 %v1167, %v1170
  %vm1172 = vweird.f32 %v1107
  %vm1173 = vweird.f32 %v1167
  %vm1174 = vmor %vm1172, %vm1173
  %v1175 = vsel %vm1174, %v1167, %v1171
  %v1176 = vand.u32 2147483647, %v1107
  %vm1177 = vcmp.eq.f32.partialorder %v1176, 8.507059e+37
  %v1178 = vand.u32 %v1107, 2147483648
  %v1179 = vor.u32 1.1754944e-38, %v1178
  %v1180 = vsel %vm1177, %v1179, %v1175
  %v1181 = vmul.f32 %v1014, %v1180
  %v1182 = vrcp.pop %v1108
  %v1183 = vmul.f32 %v1108, %v1182
  %v1184 = vsub.f32 1.0, %v1183
  %v1185 = vmul.f32 %v1182, %v1184
  %v1186 = vadd.f32 %v1182, %v1185
  %vm1187 = vweird.f32 %v1108
  %vm1188 = vweird.f32 %v1182
  %vm1189 = vmor %vm1187, %vm1188
  %v1190 = vsel %vm1189, %v1182, %v1186
  %v1191 = vand.u32 2147483647, %v1108
  %vm1192 = vcmp.eq.f32.partialorder %v1191, 8.507059e+37
  %v1193 = vand.u32 %v1108, 2147483648
  %v1194 = vor.u32 1.1754944e-38, %v1193
  %v1195 = vsel %vm1192, %v1194, %v1190
  %v1196 = vmul.f32 %v1016, %v1195
  %v1197 = vrcp.pop %v1109
  %v1198 = vmul.f32 %v1109, %v1197
  %v1199 = vsub.f32 1.0, %v1198
  %v1200 = vmul.f32 %v1197, %v1199
  %v1201 = vadd.f32 %v1197, %v1200
  %vm1202 = vweird.f32 %v1109
  %vm1203 = vweird.f32 %v1197
  %vm1204 = vmor %vm1202, %vm1203
  %v1205 = vsel %vm1204, %v1197, %v1201
  %v1206 = vand.u32 2147483647, %v1109
  %vm1207 = vcmp.eq.f32.partialorder %v1206, 8.507059e+37
  %v1208 = vand.u32 %v1109, 2147483648
  %v1209 = vor.u32 1.1754944e-38, %v1208
  %v1210 = vsel %vm1207, %v1209, %v1205
  %v1211 = vmul.f32 %v1018, %v1210
  %v1212 = vrcp.pop %v1110
  %v1213 = vmul.f32 %v1110, %v1212
  %v1214 = vsub.f32 1.0, %v1213
  %v1215 = vmul.f32 %v1212, %v1214
  %v1216 = vadd.f32 %v1212, %v1215
  %vm1217 = vweird.f32 %v1110
  %vm1218 = vweird.f32 %v1212
  %vm1219 = vmor %vm1217, %vm1218
  %v1220 = vsel %vm1219, %v1212, %v1216
  %v1221 = vand.u32 2147483647, %v1110
  %vm1222 = vcmp.eq.f32.partialorder %v1221, 8.507059e+37
  %v1223 = vand.u32 %v1110, 2147483648
  %v1224 = vor.u32 1.1754944e-38, %v1223
  %v1225 = vsel %vm1222, %v1224, %v1220
  %v1226 = vmul.f32 %v1020, %v1225
  %v1227 = vrcp.pop %v1111
  %v1228 = vmul.f32 %v1111, %v1227
  %v1229 = vsub.f32 1.0, %v1228
  %v1230 = vmul.f32 %v1227, %v1229
  %v1231 = vadd.f32 %v1227, %v1230
  %vm1232 = vweird.f32 %v1111
  %vm1233 = vweird.f32 %v1227
  %vm1234 = vmor %vm1232, %vm1233
  %v1235 = vsel %vm1234, %v1227, %v1231
  %v1236 = vand.u32 2147483647, %v1111
  %vm1237 = vcmp.eq.f32.partialorder %v1236, 8.507059e+37
  %v1238 = vand.u32 %v1111, 2147483648
  %v1239 = vor.u32 1.1754944e-38, %v1238
  %v1240 = vsel %vm1237, %v1239, %v1235
  %v1241 = vmul.f32 %v1022, %v1240
  %v1242 = vrcp.pop %v1112
  %v1243 = vmul.f32 %v1112, %v1242
  %v1244 = vsub.f32 1.0, %v1243
  %v1245 = vmul.f32 %v1242, %v1244
  %v1246 = vadd.f32 %v1242, %v1245
  %vm1247 = vweird.f32 %v1112
  %vm1248 = vweird.f32 %v1242
  %vm1249 = vmor %vm1247, %vm1248
  %v1250 = vsel %vm1249, %v1242, %v1246
  %v1251 = vand.u32 2147483647, %v1112
  %vm1252 = vcmp.eq.f32.partialorder %v1251, 8.507059e+37
  %v1253 = vand.u32 %v1112, 2147483648
  %v1254 = vor.u32 1.1754944e-38, %v1253
  %v1255 = vsel %vm1252, %v1254, %v1250
  %v1256 = vmul.f32 %v1024, %v1255
  %v1257 = vrcp.pop %v1113
  %v1258 = vmul.f32 %v1113, %v1257
  %v1259 = vsub.f32 1.0, %v1258
  %v1260 = vmul.f32 %v1257, %v1259
  %v1261 = vadd.f32 %v1257, %v1260
  %vm1262 = vweird.f32 %v1113
  %vm1263 = vweird.f32 %v1257
  %vm1264 = vmor %vm1262, %vm1263
  %v1265 = vsel %vm1264, %v1257, %v1261
  %v1266 = vand.u32 2147483647, %v1113
  %vm1267 = vcmp.eq.f32.partialorder %v1266, 8.507059e+37
  %v1268 = vand.u32 %v1113, 2147483648
  %v1269 = vor.u32 1.1754944e-38, %v1268
  %v1270 = vsel %vm1267, %v1269, %v1265
  %v1271 = vmul.f32 %v1026, %v1270
  %v1272 = vrcp.pop %v1114
  %v1273 = vmul.f32 %v1114, %v1272
  %v1274 = vsub.f32 1.0, %v1273
  %v1275 = vmul.f32 %v1272, %v1274
  %v1276 = vadd.f32 %v1272, %v1275
  %vm1277 = vweird.f32 %v1114
  %vm1278 = vweird.f32 %v1272
  %vm1279 = vmor %vm1277, %vm1278
  %v1280 = vsel %vm1279, %v1272, %v1276
  %v1281 = vand.u32 2147483647, %v1114
  %vm1282 = vcmp.eq.f32.partialorder %v1281, 8.507059e+37
  %v1283 = vand.u32 %v1114, 2147483648
  %v1284 = vor.u32 1.1754944e-38, %v1283
  %v1285 = vsel %vm1282, %v1284, %v1280
  %v1286 = vmul.f32 %v1028, %v1285
  %v1287 = vrcp.pop %v1115
  %v1288 = vmul.f32 %v1115, %v1287
  %v1289 = vsub.f32 1.0, %v1288
  %v1290 = vmul.f32 %v1287, %v1289
  %v1291 = vadd.f32 %v1287, %v1290
  %vm1292 = vweird.f32 %v1115
  %vm1293 = vweird.f32 %v1287
  %vm1294 = vmor %vm1292, %vm1293
  %v1295 = vsel %vm1294, %v1287, %v1291
  %v1296 = vand.u32 2147483647, %v1115
  %vm1297 = vcmp.eq.f32.partialorder %v1296, 8.507059e+37
  %v1298 = vand.u32 %v1115, 2147483648
  %v1299 = vor.u32 1.1754944e-38, %v1298
  %v1300 = vsel %vm1297, %v1299, %v1295
  %v1301 = vmul.f32 %v1030, %v1300
  %v1302 = vrcp.pop %v1116
  %v1303 = vmul.f32 %v1116, %v1302
  %v1304 = vsub.f32 1.0, %v1303
  %v1305 = vmul.f32 %v1302, %v1304
  %v1306 = vadd.f32 %v1302, %v1305
  %vm1307 = vweird.f32 %v1116
  %vm1308 = vweird.f32 %v1302
  %vm1309 = vmor %vm1307, %vm1308
  %v1310 = vsel %vm1309, %v1302, %v1306
  %v1311 = vand.u32 2147483647, %v1116
  %vm1312 = vcmp.eq.f32.partialorder %v1311, 8.507059e+37
  %v1313 = vand.u32 %v1116, 2147483648
  %v1314 = vor.u32 1.1754944e-38, %v1313
  %v1315 = vsel %vm1312, %v1314, %v1310
  %v1316 = vmul.f32 %v1032, %v1315
  %v1317 = vrcp.pop %v1117
  %v1318 = vmul.f32 %v1117, %v1317
  %v1319 = vsub.f32 1.0, %v1318
  %v1320 = vmul.f32 %v1317, %v1319
  %v1321 = vadd.f32 %v1317, %v1320
  %vm1322 = vweird.f32 %v1117
  %vm1323 = vweird.f32 %v1317
  %vm1324 = vmor %vm1322, %vm1323
  %v1325 = vsel %vm1324, %v1317, %v1321
  %v1326 = vand.u32 2147483647, %v1117
  %vm1327 = vcmp.eq.f32.partialorder %v1326, 8.507059e+37
  %v1328 = vand.u32 %v1117, 2147483648
  %v1329 = vor.u32 1.1754944e-38, %v1328
  %v1330 = vsel %vm1327, %v1329, %v1325
  %v1331 = vmul.f32 %v1034, %v1330
  %v1332 = vrcp.pop %v1118
  %v1333 = vmul.f32 %v1118, %v1332
  %v1334 = vsub.f32 1.0, %v1333
  %v1335 = vmul.f32 %v1332, %v1334
  %v1336 = vadd.f32 %v1332, %v1335
  %vm1337 = vweird.f32 %v1118
  %vm1338 = vweird.f32 %v1332
  %vm1339 = vmor %vm1337, %vm1338
  %v1340 = vsel %vm1339, %v1332, %v1336
  %v1341 = vand.u32 2147483647, %v1118
  %vm1342 = vcmp.eq.f32.partialorder %v1341, 8.507059e+37
  %v1343 = vand.u32 %v1118, 2147483648
  %v1344 = vor.u32 1.1754944e-38, %v1343
  %v1345 = vsel %vm1342, %v1344, %v1340
  %v1346 = vmul.f32 %v1036, %v1345
  %v1347 = vrcp.pop %v1119
  %v1348 = vmul.f32 %v1119, %v1347
  %v1349 = vsub.f32 1.0, %v1348
  %v1350 = vmul.f32 %v1347, %v1349
  %v1351 = vadd.f32 %v1347, %v1350
  %vm1352 = vweird.f32 %v1119
  %vm1353 = vweird.f32 %v1347
  %vm1354 = vmor %vm1352, %vm1353
  %v1355 = vsel %vm1354, %v1347, %v1351
  %v1356 = vand.u32 2147483647, %v1119
  %vm1357 = vcmp.eq.f32.partialorder %v1356, 8.507059e+37
  %v1358 = vand.u32 %v1119, 2147483648
  %v1359 = vor.u32 1.1754944e-38, %v1358
  %v1360 = vsel %vm1357, %v1359, %v1355
  %v1361 = vmul.f32 %v1038, %v1360
  %v1362 = vrcp.pop %v1120
  %v1363 = vmul.f32 %v1120, %v1362
  %v1364 = vsub.f32 1.0, %v1363
  %v1365 = vmul.f32 %v1362, %v1364
  %v1366 = vadd.f32 %v1362, %v1365
  %vm1367 = vweird.f32 %v1120
  %vm1368 = vweird.f32 %v1362
  %vm1369 = vmor %vm1367, %vm1368
  %v1370 = vsel %vm1369, %v1362, %v1366
  %v1371 = vand.u32 2147483647, %v1120
  %vm1372 = vcmp.eq.f32.partialorder %v1371, 8.507059e+37
  %v1373 = vand.u32 %v1120, 2147483648
  %v1374 = vor.u32 1.1754944e-38, %v1373
  %v1375 = vsel %vm1372, %v1374, %v1370
  %v1376 = vmul.f32 %v1040, %v1375
  %v1377 = vrcp.pop %v1121
  %v1378 = vmul.f32 %v1121, %v1377
  %v1379 = vsub.f32 1.0, %v1378
  %v1380 = vmul.f32 %v1377, %v1379
  %v1381 = vadd.f32 %v1377, %v1380
  %vm1382 = vweird.f32 %v1121
  %vm1383 = vweird.f32 %v1377
  %vm1384 = vmor %vm1382, %vm1383
  %v1385 = vsel %vm1384, %v1377, %v1381
  %v1386 = vand.u32 2147483647, %v1121
  %vm1387 = vcmp.eq.f32.partialorder %v1386, 8.507059e+37
  %v1388 = vand.u32 %v1121, 2147483648
  %v1389 = vor.u32 1.1754944e-38, %v1388
  %v1390 = vsel %vm1387, %v1389, %v1385
  %v1391 = vmul.f32 %v1042, %v1390
  %v1392 = vrcp.pop %v1122
  %v1393 = vmul.f32 %v1122, %v1392
  %v1394 = vsub.f32 1.0, %v1393
  %v1395 = vmul.f32 %v1392, %v1394
  %v1396 = vadd.f32 %v1392, %v1395
  %vm1397 = vweird.f32 %v1122
  %vm1398 = vweird.f32 %v1392
  %vm1399 = vmor %vm1397, %vm1398
  %v1400 = vsel %vm1399, %v1392, %v1396
  %v1401 = vand.u32 2147483647, %v1122
  %vm1402 = vcmp.eq.f32.partialorder %v1401, 8.507059e+37
  %v1403 = vand.u32 %v1122, 2147483648
  %v1404 = vor.u32 1.1754944e-38, %v1403
  %v1405 = vsel %vm1402, %v1404, %v1400
  %v1406 = vmul.f32 %v1044, %v1405
  %v1407 = vrcp.pop %v1123
  %v1408 = vmul.f32 %v1123, %v1407
  %v1409 = vsub.f32 1.0, %v1408
  %v1410 = vmul.f32 %v1407, %v1409
  %v1411 = vadd.f32 %v1407, %v1410
  %vm1412 = vweird.f32 %v1123
  %vm1413 = vweird.f32 %v1407
  %vm1414 = vmor %vm1412, %vm1413
  %v1415 = vsel %vm1414, %v1407, %v1411
  %v1416 = vand.u32 2147483647, %v1123
  %vm1417 = vcmp.eq.f32.partialorder %v1416, 8.507059e+37
  %v1418 = vand.u32 %v1123, 2147483648
  %v1419 = vor.u32 1.1754944e-38, %v1418
  %v1420 = vsel %vm1417, %v1419, %v1415
  %v1421 = vmul.f32 %v1046, %v1420
  %v1422 = vrcp.pop %v1124
  %v1423 = vmul.f32 %v1124, %v1422
  %v1424 = vsub.f32 1.0, %v1423
  %v1425 = vmul.f32 %v1422, %v1424
  %v1426 = vadd.f32 %v1422, %v1425
  %vm1427 = vweird.f32 %v1124
  %vm1428 = vweird.f32 %v1422
  %vm1429 = vmor %vm1427, %vm1428
  %v1430 = vsel %vm1429, %v1422, %v1426
  %v1431 = vand.u32 2147483647, %v1124
  %vm1432 = vcmp.eq.f32.partialorder %v1431, 8.507059e+37
  %v1433 = vand.u32 %v1124, 2147483648
  %v1434 = vor.u32 1.1754944e-38, %v1433
  %v1435 = vsel %vm1432, %v1434, %v1430
  %v1436 = vmul.f32 %v1048, %v1435
  %v1437 = vrcp.pop %v1125
  %v1438 = vmul.f32 %v1125, %v1437
  %v1439 = vsub.f32 1.0, %v1438
  %v1440 = vmul.f32 %v1437, %v1439
  %v1441 = vadd.f32 %v1437, %v1440
  %vm1442 = vweird.f32 %v1125
  %vm1443 = vweird.f32 %v1437
  %vm1444 = vmor %vm1442, %vm1443
  %v1445 = vsel %vm1444, %v1437, %v1441
  %v1446 = vand.u32 2147483647, %v1125
  %vm1447 = vcmp.eq.f32.partialorder %v1446, 8.507059e+37
  %v1448 = vand.u32 %v1125, 2147483648
  %v1449 = vor.u32 1.1754944e-38, %v1448
  %v1450 = vsel %vm1447, %v1449, %v1445
  %v1451 = vmul.f32 %v1050, %v1450
  %v1452 = vrcp.pop %v1126
  %v1453 = vmul.f32 %v1126, %v1452
  %v1454 = vsub.f32 1.0, %v1453
  %v1455 = vmul.f32 %v1452, %v1454
  %v1456 = vadd.f32 %v1452, %v1455
  %vm1457 = vweird.f32 %v1126
  %vm1458 = vweird.f32 %v1452
  %vm1459 = vmor %vm1457, %vm1458
  %v1460 = vsel %vm1459, %v1452, %v1456
  %v1461 = vand.u32 2147483647, %v1126
  %vm1462 = vcmp.eq.f32.partialorder %v1461, 8.507059e+37
  %v1463 = vand.u32 %v1126, 2147483648
  %v1464 = vor.u32 1.1754944e-38, %v1463
  %v1465 = vsel %vm1462, %v1464, %v1460
  %v1466 = vmul.f32 %v1052, %v1465
  %v1467 = vrcp.pop %v1127
  %v1468 = vmul.f32 %v1127, %v1467
  %v1469 = vsub.f32 1.0, %v1468
  %v1470 = vmul.f32 %v1467, %v1469
  %v1471 = vadd.f32 %v1467, %v1470
  %vm1472 = vweird.f32 %v1127
  %vm1473 = vweird.f32 %v1467
  %vm1474 = vmor %vm1472, %vm1473
  %v1475 = vsel %vm1474, %v1467, %v1471
  %v1476 = vand.u32 2147483647, %v1127
  %vm1477 = vcmp.eq.f32.partialorder %v1476, 8.507059e+37
  %v1478 = vand.u32 %v1127, 2147483648
  %v1479 = vor.u32 1.1754944e-38, %v1478
  %v1480 = vsel %vm1477, %v1479, %v1475
  %v1481 = vmul.f32 %v1054, %v1480
  %v1482 = vrcp.pop %v1128
  %v1483 = vmul.f32 %v1128, %v1482
  %v1484 = vsub.f32 1.0, %v1483
  %v1485 = vmul.f32 %v1482, %v1484
  %v1486 = vadd.f32 %v1482, %v1485
  %vm1487 = vweird.f32 %v1128
  %vm1488 = vweird.f32 %v1482
  %vm1489 = vmor %vm1487, %vm1488
  %v1490 = vsel %vm1489, %v1482, %v1486
  %v1491 = vand.u32 2147483647, %v1128
  %vm1492 = vcmp.eq.f32.partialorder %v1491, 8.507059e+37
  %v1493 = vand.u32 %v1128, 2147483648
  %v1494 = vor.u32 1.1754944e-38, %v1493
  %v1495 = vsel %vm1492, %v1494, %v1490
  %v1496 = vmul.f32 %v1056, %v1495
  %v1497 = vrcp.pop %v1129
  %v1498 = vmul.f32 %v1129, %v1497
  %v1499 = vsub.f32 1.0, %v1498
  %v1500 = vmul.f32 %v1497, %v1499
  %v1501 = vadd.f32 %v1497, %v1500
  %vm1502 = vweird.f32 %v1129
  %vm1503 = vweird.f32 %v1497
  %vm1504 = vmor %vm1502, %vm1503
  %v1505 = vsel %vm1504, %v1497, %v1501
  %v1506 = vand.u32 2147483647, %v1129
  %vm1507 = vcmp.eq.f32.partialorder %v1506, 8.507059e+37
  %v1508 = vand.u32 %v1129, 2147483648
  %v1509 = vor.u32 1.1754944e-38, %v1508
  %v1510 = vsel %vm1507, %v1509, %v1505
  %v1511 = vmul.f32 %v1058, %v1510
  %v1512 = vrcp.pop %v1130
  %v1513 = vmul.f32 %v1130, %v1512
  %v1514 = vsub.f32 1.0, %v1513
  %v1515 = vmul.f32 %v1512, %v1514
  %v1516 = vadd.f32 %v1512, %v1515
  %vm1517 = vweird.f32 %v1130
  %vm1518 = vweird.f32 %v1512
  %vm1519 = vmor %vm1517, %vm1518
  %v1520 = vsel %vm1519, %v1512, %v1516
  %v1521 = vand.u32 2147483647, %v1130
  %vm1522 = vcmp.eq.f32.partialorder %v1521, 8.507059e+37
  %v1523 = vand.u32 %v1130, 2147483648
  %v1524 = vor.u32 1.1754944e-38, %v1523
  %v1525 = vsel %vm1522, %v1524, %v1520
  %v1526 = vmul.f32 %v1060, %v1525
  %v1527 = vrcp.pop %v1131
  %v1528 = vmul.f32 %v1131, %v1527
  %v1529 = vsub.f32 1.0, %v1528
  %v1530 = vmul.f32 %v1527, %v1529
  %v1531 = vadd.f32 %v1527, %v1530
  %vm1532 = vweird.f32 %v1131
  %vm1533 = vweird.f32 %v1527
  %vm1534 = vmor %vm1532, %vm1533
  %v1535 = vsel %vm1534, %v1527, %v1531
  %v1536 = vand.u32 2147483647, %v1131
  %vm1537 = vcmp.eq.f32.partialorder %v1536, 8.507059e+37
  %v1538 = vand.u32 %v1131, 2147483648
  %v1539 = vor.u32 1.1754944e-38, %v1538
  %v1540 = vsel %vm1537, %v1539, %v1535
  %v1541 = vmul.f32 %v1062, %v1540
  %v1542 = vrcp.pop %v1132
  %v1543 = vmul.f32 %v1132, %v1542
  %v1544 = vsub.f32 1.0, %v1543
  %v1545 = vmul.f32 %v1542, %v1544
  %v1546 = vadd.f32 %v1542, %v1545
  %vm1547 = vweird.f32 %v1132
  %vm1548 = vweird.f32 %v1542
  %vm1549 = vmor %vm1547, %vm1548
  %v1550 = vsel %vm1549, %v1542, %v1546
  %v1551 = vand.u32 2147483647, %v1132
  %vm1552 = vcmp.eq.f32.partialorder %v1551, 8.507059e+37
  %v1553 = vand.u32 %v1132, 2147483648
  %v1554 = vor.u32 1.1754944e-38, %v1553
  %v1555 = vsel %vm1552, %v1554, %v1550
  %v1556 = vmul.f32 %v1064, %v1555
  %v1557 = vrcp.pop %v1133
  %v1558 = vmul.f32 %v1133, %v1557
  %v1559 = vsub.f32 1.0, %v1558
  %v1560 = vmul.f32 %v1557, %v1559
  %v1561 = vadd.f32 %v1557, %v1560
  %vm1562 = vweird.f32 %v1133
  %vm1563 = vweird.f32 %v1557
  %vm1564 = vmor %vm1562, %vm1563
  %v1565 = vsel %vm1564, %v1557, %v1561
  %v1566 = vand.u32 2147483647, %v1133
  %vm1567 = vcmp.eq.f32.partialorder %v1566, 8.507059e+37
  %v1568 = vand.u32 %v1133, 2147483648
  %v1569 = vor.u32 1.1754944e-38, %v1568
  %v1570 = vsel %vm1567, %v1569, %v1565
  %v1571 = vmul.f32 %v1066, %v1570
  %v1572 = vrcp.pop %v1134
  %v1573 = vmul.f32 %v1134, %v1572
  %v1574 = vsub.f32 1.0, %v1573
  %v1575 = vmul.f32 %v1572, %v1574
  %v1576 = vadd.f32 %v1572, %v1575
  %vm1577 = vweird.f32 %v1134
  %vm1578 = vweird.f32 %v1572
  %vm1579 = vmor %vm1577, %vm1578
  %v1580 = vsel %vm1579, %v1572, %v1576
  %v1581 = vand.u32 2147483647, %v1134
  %vm1582 = vcmp.eq.f32.partialorder %v1581, 8.507059e+37
  %v1583 = vand.u32 %v1134, 2147483648
  %v1584 = vor.u32 1.1754944e-38, %v1583
  %v1585 = vsel %vm1582, %v1584, %v1580
  %v1586 = vmul.f32 %v1068, %v1585
  %v1587 = vrcp.pop %v1135
  %v1588 = vmul.f32 %v1135, %v1587
  %v1589 = vsub.f32 1.0, %v1588
  %v1590 = vmul.f32 %v1587, %v1589
  %v1591 = vadd.f32 %v1587, %v1590
  %vm1592 = vweird.f32 %v1135
  %vm1593 = vweird.f32 %v1587
  %vm1594 = vmor %vm1592, %vm1593
  %v1595 = vsel %vm1594, %v1587, %v1591
  %v1596 = vand.u32 2147483647, %v1135
  %vm1597 = vcmp.eq.f32.partialorder %v1596, 8.507059e+37
  %v1598 = vand.u32 %v1135, 2147483648
  %v1599 = vor.u32 1.1754944e-38, %v1598
  %v1600 = vsel %vm1597, %v1599, %v1595
  %v1601 = vmul.f32 %v1070, %v1600
  %v1602 = vrcp.pop %v1136
  %v1603 = vmul.f32 %v1136, %v1602
  %v1604 = vsub.f32 1.0, %v1603
  %v1605 = vmul.f32 %v1602, %v1604
  %v1606 = vadd.f32 %v1602, %v1605
  %vm1607 = vweird.f32 %v1136
  %vm1608 = vweird.f32 %v1602
  %vm1609 = vmor %vm1607, %vm1608
  %v1610 = vsel %vm1609, %v1602, %v1606
  %v1611 = vand.u32 2147483647, %v1136
  %vm1612 = vcmp.eq.f32.partialorder %v1611, 8.507059e+37
  %v1613 = vand.u32 %v1136, 2147483648
  %v1614 = vor.u32 1.1754944e-38, %v1613
  %v1615 = vsel %vm1612, %v1614, %v1610
  %v1616 = vmul.f32 %v1072, %v1615
  %v1617 = vsel %vm1073, %v1151, 1.0
  %v1618 = vsel %vm1074, %v1166, 1.0
  %v1619 = vsel %vm1075, %v1181, 1.0
  %v1620 = vsel %vm1076, %v1196, 1.0
  %v1621 = vsel %vm1077, %v1211, 1.0
  %v1622 = vsel %vm1078, %v1226, 1.0
  %v1623 = vsel %vm1079, %v1241, 1.0
  %v1624 = vsel %vm1080, %v1256, 1.0
  %v1625 = vsel %vm1081, %v1271, 1.0
  %v1626 = vsel %vm1082, %v1286, 1.0
  %v1627 = vsel %vm1083, %v1301, 1.0
  %v1628 = vsel %vm1084, %v1316, 1.0
  %v1629 = vsel %vm1085, %v1331, 1.0
  %v1630 = vsel %vm1086, %v1346, 1.0
  %v1631 = vsel %vm1087, %v1361, 1.0
  %v1632 = vsel %vm1088, %v1376, 1.0
  %v1633 = vsel %vm1089, %v1391, 1.0
  %v1634 = vsel %vm1090, %v1406, 1.0
  %v1635 = vsel %vm1091, %v1421, 1.0
  %v1636 = vsel %vm1092, %v1436, 1.0
  %v1637 = vsel %vm1093, %v1451, 1.0
  %v1638 = vsel %vm1094, %v1466, 1.0
  %v1639 = vsel %vm1095, %v1481, 1.0
  %v1640 = vsel %vm1096, %v1496, 1.0
  %v1641 = vsel %vm1097, %v1511, 1.0
  %v1642 = vsel %vm1098, %v1526, 1.0
  %v1643 = vsel %vm1099, %v1541, 1.0
  %v1644 = vsel %vm1100, %v1556, 1.0
  %v1645 = vsel %vm1101, %v1571, 1.0
  %v1646 = vsel %vm1102, %v1586, 1.0
  %v1647 = vsel %vm1103, %v1601, 1.0
  %v1648 = vsel %vm1104, %v1616, 1.0
  %v1649 = vmul.f32 %v1617, %v16
  %v1650 = vmul.f32 %v1618, %v17
  %v1651 = vmul.f32 %v1619, %v18
  %v1652 = vmul.f32 %v1620, %v19
  %v1653 = vmul.f32 %v1621, %v20
  %v1654 = vmul.f32 %v1622, %v21
  %v1655 = vmul.f32 %v1623, %v22
  %v1656 = vmul.f32 %v1624, %v23
  %v1657 = vmul.f32 %v1625, %v24
  %v1658 = vmul.f32 %v1626, %v25
  %v1659 = vmul.f32 %v1627, %v26
  %v1660 = vmul.f32 %v1628, %v27
  %v1661 = vmul.f32 %v1629, %v28
  %v1662 = vmul.f32 %v1630, %v29
  %v1663 = vmul.f32 %v1631, %v30
  %v1664 = vmul.f32 %v1632, %v31
  %v1665 = vmul.f32 %v1633, %v32
  %v1666 = vmul.f32 %v1634, %v33
  %v1667 = vmul.f32 %v1635, %v34
  %v1668 = vmul.f32 %v1636, %v35
  %v1669 = vmul.f32 %v1637, %v36
  %v1670 = vmul.f32 %v1638, %v37
  %v1671 = vmul.f32 %v1639, %v38
  %v1672 = vmul.f32 %v1640, %v39
  %v1673 = vmul.f32 %v1641, %v40
  %v1674 = vmul.f32 %v1642, %v41
  %v1675 = vmul.f32 %v1643, %v42
  %v1676 = vmul.f32 %v1644, %v43
  %v1677 = vmul.f32 %v1645, %v44
  %v1678 = vmul.f32 %v1646, %v45
  %v1679 = vmul.f32 %v1647, %v46
  %v1680 = vmul.f32 %v1648, %v47
  %v1681 = vld [vmem:[%s1] sm:$0xff]
  %v1682 = vld [vmem:[%s1 + $0x8] sm:$0xff]
  %v1683 = vld [vmem:[%s1 + $0x10] sm:$0xff]
  %v1684 = vld [vmem:[%s1 + $0x18] sm:$0xff]
  %v1685 = vld [vmem:[%s2] sm:$0x3]
  %v1687 = vperm.slane %v1685, 0
  %v1688 = vperm.slane %v1685, 1
  %v1692 = vsel %vm80, %v1649, 0
  %v1695 = vsel %vm80, %v1650, 0
  %v1698 = vsel %vm80, %v1651, 0
  %v1701 = vsel %vm80, %v1652, 0
  %v1704 = vsel %vm80, %v1653, 0
  %v1707 = vsel %vm80, %v1654, 0
  %v1710 = vsel %vm80, %v1655, 0
  %v1713 = vsel %vm80, %v1656, 0
  %v1716 = vsel %vm80, %v1657, 0
  %v1719 = vsel %vm80, %v1658, 0
  %v1722 = vsel %vm80, %v1659, 0
  %v1725 = vsel %vm80, %v1660, 0
  %v1728 = vsel %vm80, %v1661, 0
  %v1731 = vsel %vm80, %v1662, 0
  %v1734 = vsel %vm80, %v1663, 0
  %v1737 = vsel %vm80, %v1664, 0
  %v1740 = vsel %vm80, %v1665, 0
  %v1743 = vsel %vm80, %v1666, 0
  %v1746 = vsel %vm80, %v1667, 0
  %v1749 = vsel %vm80, %v1668, 0
  %v1752 = vsel %vm80, %v1669, 0
  %v1755 = vsel %vm80, %v1670, 0
  %v1758 = vsel %vm80, %v1671, 0
  %v1761 = vsel %vm80, %v1672, 0
  %v1764 = vsel %vm80, %v1673, 0
  %v1767 = vsel %vm80, %v1674, 0
  %v1770 = vsel %vm80, %v1675, 0
  %v1773 = vsel %vm80, %v1676, 0
  %v1776 = vsel %vm80, %v1677, 0
  %v1779 = vsel %vm80, %v1678, 0
  %v1782 = vsel %vm80, %v1679, 0
  %v1785 = vsel %vm80, %v1680, 0
  %1787 = vmatpush.msra.mxu0 0.0
  %1788 = vmatpush.msra.mxu0 0.0
  %1789 = vmatpush.msra.mxu0 0.0
  %1790 = vmatpush.msra.mxu0 0.0
  %1791 = vmatpush.msra.mxu0 0.0
  %1792 = vmatpush.msra.mxu0 0.0
  %1793 = vmatpush.msra.mxu0 0.0
  %1794 = vmatpush.msra.mxu0 0.0
  %1795 = vmatpush.msra.mxu0 0.0
  %1796 = vmatpush.msra.mxu0 0.0
  %1797 = vmatpush.msra.mxu0 0.0
  %1798 = vmatpush.msra.mxu0 0.0
  %1799 = vmatpush.msra.mxu0 0.0
  %1800 = vmatpush.msra.mxu0 0.0
  %1801 = vmatpush.msra.mxu0 %v1683
  %1802 = vmatpush.msra.mxu0 %v1681
  %1803 = vmatmul.f32.gmra.mxu0 %v1692
  %v1804 = vpop.f32.mrf.mxu0
  %v1805 = vadd.f32 %v1687, %v1804
  %1806 = vmatmul.f32.gmra.mxu0 %v1695
  %v1807 = vpop.f32.mrf.mxu0
  %v1808 = vadd.f32 %v1687, %v1807
  %1809 = vmatmul.f32.gmra.mxu0 %v1698
  %v1810 = vpop.f32.mrf.mxu0
  %v1811 = vadd.f32 %v1687, %v1810
  %1812 = vmatmul.f32.gmra.mxu0 %v1701
  %v1813 = vpop.f32.mrf.mxu0
  %v1814 = vadd.f32 %v1687, %v1813
  %1815 = vmatmul.f32.gmra.mxu0 %v1704
  %v1816 = vpop.f32.mrf.mxu0
  %v1817 = vadd.f32 %v1687, %v1816
  %1818 = vmatmul.f32.gmra.mxu0 %v1707
  %v1819 = vpop.f32.mrf.mxu0
  %v1820 = vadd.f32 %v1687, %v1819
  %1821 = vmatmul.f32.gmra.mxu0 %v1710
  %v1822 = vpop.f32.mrf.mxu0
  %v1823 = vadd.f32 %v1687, %v1822
  %1824 = vmatmul.f32.gmra.mxu0 %v1713
  %v1825 = vpop.f32.mrf.mxu0
  %v1826 = vadd.f32 %v1687, %v1825
  %1827 = vmatmul.f32.gmra.mxu0 %v1716
  %v1828 = vpop.f32.mrf.mxu0
  %v1829 = vadd.f32 %v1687, %v1828
  %1830 = vmatmul.f32.gmra.mxu0 %v1719
  %v1831 = vpop.f32.mrf.mxu0
  %v1832 = vadd.f32 %v1687, %v1831
  %1833 = vmatmul.f32.gmra.mxu0 %v1722
  %v1834 = vpop.f32.mrf.mxu0
  %v1835 = vadd.f32 %v1687, %v1834
  %1836 = vmatmul.f32.gmra.mxu0 %v1725
  %v1837 = vpop.f32.mrf.mxu0
  %v1838 = vadd.f32 %v1687, %v1837
  %1839 = vmatmul.f32.gmra.mxu0 %v1728
  %v1840 = vpop.f32.mrf.mxu0
  %v1841 = vadd.f32 %v1687, %v1840
  %1842 = vmatmul.f32.gmra.mxu0 %v1731
  %v1843 = vpop.f32.mrf.mxu0
  %v1844 = vadd.f32 %v1687, %v1843
  %1845 = vmatmul.f32.gmra.mxu0 %v1734
  %v1846 = vpop.f32.mrf.mxu0
  %v1847 = vadd.f32 %v1687, %v1846
  %1848 = vmatmul.f32.gmra.mxu0 %v1737
  %v1849 = vpop.f32.mrf.mxu0
  %v1850 = vadd.f32 %v1687, %v1849
  %1851 = vmatmul.f32.gmra.mxu0 %v1740
  %v1852 = vpop.f32.mrf.mxu0
  %v1853 = vadd.f32 %v1687, %v1852
  %1854 = vmatmul.f32.gmra.mxu0 %v1743
  %v1855 = vpop.f32.mrf.mxu0
  %v1856 = vadd.f32 %v1687, %v1855
  %1857 = vmatmul.f32.gmra.mxu0 %v1746
  %v1858 = vpop.f32.mrf.mxu0
  %v1859 = vadd.f32 %v1687, %v1858
  %1860 = vmatmul.f32.gmra.mxu0 %v1749
  %v1861 = vpop.f32.mrf.mxu0
  %v1862 = vadd.f32 %v1687, %v1861
  %1863 = vmatmul.f32.gmra.mxu0 %v1752
  %v1864 = vpop.f32.mrf.mxu0
  %v1865 = vadd.f32 %v1687, %v1864
  %1866 = vmatmul.f32.gmra.mxu0 %v1755
  %v1867 = vpop.f32.mrf.mxu0
  %v1868 = vadd.f32 %v1687, %v1867
  %1869 = vmatmul.f32.gmra.mxu0 %v1758
  %v1870 = vpop.f32.mrf.mxu0
  %v1871 = vadd.f32 %v1687, %v1870
  %1872 = vmatmul.f32.gmra.mxu0 %v1761
  %v1873 = vpop.f32.mrf.mxu0
  %v1874 = vadd.f32 %v1687, %v1873
  %1875 = vmatmul.f32.gmra.mxu0 %v1764
  %v1876 = vpop.f32.mrf.mxu0
  %v1877 = vadd.f32 %v1687, %v1876
  %1878 = vmatmul.f32.gmra.mxu0 %v1767
  %v1879 = vpop.f32.mrf.mxu0
  %v1880 = vadd.f32 %v1687, %v1879
  %1881 = vmatmul.f32.gmra.mxu0 %v1770
  %v1882 = vpop.f32.mrf.mxu0
  %v1883 = vadd.f32 %v1687, %v1882
  %1884 = vmatmul.f32.gmra.mxu0 %v1773
  %v1885 = vpop.f32.mrf.mxu0
  %v1886 = vadd.f32 %v1687, %v1885
  %1887 = vmatmul.f32.gmra.mxu0 %v1776
  %v1888 = vpop.f32.mrf.mxu0
  %v1889 = vadd.f32 %v1687, %v1888
  %1890 = vmatmul.f32.gmra.mxu0 %v1779
  %v1891 = vpop.f32.mrf.mxu0
  %v1892 = vadd.f32 %v1687, %v1891
  %1893 = vmatmul.f32.gmra.mxu0 %v1782
  %v1894 = vpop.f32.mrf.mxu0
  %v1895 = vadd.f32 %v1687, %v1894
  %1896 = vmatmul.f32.gmra.mxu0 %v1785
  %v1897 = vpop.f32.mrf.mxu0
  %v1898 = vadd.f32 %v1687, %v1897
  %1899 = vdwg.mxu0
  %1900 = vmatpush.msra.mxu0 0.0
  %1901 = vmatpush.msra.mxu0 0.0
  %1902 = vmatpush.msra.mxu0 0.0
  %1903 = vmatpush.msra.mxu0 0.0
  %1904 = vmatpush.msra.mxu0 0.0
  %1905 = vmatpush.msra.mxu0 0.0
  %1906 = vmatpush.msra.mxu0 0.0
  %1907 = vmatpush.msra.mxu0 0.0
  %1908 = vmatpush.msra.mxu0 0.0
  %1909 = vmatpush.msra.mxu0 0.0
  %1910 = vmatpush.msra.mxu0 0.0
  %1911 = vmatpush.msra.mxu0 0.0
  %1912 = vmatpush.msra.mxu0 0.0
  %1913 = vmatpush.msra.mxu0 0.0
  %1914 = vmatpush.msra.mxu0 %v1684
  %1915 = vmatpush.msra.mxu0 %v1682
  %1916 = vmatmul.f32.gmra.mxu0 %v1692
  %v1917 = vpop.f32.mrf.mxu0
  %v1918 = vadd.f32 %v1688, %v1917
  %1919 = vmatmul.f32.gmra.mxu0 %v1695
  %v1920 = vpop.f32.mrf.mxu0
  %v1921 = vadd.f32 %v1688, %v1920
  %1922 = vmatmul.f32.gmra.mxu0 %v1698
  %v1923 = vpop.f32.mrf.mxu0
  %v1924 = vadd.f32 %v1688, %v1923
  %1925 = vmatmul.f32.gmra.mxu0 %v1701
  %v1926 = vpop.f32.mrf.mxu0
  %v1927 = vadd.f32 %v1688, %v1926
  %1928 = vmatmul.f32.gmra.mxu0 %v1704
  %v1929 = vpop.f32.mrf.mxu0
  %v1930 = vadd.f32 %v1688, %v1929
  %1931 = vmatmul.f32.gmra.mxu0 %v1707
  %v1932 = vpop.f32.mrf.mxu0
  %v1933 = vadd.f32 %v1688, %v1932
  %1934 = vmatmul.f32.gmra.mxu0 %v1710
  %v1935 = vpop.f32.mrf.mxu0
  %v1936 = vadd.f32 %v1688, %v1935
  %1937 = vmatmul.f32.gmra.mxu0 %v1713
  %v1938 = vpop.f32.mrf.mxu0
  %v1939 = vadd.f32 %v1688, %v1938
  %1940 = vmatmul.f32.gmra.mxu0 %v1716
  %v1941 = vpop.f32.mrf.mxu0
  %v1942 = vadd.f32 %v1688, %v1941
  %1943 = vmatmul.f32.gmra.mxu0 %v1719
  %v1944 = vpop.f32.mrf.mxu0
  %v1945 = vadd.f32 %v1688, %v1944
  %1946 = vmatmul.f32.gmra.mxu0 %v1722
  %v1947 = vpop.f32.mrf.mxu0
  %v1948 = vadd.f32 %v1688, %v1947
  %1949 = vmatmul.f32.gmra.mxu0 %v1725
  %v1950 = vpop.f32.mrf.mxu0
  %v1951 = vadd.f32 %v1688, %v1950
  %1952 = vmatmul.f32.gmra.mxu0 %v1728
  %v1953 = vpop.f32.mrf.mxu0
  %v1954 = vadd.f32 %v1688, %v1953
  %1955 = vmatmul.f32.gmra.mxu0 %v1731
  %v1956 = vpop.f32.mrf.mxu0
  %v1957 = vadd.f32 %v1688, %v1956
  %1958 = vmatmul.f32.gmra.mxu0 %v1734
  %v1959 = vpop.f32.mrf.mxu0
  %v1960 = vadd.f32 %v1688, %v1959
  %1961 = vmatmul.f32.gmra.mxu0 %v1737
  %v1962 = vpop.f32.mrf.mxu0
  %v1963 = vadd.f32 %v1688, %v1962
  %1964 = vmatmul.f32.gmra.mxu0 %v1740
  %v1965 = vpop.f32.mrf.mxu0
  %v1966 = vadd.f32 %v1688, %v1965
  %1967 = vmatmul.f32.gmra.mxu0 %v1743
  %v1968 = vpop.f32.mrf.mxu0
  %v1969 = vadd.f32 %v1688, %v1968
  %1970 = vmatmul.f32.gmra.mxu0 %v1746
  %v1971 = vpop.f32.mrf.mxu0
  %v1972 = vadd.f32 %v1688, %v1971
  %1973 = vmatmul.f32.gmra.mxu0 %v1749
  %v1974 = vpop.f32.mrf.mxu0
  %v1975 = vadd.f32 %v1688, %v1974
  %1976 = vmatmul.f32.gmra.mxu0 %v1752
  %v1977 = vpop.f32.mrf.mxu0
  %v1978 = vadd.f32 %v1688, %v1977
  %1979 = vmatmul.f32.gmra.mxu0 %v1755
  %v1980 = vpop.f32.mrf.mxu0
  %v1981 = vadd.f32 %v1688, %v1980
  %1982 = vmatmul.f32.gmra.mxu0 %v1758
  %v1983 = vpop.f32.mrf.mxu0
  %v1984 = vadd.f32 %v1688, %v1983
  %1985 = vmatmul.f32.gmra.mxu0 %v1761
  %v1986 = vpop.f32.mrf.mxu0
  %v1987 = vadd.f32 %v1688, %v1986
  %1988 = vmatmul.f32.gmra.mxu0 %v1764
  %v1989 = vpop.f32.mrf.mxu0
  %v1990 = vadd.f32 %v1688, %v1989
  %1991 = vmatmul.f32.gmra.mxu0 %v1767
  %v1992 = vpop.f32.mrf.mxu0
  %v1993 = vadd.f32 %v1688, %v1992
  %1994 = vmatmul.f32.gmra.mxu0 %v1770
  %v1995 = vpop.f32.mrf.mxu0
  %v1996 = vadd.f32 %v1688, %v1995
  %1997 = vmatmul.f32.gmra.mxu0 %v1773
  %v1998 = vpop.f32.mrf.mxu0
  %v1999 = vadd.f32 %v1688, %v1998
  %2000 = vmatmul.f32.gmra.mxu0 %v1776
  %v2001 = vpop.f32.mrf.mxu0
  %v2002 = vadd.f32 %v1688, %v2001
  %2003 = vmatmul.f32.gmra.mxu0 %v1779
  %v2004 = vpop.f32.mrf.mxu0
  %v2005 = vadd.f32 %v1688, %v2004
  %2006 = vmatmul.f32.gmra.mxu0 %v1782
  %v2007 = vpop.f32.mrf.mxu0
  %v2008 = vadd.f32 %v1688, %v2007
  %2009 = vmatmul.f32.gmra.mxu0 %v1785
  %v2010 = vpop.f32.mrf.mxu0
  %v2011 = vadd.f32 %v1688, %v2010
  %2012 = vdwg.mxu0
  %v2013 = vpack.c.bf16 %v1805, %v1805
  %v2014 = vpack.c.bf16 %v1808, %v1808
  %v2015 = vpack.c.bf16 %v1811, %v1811
  %v2016 = vpack.c.bf16 %v1814, %v1814
  %v2017 = vpack.c.bf16 %v1817, %v1817
  %v2018 = vpack.c.bf16 %v1820, %v1820
  %v2019 = vpack.c.bf16 %v1823, %v1823
  %v2020 = vpack.c.bf16 %v1826, %v1826
  %v2021 = vpack.c.bf16 %v1829, %v1829
  %v2022 = vpack.c.bf16 %v1832, %v1832
  %v2023 = vpack.c.bf16 %v1835, %v1835
  %v2024 = vpack.c.bf16 %v1838, %v1838
  %v2025 = vpack.c.bf16 %v1841, %v1841
  %v2026 = vpack.c.bf16 %v1844, %v1844
  %v2027 = vpack.c.bf16 %v1847, %v1847
  %v2028 = vpack.c.bf16 %v1850, %v1850
  %v2029 = vpack.c.bf16 %v1853, %v1853
  %v2030 = vpack.c.bf16 %v1856, %v1856
  %v2031 = vpack.c.bf16 %v1859, %v1859
  %v2032 = vpack.c.bf16 %v1862, %v1862
  %v2033 = vpack.c.bf16 %v1865, %v1865
  %v2034 = vpack.c.bf16 %v1868, %v1868
  %v2035 = vpack.c.bf16 %v1871, %v1871
  %v2036 = vpack.c.bf16 %v1874, %v1874
  %v2037 = vpack.c.bf16 %v1877, %v1877
  %v2038 = vpack.c.bf16 %v1880, %v1880
  %v2039 = vpack.c.bf16 %v1883, %v1883
  %v2040 = vpack.c.bf16 %v1886, %v1886
  %v2041 = vpack.c.bf16 %v1889, %v1889
  %v2042 = vpack.c.bf16 %v1892, %v1892
  %v2043 = vpack.c.bf16 %v1895, %v1895
  %v2044 = vpack.c.bf16 %v1898, %v1898
  %2045 = vst [vmem:[%s3] sm:$0xf] %v2013
  %2046 = vst [vmem:[%s3 + $0x4] sm:$0xf] %v2014
  %2047 = vst [vmem:[%s3 + $0x8] sm:$0xf] %v2015
  %2048 = vst [vmem:[%s3 + $0xc] sm:$0xf] %v2016
  %2049 = vst [vmem:[%s3 + $0x10] sm:$0xf] %v2017
  %2050 = vst [vmem:[%s3 + $0x14] sm:$0xf] %v2018
  %2051 = vst [vmem:[%s3 + $0x18] sm:$0xf] %v2019
  %2052 = vst [vmem:[%s3 + $0x1c] sm:$0xf] %v2020
  %2053 = vst [vmem:[%s3 + $0x20] sm:$0xf] %v2021
  %2054 = vst [vmem:[%s3 + $0x24] sm:$0xf] %v2022
  %2055 = vst [vmem:[%s3 + $0x28] sm:$0xf] %v2023
  %2056 = vst [vmem:[%s3 + $0x2c] sm:$0xf] %v2024
  %2057 = vst [vmem:[%s3 + $0x30] sm:$0xf] %v2025
  %2058 = vst [vmem:[%s3 + $0x34] sm:$0xf] %v2026
  %2059 = vst [vmem:[%s3 + $0x38] sm:$0xf] %v2027
  %2060 = vst [vmem:[%s3 + $0x3c] sm:$0xf] %v2028
  %2061 = vst [vmem:[%s3 + $0x40] sm:$0xf] %v2029
  %2062 = vst [vmem:[%s3 + $0x44] sm:$0xf] %v2030
  %2063 = vst [vmem:[%s3 + $0x48] sm:$0xf] %v2031
  %2064 = vst [vmem:[%s3 + $0x4c] sm:$0xf] %v2032
  %2065 = vst [vmem:[%s3 + $0x50] sm:$0xf] %v2033
  %2066 = vst [vmem:[%s3 + $0x54] sm:$0xf] %v2034
  %2067 = vst [vmem:[%s3 + $0x58] sm:$0xf] %v2035
  %2068 = vst [vmem:[%s3 + $0x5c] sm:$0xf] %v2036
  %2069 = vst [vmem:[%s3 + $0x60] sm:$0xf] %v2037
  %2070 = vst [vmem:[%s3 + $0x64] sm:$0xf] %v2038
  %2071 = vst [vmem:[%s3 + $0x68] sm:$0xf] %v2039
  %2072 = vst [vmem:[%s3 + $0x6c] sm:$0xf] %v2040
  %2073 = vst [vmem:[%s3 + $0x70] sm:$0xf] %v2041
  %2074 = vst [vmem:[%s3 + $0x74] sm:$0xf] %v2042
  %2075 = vst [vmem:[%s3 + $0x78] sm:$0xf] %v2043
  %2076 = vst [vmem:[%s3 + $0x7c] sm:$0xf] %v2044
  %2077 = vst [vmem:[%s4] sm:$0xff] %v1918
  %2078 = vst [vmem:[%s4 + $0x8] sm:$0xff] %v1921
  %2079 = vst [vmem:[%s4 + $0x10] sm:$0xff] %v1924
  %2080 = vst [vmem:[%s4 + $0x18] sm:$0xff] %v1927
  %2081 = vst [vmem:[%s4 + $0x20] sm:$0xff] %v1930
  %2082 = vst [vmem:[%s4 + $0x28] sm:$0xff] %v1933
  %2083 = vst [vmem:[%s4 + $0x30] sm:$0xff] %v1936
  %2084 = vst [vmem:[%s4 + $0x38] sm:$0xff] %v1939
  %2085 = vst [vmem:[%s4 + $0x40] sm:$0xff] %v1942
  %2086 = vst [vmem:[%s4 + $0x48] sm:$0xff] %v1945
  %2087 = vst [vmem:[%s4 + $0x50] sm:$0xff] %v1948
  %2088 = vst [vmem:[%s4 + $0x58] sm:$0xff] %v1951
  %2089 = vst [vmem:[%s4 + $0x60] sm:$0xff] %v1954
  %2090 = vst [vmem:[%s4 + $0x68] sm:$0xff] %v1957
  %2091 = vst [vmem:[%s4 + $0x70] sm:$0xff] %v1960
  %2092 = vst [vmem:[%s4 + $0x78] sm:$0xff] %v1963
  %2093 = vst [vmem:[%s4 + $0x80] sm:$0xff] %v1966
  %2094 = vst [vmem:[%s4 + $0x88] sm:$0xff] %v1969
  %2095 = vst [vmem:[%s4 + $0x90] sm:$0xff] %v1972
  %2096 = vst [vmem:[%s4 + $0x98] sm:$0xff] %v1975
  %2097 = vst [vmem:[%s4 + $0xa0] sm:$0xff] %v1978
  %2098 = vst [vmem:[%s4 + $0xa8] sm:$0xff] %v1981
  %2099 = vst [vmem:[%s4 + $0xb0] sm:$0xff] %v1984
  %2100 = vst [vmem:[%s4 + $0xb8] sm:$0xff] %v1987
  %2101 = vst [vmem:[%s4 + $0xc0] sm:$0xff] %v1990
  %2102 = vst [vmem:[%s4 + $0xc8] sm:$0xff] %v1993
  %2103 = vst [vmem:[%s4 + $0xd0] sm:$0xff] %v1996
  %2104 = vst [vmem:[%s4 + $0xd8] sm:$0xff] %v1999
  %2105 = vst [vmem:[%s4 + $0xe0] sm:$0xff] %v2002
  %2106 = vst [vmem:[%s4 + $0xe8] sm:$0xff] %v2005
  %2107 = vst [vmem:[%s4 + $0xf0] sm:$0xff] %v2008
  %2108 = vst [vmem:[%s4 + $0xf8] sm:$0xff] %v2011
  // Predicated region
  $region14: #{hgcn_layer.2} parent=0 // pred_check
    _
  $region15: #{hgcn_layer.2} parent=0 // pred_check_branch
    %2110 = sbr.rel (0) target = $region17
  $region16: #{hgcn_layer.2} parent=0 // pred_region
    _
  $region17: #{hgcn_layer.2} parent=0 // pred_fallthru
    _
  // Predicated region
  $region18: #{hgcn_layer.2} parent=0 // pred_check
    _
  $region19: #{hgcn_layer.2} parent=0 // pred_check_branch
    %2112 = sbr.rel (0) target = $region21
  $region20: #{hgcn_layer.2} parent=0 // pred_region
    _
  $region21: #{hgcn_layer.2} parent=0 // pred_fallthru
    _
  // Predicated region
  $region22: #{hgcn_layer.2} parent=0 // pred_check
    _
  $region23: #{hgcn_layer.2} parent=0 // pred_check_branch
    %2114 = sbr.rel (0) target = $region25
  $region24: #{hgcn_layer.2} parent=0 // pred_region
    _
  $region25: #{hgcn_layer.2} parent=0 // pred_fallthru
    _
  // Predicated region
  $region26: #{hgcn_layer.2} parent=0 // pred_check
    _
  $region27: #{hgcn_layer.2} parent=0 // pred_check_branch
    %2116 = sbr.rel (0) target = $region29
  $region28: #{hgcn_layer.2} parent=0 // pred_region
    _
  $region29: #{hgcn_layer.2} parent=0 // pred_fallthru
    _

// kernel: hgcn_layer.3
$region0: #{hgcn_layer.3}
  #allocation0 [shape = 'u32[]', space=smem, size = 0x4, offset = 0x4, fixed_abs, tag = 'smem constant byte address 0x4 - core index']
  #allocation1 [shape = 'u32[72,128]{1,0:T(1,128)}', space=vmem, size = 0x9000, scoped, tag = 'internal scratch']
  %s0 = inlined_call_operand.vmem [shape: bf16[256,256], index: 0, kind: input, shape index: {}]
  %s1 = inlined_call_operand.vmem [shape: bf16[256,128], index: 1, kind: input, shape index: {}]
  %s2 = inlined_call_operand.vmem [shape: f32[256,128], index: 2, kind: input, shape index: {}]
  %s3 = inlined_call_operand.vmem [shape: f32[256,1], index: 3, kind: input, shape index: {}]
  %s4 = inlined_call_operand.vmem [shape: f32[256,128], index: 4, kind: output, shape index: {}]
  %s5 = sld [smem:[#allocation0]]
  $region34: #{hgcn_layer.3} parent=0
    _
  %s7 = ssub.s32 1, %s5
  %s8 = scalar_select 0, %s7, %s5
  // Predicated region
  $region2: #{hgcn_layer.3} parent=0 // pred_check
    _
  $region3: #{hgcn_layer.3} parent=0 // pred_check_branch
    %10 = sbr.rel (0) target = $region5
  $region4: #{hgcn_layer.3} parent=0 // pred_region
    _
  $region5: #{hgcn_layer.3} parent=0 // pred_fallthru
    _
  // Predicated region
  $region6: #{hgcn_layer.3} parent=0 // pred_check
    _
  $region7: #{hgcn_layer.3} parent=0 // pred_check_branch
    %12 = sbr.rel (0) target = $region9
  $region8: #{hgcn_layer.3} parent=0 // pred_region
    _
  $region9: #{hgcn_layer.3} parent=0 // pred_fallthru
    _
  // Predicated region
  $region10: #{hgcn_layer.3} parent=0 // pred_check
    _
  $region11: #{hgcn_layer.3} parent=0 // pred_check_branch
    %14 = sbr.rel (0) target = $region13
  $region12: #{hgcn_layer.3} parent=0 // pred_region
    _
  $region13: #{hgcn_layer.3} parent=0 // pred_fallthru
    _
  // Predicated region
  $region14: #{hgcn_layer.3} parent=0 // pred_check
    _
  $region15: #{hgcn_layer.3} parent=0 // pred_check_branch
    %16 = sbr.rel (0) target = $region17
  $region16: #{hgcn_layer.3} parent=0 // pred_region
    _
  $region17: #{hgcn_layer.3} parent=0 // pred_fallthru
    _
  %p17 = scmp.eq.s32.totalorder 0, 0
  // Predicated region
  $region18: #{hgcn_layer.3} parent=0 // pred_check
    %p18 = pneg %p17
  $region19: #{hgcn_layer.3} parent=0 // pred_check_branch
    %20 = sbr.rel (%p18) target = $region21
  $region20: #{hgcn_layer.3} parent=0 // pred_region
    %21 = vst [vmem:[%s4] sm:$0xff] 0.0
    %22 = vst [vmem:[%s4 + $0x8] sm:$0xff] 0.0
    %23 = vst [vmem:[%s4 + $0x10] sm:$0xff] 0.0
    %24 = vst [vmem:[%s4 + $0x18] sm:$0xff] 0.0
    %25 = vst [vmem:[%s4 + $0x20] sm:$0xff] 0.0
    %26 = vst [vmem:[%s4 + $0x28] sm:$0xff] 0.0
    %27 = vst [vmem:[%s4 + $0x30] sm:$0xff] 0.0
    %28 = vst [vmem:[%s4 + $0x38] sm:$0xff] 0.0
    %29 = vst [vmem:[%s4 + $0x40] sm:$0xff] 0.0
    %30 = vst [vmem:[%s4 + $0x48] sm:$0xff] 0.0
    %31 = vst [vmem:[%s4 + $0x50] sm:$0xff] 0.0
    %32 = vst [vmem:[%s4 + $0x58] sm:$0xff] 0.0
    %33 = vst [vmem:[%s4 + $0x60] sm:$0xff] 0.0
    %34 = vst [vmem:[%s4 + $0x68] sm:$0xff] 0.0
    %35 = vst [vmem:[%s4 + $0x70] sm:$0xff] 0.0
    %36 = vst [vmem:[%s4 + $0x78] sm:$0xff] 0.0
    %37 = vst [vmem:[%s4 + $0x80] sm:$0xff] 0.0
    %38 = vst [vmem:[%s4 + $0x88] sm:$0xff] 0.0
    %39 = vst [vmem:[%s4 + $0x90] sm:$0xff] 0.0
    %40 = vst [vmem:[%s4 + $0x98] sm:$0xff] 0.0
    %41 = vst [vmem:[%s4 + $0xa0] sm:$0xff] 0.0
    %42 = vst [vmem:[%s4 + $0xa8] sm:$0xff] 0.0
    %43 = vst [vmem:[%s4 + $0xb0] sm:$0xff] 0.0
    %44 = vst [vmem:[%s4 + $0xb8] sm:$0xff] 0.0
    %45 = vst [vmem:[%s4 + $0xc0] sm:$0xff] 0.0
    %46 = vst [vmem:[%s4 + $0xc8] sm:$0xff] 0.0
    %47 = vst [vmem:[%s4 + $0xd0] sm:$0xff] 0.0
    %48 = vst [vmem:[%s4 + $0xd8] sm:$0xff] 0.0
    %49 = vst [vmem:[%s4 + $0xe0] sm:$0xff] 0.0
    %50 = vst [vmem:[%s4 + $0xe8] sm:$0xff] 0.0
    %51 = vst [vmem:[%s4 + $0xf0] sm:$0xff] 0.0
    %52 = vst [vmem:[%s4 + $0xf8] sm:$0xff] 0.0
  $region21: #{hgcn_layer.3} parent=0 // pred_fallthru
    _
  %s53 = smul.u32 0, 256
  %s54 = sshra.s32 %s53, 3
  %s55 = sand.u32 %s53, 7
  %s56 = smul.addr %s54, 4
  %s57 = scalar_lea.vmem %s1, %s56
  %v58 = vld [vmem:[%s57] sm:$0xf]
  %v59 = vld [vmem:[%s57 + $0x4] sm:$0xf]
  %v60 = vld [vmem:[%s57 + $0x8] sm:$0xf]
  %v61 = vld [vmem:[%s57 + $0xc] sm:$0xf]
  %v62 = vld [vmem:[%s57 + $0x10] sm:$0xf]
  %v63 = vld [vmem:[%s57 + $0x14] sm:$0xf]
  %v64 = vld [vmem:[%s57 + $0x18] sm:$0xf]
  %v65 = vld [vmem:[%s57 + $0x1c] sm:$0xf]
  %v66 = vld [vmem:[%s57 + $0x20] sm:$0xf]
  %v67 = vld [vmem:[%s57 + $0x24] sm:$0xf]
  %v68 = vld [vmem:[%s57 + $0x28] sm:$0xf]
  %v69 = vld [vmem:[%s57 + $0x2c] sm:$0xf]
  %v70 = vld [vmem:[%s57 + $0x30] sm:$0xf]
  %v71 = vld [vmem:[%s57 + $0x34] sm:$0xf]
  %v72 = vld [vmem:[%s57 + $0x38] sm:$0xf]
  %v73 = vld [vmem:[%s57 + $0x3c] sm:$0xf]
  %v74 = vld [vmem:[%s57 + $0x40] sm:$0xf]
  %v75 = vld [vmem:[%s57 + $0x44] sm:$0xf]
  %v76 = vld [vmem:[%s57 + $0x48] sm:$0xf]
  %v77 = vld [vmem:[%s57 + $0x4c] sm:$0xf]
  %v78 = vld [vmem:[%s57 + $0x50] sm:$0xf]
  %v79 = vld [vmem:[%s57 + $0x54] sm:$0xf]
  %v80 = vld [vmem:[%s57 + $0x58] sm:$0xf]
  %v81 = vld [vmem:[%s57 + $0x5c] sm:$0xf]
  %v82 = vld [vmem:[%s57 + $0x60] sm:$0xf]
  %v83 = vld [vmem:[%s57 + $0x64] sm:$0xf]
  %v84 = vld [vmem:[%s57 + $0x68] sm:$0xf]
  %v85 = vld [vmem:[%s57 + $0x6c] sm:$0xf]
  %v86 = vld [vmem:[%s57 + $0x70] sm:$0xf]
  %v87 = vld [vmem:[%s57 + $0x74] sm:$0xf]
  %v88 = vld [vmem:[%s57 + $0x78] sm:$0xf]
  %v89 = vld [vmem:[%s57 + $0x7c] sm:$0xf]
  %v90 = vld [vmem:[%s4] sm:$0xff]
  %v91 = vld [vmem:[%s4 + $0x8] sm:$0xff]
  %v92 = vld [vmem:[%s4 + $0x10] sm:$0xff]
  %v93 = vld [vmem:[%s4 + $0x18] sm:$0xff]
  %v94 = vld [vmem:[%s4 + $0x20] sm:$0xff]
  %v95 = vld [vmem:[%s4 + $0x28] sm:$0xff]
  %v96 = vld [vmem:[%s4 + $0x30] sm:$0xff]
  %v97 = vld [vmem:[%s4 + $0x38] sm:$0xff]
  %v98 = vld [vmem:[%s4 + $0x40] sm:$0xff]
  %v99 = vld [vmem:[%s4 + $0x48] sm:$0xff]
  %v100 = vld [vmem:[%s4 + $0x50] sm:$0xff]
  %v101 = vld [vmem:[%s4 + $0x58] sm:$0xff]
  %v102 = vld [vmem:[%s4 + $0x60] sm:$0xff]
  %v103 = vld [vmem:[%s4 + $0x68] sm:$0xff]
  %v104 = vld [vmem:[%s4 + $0x70] sm:$0xff]
  %v105 = vld [vmem:[%s4 + $0x78] sm:$0xff]
  %v106 = vld [vmem:[%s4 + $0x80] sm:$0xff]
  %v107 = vld [vmem:[%s4 + $0x88] sm:$0xff]
  %v108 = vld [vmem:[%s4 + $0x90] sm:$0xff]
  %v109 = vld [vmem:[%s4 + $0x98] sm:$0xff]
  %v110 = vld [vmem:[%s4 + $0xa0] sm:$0xff]
  %v111 = vld [vmem:[%s4 + $0xa8] sm:$0xff]
  %v112 = vld [vmem:[%s4 + $0xb0] sm:$0xff]
  %v113 = vld [vmem:[%s4 + $0xb8] sm:$0xff]
  %v114 = vld [vmem:[%s4 + $0xc0] sm:$0xff]
  %v115 = vld [vmem:[%s4 + $0xc8] sm:$0xff]
  %v116 = vld [vmem:[%s4 + $0xd0] sm:$0xff]
  %v117 = vld [vmem:[%s4 + $0xd8] sm:$0xff]
  %v118 = vld [vmem:[%s4 + $0xe0] sm:$0xff]
  %v119 = vld [vmem:[%s4 + $0xe8] sm:$0xff]
  %v120 = vld [vmem:[%s4 + $0xf0] sm:$0xff]
  %v121 = vld [vmem:[%s4 + $0xf8] sm:$0xff]
  %v122 = vld [vmem:[%s0] sm:$0xff]
  %v123 = vld [vmem:[%s0 + $0x8] sm:$0xff]
  %v124 = vld [vmem:[%s0 + $0x10] sm:$0xff]
  %v125 = vld [vmem:[%s0 + $0x18] sm:$0xff]
  %v126 = vld [vmem:[%s0 + $0x20] sm:$0xff]
  %v127 = vld [vmem:[%s0 + $0x28] sm:$0xff]
  %v128 = vld [vmem:[%s0 + $0x30] sm:$0xff]
  %v129 = vld [vmem:[%s0 + $0x38] sm:$0xff]
  %v130 = vld [vmem:[%s0 + $0x40] sm:$0xff]
  %v131 = vld [vmem:[%s0 + $0x48] sm:$0xff]
  %v132 = vld [vmem:[%s0 + $0x50] sm:$0xff]
  %v133 = vld [vmem:[%s0 + $0x58] sm:$0xff]
  %v134 = vld [vmem:[%s0 + $0x60] sm:$0xff]
  %v135 = vld [vmem:[%s0 + $0x68] sm:$0xff]
  %v136 = vld [vmem:[%s0 + $0x70] sm:$0xff]
  %v137 = vld [vmem:[%s0 + $0x78] sm:$0xff]
  %v138 = vld [vmem:[%s0 + $0x80] sm:$0xff]
  %v139 = vld [vmem:[%s0 + $0x88] sm:$0xff]
  %v140 = vld [vmem:[%s0 + $0x90] sm:$0xff]
  %v141 = vld [vmem:[%s0 + $0x98] sm:$0xff]
  %v142 = vld [vmem:[%s0 + $0xa0] sm:$0xff]
  %v143 = vld [vmem:[%s0 + $0xa8] sm:$0xff]
  %v144 = vld [vmem:[%s0 + $0xb0] sm:$0xff]
  %v145 = vld [vmem:[%s0 + $0xb8] sm:$0xff]
  %v146 = vld [vmem:[%s0 + $0xc0] sm:$0xff]
  %v147 = vld [vmem:[%s0 + $0xc8] sm:$0xff]
  %v148 = vld [vmem:[%s0 + $0xd0] sm:$0xff]
  %v149 = vld [vmem:[%s0 + $0xd8] sm:$0xff]
  %v150 = vld [vmem:[%s0 + $0xe0] sm:$0xff]
  %v151 = vld [vmem:[%s0 + $0xe8] sm:$0xff]
  %v152 = vld [vmem:[%s0 + $0xf0] sm:$0xff]
  %v153 = vld [vmem:[%s0 + $0xf8] sm:$0xff]
  %v186 = vunpack.c.l.b16 %v122
  %v187 = vunpack.c.h.b16 %v122
  %v188 = vunpack.c.l.b16 %v123
  %v189 = vunpack.c.h.b16 %v123
  %v190 = vunpack.c.l.b16 %v124
  %v191 = vunpack.c.h.b16 %v124
  %v192 = vunpack.c.l.b16 %v125
  %v193 = vunpack.c.h.b16 %v125
  %v194 = vunpack.c.l.b16 %v126
  %v195 = vunpack.c.h.b16 %v126
  %v196 = vunpack.c.l.b16 %v127
  %v197 = vunpack.c.h.b16 %v127
  %v198 = vunpack.c.l.b16 %v128
  %v199 = vunpack.c.h.b16 %v128
  %v200 = vunpack.c.l.b16 %v129
  %v201 = vunpack.c.h.b16 %v129
  %v202 = vunpack.c.l.b16 %v130
  %v203 = vunpack.c.h.b16 %v130
  %v204 = vunpack.c.l.b16 %v131
  %v205 = vunpack.c.h.b16 %v131
  %v206 = vunpack.c.l.b16 %v132
  %v207 = vunpack.c.h.b16 %v132
  %v208 = vunpack.c.l.b16 %v133
  %v209 = vunpack.c.h.b16 %v133
  %v210 = vunpack.c.l.b16 %v134
  %v211 = vunpack.c.h.b16 %v134
  %v212 = vunpack.c.l.b16 %v135
  %v213 = vunpack.c.h.b16 %v135
  %v214 = vunpack.c.l.b16 %v136
  %v215 = vunpack.c.h.b16 %v136
  %v216 = vunpack.c.l.b16 %v137
  %v217 = vunpack.c.h.b16 %v137
  %v218 = vunpack.c.l.b16 %v138
  %v219 = vunpack.c.h.b16 %v138
  %v220 = vunpack.c.l.b16 %v139
  %v221 = vunpack.c.h.b16 %v139
  %v222 = vunpack.c.l.b16 %v140
  %v223 = vunpack.c.h.b16 %v140
  %v224 = vunpack.c.l.b16 %v141
  %v225 = vunpack.c.h.b16 %v141
  %v226 = vunpack.c.l.b16 %v142
  %v227 = vunpack.c.h.b16 %v142
  %v228 = vunpack.c.l.b16 %v143
  %v229 = vunpack.c.h.b16 %v143
  %v230 = vunpack.c.l.b16 %v144
  %v231 = vunpack.c.h.b16 %v144
  %v232 = vunpack.c.l.b16 %v145
  %v233 = vunpack.c.h.b16 %v145
  %v234 = vunpack.c.l.b16 %v146
  %v235 = vunpack.c.h.b16 %v146
  %v236 = vunpack.c.l.b16 %v147
  %v237 = vunpack.c.h.b16 %v147
  %v238 = vunpack.c.l.b16 %v148
  %v239 = vunpack.c.h.b16 %v148
  %v240 = vunpack.c.l.b16 %v149
  %v241 = vunpack.c.h.b16 %v149
  %v242 = vunpack.c.l.b16 %v150
  %v243 = vunpack.c.h.b16 %v150
  %v244 = vunpack.c.l.b16 %v151
  %v245 = vunpack.c.h.b16 %v151
  %v246 = vunpack.c.l.b16 %v152
  %v247 = vunpack.c.h.b16 %v152
  %v248 = vunpack.c.l.b16 %v153
  %v249 = vunpack.c.h.b16 %v153
  %v250 = vpack.c.b16 %v188, %v186
  %v251 = vpack.c.b16 %v189, %v187
  %v252 = vpack.c.b16 %v192, %v190
  %v253 = vpack.c.b16 %v193, %v191
  %v254 = vpack.c.b16 %v196, %v194
  %v255 = vpack.c.b16 %v197, %v195
  %v256 = vpack.c.b16 %v200, %v198
  %v257 = vpack.c.b16 %v201, %v199
  %v258 = vpack.c.b16 %v204, %v202
  %v259 = vpack.c.b16 %v205, %v203
  %v260 = vpack.c.b16 %v208, %v206
  %v261 = vpack.c.b16 %v209, %v207
  %v262 = vpack.c.b16 %v212, %v210
  %v263 = vpack.c.b16 %v213, %v211
  %v264 = vpack.c.b16 %v216, %v214
  %v265 = vpack.c.b16 %v217, %v215
  %v266 = vpack.c.b16 %v220, %v218
  %v267 = vpack.c.b16 %v221, %v219
  %v268 = vpack.c.b16 %v224, %v222
  %v269 = vpack.c.b16 %v225, %v223
  %v270 = vpack.c.b16 %v228, %v226
  %v271 = vpack.c.b16 %v229, %v227
  %v272 = vpack.c.b16 %v232, %v230
  %v273 = vpack.c.b16 %v233, %v231
  %v274 = vpack.c.b16 %v236, %v234
  %v275 = vpack.c.b16 %v237, %v235
  %v276 = vpack.c.b16 %v240, %v238
  %v277 = vpack.c.b16 %v241, %v239
  %v278 = vpack.c.b16 %v244, %v242
  %v279 = vpack.c.b16 %v245, %v243
  %v280 = vpack.c.b16 %v248, %v246
  %v281 = vpack.c.b16 %v249, %v247
  %v346 = vunpack.c.l.b16 %v58
  %v347 = vunpack.c.l.b16 %v59
  %v348 = vunpack.c.l.b16 %v60
  %v349 = vunpack.c.l.b16 %v61
  %v350 = vunpack.c.l.b16 %v62
  %v351 = vunpack.c.l.b16 %v63
  %v352 = vunpack.c.l.b16 %v64
  %v353 = vunpack.c.l.b16 %v65
  %v354 = vunpack.c.l.b16 %v66
  %v355 = vunpack.c.l.b16 %v67
  %v356 = vunpack.c.l.b16 %v68
  %v357 = vunpack.c.l.b16 %v69
  %v358 = vunpack.c.l.b16 %v70
  %v359 = vunpack.c.l.b16 %v71
  %v360 = vunpack.c.l.b16 %v72
  %v361 = vunpack.c.l.b16 %v73
  %v362 = vunpack.c.l.b16 %v74
  %v363 = vunpack.c.l.b16 %v75
  %v364 = vunpack.c.l.b16 %v76
  %v365 = vunpack.c.l.b16 %v77
  %v366 = vunpack.c.l.b16 %v78
  %v367 = vunpack.c.l.b16 %v79
  %v368 = vunpack.c.l.b16 %v80
  %v369 = vunpack.c.l.b16 %v81
  %v370 = vunpack.c.l.b16 %v82
  %v371 = vunpack.c.l.b16 %v83
  %v372 = vunpack.c.l.b16 %v84
  %v373 = vunpack.c.l.b16 %v85
  %v374 = vunpack.c.l.b16 %v86
  %v375 = vunpack.c.l.b16 %v87
  %v376 = vunpack.c.l.b16 %v88
  %v377 = vunpack.c.l.b16 %v89
  %v378 = vpack.c.b16 %v347, %v346
  %v379 = vpack.c.b16 %v349, %v348
  %v380 = vpack.c.b16 %v351, %v350
  %v381 = vpack.c.b16 %v353, %v352
  %v382 = vpack.c.b16 %v355, %v354
  %v383 = vpack.c.b16 %v357, %v356
  %v384 = vpack.c.b16 %v359, %v358
  %v385 = vpack.c.b16 %v361, %v360
  %v386 = vpack.c.b16 %v363, %v362
  %v387 = vpack.c.b16 %v365, %v364
  %v388 = vpack.c.b16 %v367, %v366
  %v389 = vpack.c.b16 %v369, %v368
  %v390 = vpack.c.b16 %v371, %v370
  %v391 = vpack.c.b16 %v373, %v372
  %v392 = vpack.c.b16 %v375, %v374
  %v393 = vpack.c.b16 %v377, %v376
  %410 = vmatpush.bf16.msra.mxu0 %v385
  %411 = vmatpush.bf16.msra.mxu0 %v384
  %412 = vmatpush.bf16.msra.mxu0 %v383
  %413 = vmatpush.bf16.msra.mxu0 %v382
  %414 = vmatpush.bf16.msra.mxu0 %v381
  %415 = vmatpush.bf16.msra.mxu0 %v380
  %416 = vmatpush.bf16.msra.mxu0 %v379
  %417 = vmatpush.bf16.msra.mxu0 %v378
  %418 = vmatmul.bf16.gmra.mxu0 %v250
  %v419 = vpop.f32.mrf.mxu0
  %v420 = vadd.f32 0.0, %v419
  %v421 = vpop.f32.mrf.mxu0
  %v422 = vadd.f32 0.0, %v421
  %423 = vmatmul.bf16.gmra.mxu0 %v252
  %v424 = vpop.f32.mrf.mxu0
  %v425 = vadd.f32 0.0, %v424
  %v426 = vpop.f32.mrf.mxu0
  %v427 = vadd.f32 0.0, %v426
  %428 = vmatmul.bf16.gmra.mxu0 %v254
  %v429 = vpop.f32.mrf.mxu0
  %v430 = vadd.f32 0.0, %v429
  %v431 = vpop.f32.mrf.mxu0
  %v432 = vadd.f32 0.0, %v431
  %433 = vmatmul.bf16.gmra.mxu0 %v256
  %v434 = vpop.f32.mrf.mxu0
  %v435 = vadd.f32 0.0, %v434
  %v436 = vpop.f32.mrf.mxu0
  %v437 = vadd.f32 0.0, %v436
  %438 = vmatmul.bf16.gmra.mxu0 %v258
  %v439 = vpop.f32.mrf.mxu0
  %v440 = vadd.f32 0.0, %v439
  %v441 = vpop.f32.mrf.mxu0
  %v442 = vadd.f32 0.0, %v441
  %443 = vmatmul.bf16.gmra.mxu0 %v260
  %v444 = vpop.f32.mrf.mxu0
  %v445 = vadd.f32 0.0, %v444
  %v446 = vpop.f32.mrf.mxu0
  %v447 = vadd.f32 0.0, %v446
  %448 = vmatmul.bf16.gmra.mxu0 %v262
  %v449 = vpop.f32.mrf.mxu0
  %v450 = vadd.f32 0.0, %v449
  %v451 = vpop.f32.mrf.mxu0
  %v452 = vadd.f32 0.0, %v451
  %453 = vmatmul.bf16.gmra.mxu0 %v264
  %v454 = vpop.f32.mrf.mxu0
  %v455 = vadd.f32 0.0, %v454
  %v456 = vpop.f32.mrf.mxu0
  %v457 = vadd.f32 0.0, %v456
  %458 = vmatmul.bf16.gmra.mxu0 %v266
  %v459 = vpop.f32.mrf.mxu0
  %v460 = vadd.f32 0.0, %v459
  %v461 = vpop.f32.mrf.mxu0
  %v462 = vadd.f32 0.0, %v461
  %463 = vmatmul.bf16.gmra.mxu0 %v268
  %v464 = vpop.f32.mrf.mxu0
  %v465 = vadd.f32 0.0, %v464
  %v466 = vpop.f32.mrf.mxu0
  %v467 = vadd.f32 0.0, %v466
  %468 = vmatmul.bf16.gmra.mxu0 %v270
  %v469 = vpop.f32.mrf.mxu0
  %v470 = vadd.f32 0.0, %v469
  %v471 = vpop.f32.mrf.mxu0
  %v472 = vadd.f32 0.0, %v471
  %473 = vmatmul.bf16.gmra.mxu0 %v272
  %v474 = vpop.f32.mrf.mxu0
  %v475 = vadd.f32 0.0, %v474
  %v476 = vpop.f32.mrf.mxu0
  %v477 = vadd.f32 0.0, %v476
  %478 = vmatmul.bf16.gmra.mxu0 %v274
  %v479 = vpop.f32.mrf.mxu0
  %v480 = vadd.f32 0.0, %v479
  %v481 = vpop.f32.mrf.mxu0
  %v482 = vadd.f32 0.0, %v481
  %483 = vmatmul.bf16.gmra.mxu0 %v276
  %v484 = vpop.f32.mrf.mxu0
  %v485 = vadd.f32 0.0, %v484
  %v486 = vpop.f32.mrf.mxu0
  %v487 = vadd.f32 0.0, %v486
  %488 = vmatmul.bf16.gmra.mxu0 %v278
  %v489 = vpop.f32.mrf.mxu0
  %v490 = vadd.f32 0.0, %v489
  %v491 = vpop.f32.mrf.mxu0
  %v492 = vadd.f32 0.0, %v491
  %493 = vmatmul.bf16.gmra.mxu0 %v280
  %v494 = vpop.f32.mrf.mxu0
  %v495 = vadd.f32 0.0, %v494
  %v496 = vpop.f32.mrf.mxu0
  %v497 = vadd.f32 0.0, %v496
  %498 = vdwg.mxu0
  %499 = vmatpush.bf16.msra.mxu0 %v393
  %500 = vmatpush.bf16.msra.mxu0 %v392
  %501 = vmatpush.bf16.msra.mxu0 %v391
  %502 = vmatpush.bf16.msra.mxu0 %v390
  %503 = vmatpush.bf16.msra.mxu0 %v389
  %504 = vmatpush.bf16.msra.mxu0 %v388
  %505 = vmatpush.bf16.msra.mxu0 %v387
  %506 = vmatpush.bf16.msra.mxu0 %v386
  %507 = vmatmul.bf16.gmra.mxu0 %v251
  %v508 = vpop.f32.mrf.mxu0
  %v509 = vadd.f32 %v420, %v508
  %v510 = vpop.f32.mrf.mxu0
  %v511 = vadd.f32 %v422, %v510
  %512 = vmatmul.bf16.gmra.mxu0 %v253
  %v513 = vpop.f32.mrf.mxu0
  %v514 = vadd.f32 %v425, %v513
  %v515 = vpop.f32.mrf.mxu0
  %v516 = vadd.f32 %v427, %v515
  %517 = vmatmul.bf16.gmra.mxu0 %v255
  %v518 = vpop.f32.mrf.mxu0
  %v519 = vadd.f32 %v430, %v518
  %v520 = vpop.f32.mrf.mxu0
  %v521 = vadd.f32 %v432, %v520
  %522 = vmatmul.bf16.gmra.mxu0 %v257
  %v523 = vpop.f32.mrf.mxu0
  %v524 = vadd.f32 %v435, %v523
  %v525 = vpop.f32.mrf.mxu0
  %v526 = vadd.f32 %v437, %v525
  %527 = vmatmul.bf16.gmra.mxu0 %v259
  %v528 = vpop.f32.mrf.mxu0
  %v529 = vadd.f32 %v440, %v528
  %v530 = vpop.f32.mrf.mxu0
  %v531 = vadd.f32 %v442, %v530
  %532 = vmatmul.bf16.gmra.mxu0 %v261
  %v533 = vpop.f32.mrf.mxu0
  %v534 = vadd.f32 %v445, %v533
  %v535 = vpop.f32.mrf.mxu0
  %v536 = vadd.f32 %v447, %v535
  %537 = vmatmul.bf16.gmra.mxu0 %v263
  %v538 = vpop.f32.mrf.mxu0
  %v539 = vadd.f32 %v450, %v538
  %v540 = vpop.f32.mrf.mxu0
  %v541 = vadd.f32 %v452, %v540
  %542 = vmatmul.bf16.gmra.mxu0 %v265
  %v543 = vpop.f32.mrf.mxu0
  %v544 = vadd.f32 %v455, %v543
  %v545 = vpop.f32.mrf.mxu0
  %v546 = vadd.f32 %v457, %v545
  %547 = vmatmul.bf16.gmra.mxu0 %v267
  %v548 = vpop.f32.mrf.mxu0
  %v549 = vadd.f32 %v460, %v548
  %v550 = vpop.f32.mrf.mxu0
  %v551 = vadd.f32 %v462, %v550
  %552 = vmatmul.bf16.gmra.mxu0 %v269
  %v553 = vpop.f32.mrf.mxu0
  %v554 = vadd.f32 %v465, %v553
  %v555 = vpop.f32.mrf.mxu0
  %v556 = vadd.f32 %v467, %v555
  %557 = vmatmul.bf16.gmra.mxu0 %v271
  %v558 = vpop.f32.mrf.mxu0
  %v559 = vadd.f32 %v470, %v558
  %v560 = vpop.f32.mrf.mxu0
  %v561 = vadd.f32 %v472, %v560
  %562 = vmatmul.bf16.gmra.mxu0 %v273
  %v563 = vpop.f32.mrf.mxu0
  %v564 = vadd.f32 %v475, %v563
  %v565 = vpop.f32.mrf.mxu0
  %v566 = vadd.f32 %v477, %v565
  %567 = vmatmul.bf16.gmra.mxu0 %v275
  %v568 = vpop.f32.mrf.mxu0
  %v569 = vadd.f32 %v480, %v568
  %v570 = vpop.f32.mrf.mxu0
  %v571 = vadd.f32 %v482, %v570
  %572 = vmatmul.bf16.gmra.mxu0 %v277
  %v573 = vpop.f32.mrf.mxu0
  %v574 = vadd.f32 %v485, %v573
  %v575 = vpop.f32.mrf.mxu0
  %v576 = vadd.f32 %v487, %v575
  %577 = vmatmul.bf16.gmra.mxu0 %v279
  %v578 = vpop.f32.mrf.mxu0
  %v579 = vadd.f32 %v490, %v578
  %v580 = vpop.f32.mrf.mxu0
  %v581 = vadd.f32 %v492, %v580
  %582 = vmatmul.bf16.gmra.mxu0 %v281
  %v583 = vpop.f32.mrf.mxu0
  %v584 = vadd.f32 %v495, %v583
  %v585 = vpop.f32.mrf.mxu0
  %v586 = vadd.f32 %v497, %v585
  %587 = vdwg.mxu0
  %v588 = vadd.f32 %v90, %v509
  %v589 = vadd.f32 %v91, %v511
  %v590 = vadd.f32 %v92, %v514
  %v591 = vadd.f32 %v93, %v516
  %v592 = vadd.f32 %v94, %v519
  %v593 = vadd.f32 %v95, %v521
  %v594 = vadd.f32 %v96, %v524
  %v595 = vadd.f32 %v97, %v526
  %v596 = vadd.f32 %v98, %v529
  %v597 = vadd.f32 %v99, %v531
  %v598 = vadd.f32 %v100, %v534
  %v599 = vadd.f32 %v101, %v536
  %v600 = vadd.f32 %v102, %v539
  %v601 = vadd.f32 %v103, %v541
  %v602 = vadd.f32 %v104, %v544
  %v603 = vadd.f32 %v105, %v546
  %v604 = vadd.f32 %v106, %v549
  %v605 = vadd.f32 %v107, %v551
  %v606 = vadd.f32 %v108, %v554
  %v607 = vadd.f32 %v109, %v556
  %v608 = vadd.f32 %v110, %v559
  %v609 = vadd.f32 %v111, %v561
  %v610 = vadd.f32 %v112, %v564
  %v611 = vadd.f32 %v113, %v566
  %v612 = vadd.f32 %v114, %v569
  %v613 = vadd.f32 %v115, %v571
  %v614 = vadd.f32 %v116, %v574
  %v615 = vadd.f32 %v117, %v576
  %v616 = vadd.f32 %v118, %v579
  %v617 = vadd.f32 %v119, %v581
  %v618 = vadd.f32 %v120, %v584
  %v619 = vadd.f32 %v121, %v586
  %620 = vst [vmem:[%s4] sm:$0xff] %v588
  %621 = vst [vmem:[%s4 + $0x8] sm:$0xff] %v589
  %622 = vst [vmem:[%s4 + $0x10] sm:$0xff] %v590
  %623 = vst [vmem:[%s4 + $0x18] sm:$0xff] %v591
  %624 = vst [vmem:[%s4 + $0x20] sm:$0xff] %v592
  %625 = vst [vmem:[%s4 + $0x28] sm:$0xff] %v593
  %626 = vst [vmem:[%s4 + $0x30] sm:$0xff] %v594
  %627 = vst [vmem:[%s4 + $0x38] sm:$0xff] %v595
  %628 = vst [vmem:[%s4 + $0x40] sm:$0xff] %v596
  %629 = vst [vmem:[%s4 + $0x48] sm:$0xff] %v597
  %630 = vst [vmem:[%s4 + $0x50] sm:$0xff] %v598
  %631 = vst [vmem:[%s4 + $0x58] sm:$0xff] %v599
  %632 = vst [vmem:[%s4 + $0x60] sm:$0xff] %v600
  %633 = vst [vmem:[%s4 + $0x68] sm:$0xff] %v601
  %634 = vst [vmem:[%s4 + $0x70] sm:$0xff] %v602
  %635 = vst [vmem:[%s4 + $0x78] sm:$0xff] %v603
  %636 = vst [vmem:[%s4 + $0x80] sm:$0xff] %v604
  %637 = vst [vmem:[%s4 + $0x88] sm:$0xff] %v605
  %638 = vst [vmem:[%s4 + $0x90] sm:$0xff] %v606
  %639 = vst [vmem:[%s4 + $0x98] sm:$0xff] %v607
  %640 = vst [vmem:[%s4 + $0xa0] sm:$0xff] %v608
  %641 = vst [vmem:[%s4 + $0xa8] sm:$0xff] %v609
  %642 = vst [vmem:[%s4 + $0xb0] sm:$0xff] %v610
  %643 = vst [vmem:[%s4 + $0xb8] sm:$0xff] %v611
  %644 = vst [vmem:[%s4 + $0xc0] sm:$0xff] %v612
  %645 = vst [vmem:[%s4 + $0xc8] sm:$0xff] %v613
  %646 = vst [vmem:[%s4 + $0xd0] sm:$0xff] %v614
  %647 = vst [vmem:[%s4 + $0xd8] sm:$0xff] %v615
  %648 = vst [vmem:[%s4 + $0xe0] sm:$0xff] %v616
  %649 = vst [vmem:[%s4 + $0xe8] sm:$0xff] %v617
  %650 = vst [vmem:[%s4 + $0xf0] sm:$0xff] %v618
  %651 = vst [vmem:[%s4 + $0xf8] sm:$0xff] %v619
  // Predicated region
  $region22: #{hgcn_layer.3} parent=0 // pred_check
    %p652 = pneg %p17
  $region23: #{hgcn_layer.3} parent=0 // pred_check_branch
    %654 = sbr.rel (%p652) target = $region25
  $region24: #{hgcn_layer.3} parent=0 // pred_region
    %v655 = vld [vmem:[%s4] sm:$0xff]
    %v656 = vld [vmem:[%s4 + $0x8] sm:$0xff]
    %v657 = vld [vmem:[%s4 + $0x10] sm:$0xff]
    %v658 = vld [vmem:[%s4 + $0x18] sm:$0xff]
    %v659 = vld [vmem:[%s4 + $0x20] sm:$0xff]
    %v660 = vld [vmem:[%s4 + $0x28] sm:$0xff]
    %v661 = vld [vmem:[%s4 + $0x30] sm:$0xff]
    %v662 = vld [vmem:[%s4 + $0x38] sm:$0xff]
    %v663 = vld [vmem:[%s4 + $0x40] sm:$0xff]
    %v664 = vld [vmem:[%s4 + $0x48] sm:$0xff]
    %v665 = vld [vmem:[%s4 + $0x50] sm:$0xff]
    %v666 = vld [vmem:[%s4 + $0x58] sm:$0xff]
    %v667 = vld [vmem:[%s4 + $0x60] sm:$0xff]
    %v668 = vld [vmem:[%s4 + $0x68] sm:$0xff]
    %v669 = vld [vmem:[%s4 + $0x70] sm:$0xff]
    %v670 = vld [vmem:[%s4 + $0x78] sm:$0xff]
    %v671 = vld [vmem:[%s4 + $0x80] sm:$0xff]
    %v672 = vld [vmem:[%s4 + $0x88] sm:$0xff]
    %v673 = vld [vmem:[%s4 + $0x90] sm:$0xff]
    %v674 = vld [vmem:[%s4 + $0x98] sm:$0xff]
    %v675 = vld [vmem:[%s4 + $0xa0] sm:$0xff]
    %v676 = vld [vmem:[%s4 + $0xa8] sm:$0xff]
    %v677 = vld [vmem:[%s4 + $0xb0] sm:$0xff]
    %v678 = vld [vmem:[%s4 + $0xb8] sm:$0xff]
    %v679 = vld [vmem:[%s4 + $0xc0] sm:$0xff]
    %v680 = vld [vmem:[%s4 + $0xc8] sm:$0xff]
    %v681 = vld [vmem:[%s4 + $0xd0] sm:$0xff]
    %v682 = vld [vmem:[%s4 + $0xd8] sm:$0xff]
    %v683 = vld [vmem:[%s4 + $0xe0] sm:$0xff]
    %v684 = vld [vmem:[%s4 + $0xe8] sm:$0xff]
    %v685 = vld [vmem:[%s4 + $0xf0] sm:$0xff]
    %v686 = vld [vmem:[%s4 + $0xf8] sm:$0xff]
    %v687 = vld [vmem:[%s3] sm:$0xff]
    %v688 = vld [vmem:[%s3 + $0x8] sm:$0xff]
    %v689 = vld [vmem:[%s3 + $0x10] sm:$0xff]
    %v690 = vld [vmem:[%s3 + $0x18] sm:$0xff]
    %v691 = vld [vmem:[%s3 + $0x20] sm:$0xff]
    %v692 = vld [vmem:[%s3 + $0x28] sm:$0xff]
    %v693 = vld [vmem:[%s3 + $0x30] sm:$0xff]
    %v694 = vld [vmem:[%s3 + $0x38] sm:$0xff]
    %v695 = vld [vmem:[%s3 + $0x40] sm:$0xff]
    %v696 = vld [vmem:[%s3 + $0x48] sm:$0xff]
    %v697 = vld [vmem:[%s3 + $0x50] sm:$0xff]
    %v698 = vld [vmem:[%s3 + $0x58] sm:$0xff]
    %v699 = vld [vmem:[%s3 + $0x60] sm:$0xff]
    %v700 = vld [vmem:[%s3 + $0x68] sm:$0xff]
    %v701 = vld [vmem:[%s3 + $0x70] sm:$0xff]
    %v702 = vld [vmem:[%s3 + $0x78] sm:$0xff]
    %v703 = vld [vmem:[%s3 + $0x80] sm:$0xff]
    %v704 = vld [vmem:[%s3 + $0x88] sm:$0xff]
    %v705 = vld [vmem:[%s3 + $0x90] sm:$0xff]
    %v706 = vld [vmem:[%s3 + $0x98] sm:$0xff]
    %v707 = vld [vmem:[%s3 + $0xa0] sm:$0xff]
    %v708 = vld [vmem:[%s3 + $0xa8] sm:$0xff]
    %v709 = vld [vmem:[%s3 + $0xb0] sm:$0xff]
    %v710 = vld [vmem:[%s3 + $0xb8] sm:$0xff]
    %v711 = vld [vmem:[%s3 + $0xc0] sm:$0xff]
    %v712 = vld [vmem:[%s3 + $0xc8] sm:$0xff]
    %v713 = vld [vmem:[%s3 + $0xd0] sm:$0xff]
    %v714 = vld [vmem:[%s3 + $0xd8] sm:$0xff]
    %v715 = vld [vmem:[%s3 + $0xe0] sm:$0xff]
    %v716 = vld [vmem:[%s3 + $0xe8] sm:$0xff]
    %v717 = vld [vmem:[%s3 + $0xf0] sm:$0xff]
    %v718 = vld [vmem:[%s3 + $0xf8] sm:$0xff]
    %720 = vset.pattern.permute.xlu0 0
    %721 = vperm.xlu0 %720, %v687
    %v722 = vpop.permute.xlu0 %721
    %725 = vset.pattern.permute.xlu0 0
    %726 = vperm.xlu0 %725, %v688
    %v727 = vpop.permute.xlu0 %726
    %730 = vset.pattern.permute.xlu0 0
    %731 = vperm.xlu0 %730, %v689
    %v732 = vpop.permute.xlu0 %731
    %735 = vset.pattern.permute.xlu0 0
    %736 = vperm.xlu0 %735, %v690
    %v737 = vpop.permute.xlu0 %736
    %740 = vset.pattern.permute.xlu0 0
    %741 = vperm.xlu0 %740, %v691
    %v742 = vpop.permute.xlu0 %741
    %745 = vset.pattern.permute.xlu0 0
    %746 = vperm.xlu0 %745, %v692
    %v747 = vpop.permute.xlu0 %746
    %750 = vset.pattern.permute.xlu0 0
    %751 = vperm.xlu0 %750, %v693
    %v752 = vpop.permute.xlu0 %751
    %755 = vset.pattern.permute.xlu0 0
    %756 = vperm.xlu0 %755, %v694
    %v757 = vpop.permute.xlu0 %756
    %760 = vset.pattern.permute.xlu0 0
    %761 = vperm.xlu0 %760, %v695
    %v762 = vpop.permute.xlu0 %761
    %765 = vset.pattern.permute.xlu0 0
    %766 = vperm.xlu0 %765, %v696
    %v767 = vpop.permute.xlu0 %766
    %770 = vset.pattern.permute.xlu0 0
    %771 = vperm.xlu0 %770, %v697
    %v772 = vpop.permute.xlu0 %771
    %775 = vset.pattern.permute.xlu0 0
    %776 = vperm.xlu0 %775, %v698
    %v777 = vpop.permute.xlu0 %776
    %780 = vset.pattern.permute.xlu0 0
    %781 = vperm.xlu0 %780, %v699
    %v782 = vpop.permute.xlu0 %781
    %785 = vset.pattern.permute.xlu0 0
    %786 = vperm.xlu0 %785, %v700
    %v787 = vpop.permute.xlu0 %786
    %790 = vset.pattern.permute.xlu0 0
    %791 = vperm.xlu0 %790, %v701
    %v792 = vpop.permute.xlu0 %791
    %795 = vset.pattern.permute.xlu0 0
    %796 = vperm.xlu0 %795, %v702
    %v797 = vpop.permute.xlu0 %796
    %800 = vset.pattern.permute.xlu0 0
    %801 = vperm.xlu0 %800, %v703
    %v802 = vpop.permute.xlu0 %801
    %805 = vset.pattern.permute.xlu0 0
    %806 = vperm.xlu0 %805, %v704
    %v807 = vpop.permute.xlu0 %806
    %810 = vset.pattern.permute.xlu0 0
    %811 = vperm.xlu0 %810, %v705
    %v812 = vpop.permute.xlu0 %811
    %815 = vset.pattern.permute.xlu0 0
    %816 = vperm.xlu0 %815, %v706
    %v817 = vpop.permute.xlu0 %816
    %820 = vset.pattern.permute.xlu0 0
    %821 = vperm.xlu0 %820, %v707
    %v822 = vpop.permute.xlu0 %821
    %825 = vset.pattern.permute.xlu0 0
    %826 = vperm.xlu0 %825, %v708
    %v827 = vpop.permute.xlu0 %826
    %830 = vset.pattern.permute.xlu0 0
    %831 = vperm.xlu0 %830, %v709
    %v832 = vpop.permute.xlu0 %831
    %835 = vset.pattern.permute.xlu0 0
    %836 = vperm.xlu0 %835, %v710
    %v837 = vpop.permute.xlu0 %836
    %840 = vset.pattern.permute.xlu0 0
    %841 = vperm.xlu0 %840, %v711
    %v842 = vpop.permute.xlu0 %841
    %845 = vset.pattern.permute.xlu0 0
    %846 = vperm.xlu0 %845, %v712
    %v847 = vpop.permute.xlu0 %846
    %850 = vset.pattern.permute.xlu0 0
    %851 = vperm.xlu0 %850, %v713
    %v852 = vpop.permute.xlu0 %851
    %855 = vset.pattern.permute.xlu0 0
    %856 = vperm.xlu0 %855, %v714
    %v857 = vpop.permute.xlu0 %856
    %860 = vset.pattern.permute.xlu0 0
    %861 = vperm.xlu0 %860, %v715
    %v862 = vpop.permute.xlu0 %861
    %865 = vset.pattern.permute.xlu0 0
    %866 = vperm.xlu0 %865, %v716
    %v867 = vpop.permute.xlu0 %866
    %870 = vset.pattern.permute.xlu0 0
    %871 = vperm.xlu0 %870, %v717
    %v872 = vpop.permute.xlu0 %871
    %875 = vset.pattern.permute.xlu0 0
    %876 = vperm.xlu0 %875, %v718
    %v877 = vpop.permute.xlu0 %876
    %v879 = vmul.f32 %v655, %v722
    %v880 = vmul.f32 %v656, %v727
    %v881 = vmul.f32 %v657, %v732
    %v882 = vmul.f32 %v658, %v737
    %v883 = vmul.f32 %v659, %v742
    %v884 = vmul.f32 %v660, %v747
    %v885 = vmul.f32 %v661, %v752
    %v886 = vmul.f32 %v662, %v757
    %v887 = vmul.f32 %v663, %v762
    %v888 = vmul.f32 %v664, %v767
    %v889 = vmul.f32 %v665, %v772
    %v890 = vmul.f32 %v666, %v777
    %v891 = vmul.f32 %v667, %v782
    %v892 = vmul.f32 %v668, %v787
    %v893 = vmul.f32 %v669, %v792
    %v894 = vmul.f32 %v670, %v797
    %v895 = vmul.f32 %v671, %v802
    %v896 = vmul.f32 %v672, %v807
    %v897 = vmul.f32 %v673, %v812
    %v898 = vmul.f32 %v674, %v817
    %v899 = vmul.f32 %v675, %v822
    %v900 = vmul.f32 %v676, %v827
    %v901 = vmul.f32 %v677, %v832
    %v902 = vmul.f32 %v678, %v837
    %v903 = vmul.f32 %v679, %v842
    %v904 = vmul.f32 %v680, %v847
    %v905 = vmul.f32 %v681, %v852
    %v906 = vmul.f32 %v682, %v857
    %v907 = vmul.f32 %v683, %v862
    %v908 = vmul.f32 %v684, %v867
    %v909 = vmul.f32 %v685, %v872
    %v910 = vmul.f32 %v686, %v877
    %v911 = vld [vmem:[%s2] sm:$0xff]
    %v912 = vld [vmem:[%s2 + $0x8] sm:$0xff]
    %v913 = vld [vmem:[%s2 + $0x10] sm:$0xff]
    %v914 = vld [vmem:[%s2 + $0x18] sm:$0xff]
    %v915 = vld [vmem:[%s2 + $0x20] sm:$0xff]
    %v916 = vld [vmem:[%s2 + $0x28] sm:$0xff]
    %v917 = vld [vmem:[%s2 + $0x30] sm:$0xff]
    %v918 = vld [vmem:[%s2 + $0x38] sm:$0xff]
    %v919 = vld [vmem:[%s2 + $0x40] sm:$0xff]
    %v920 = vld [vmem:[%s2 + $0x48] sm:$0xff]
    %v921 = vld [vmem:[%s2 + $0x50] sm:$0xff]
    %v922 = vld [vmem:[%s2 + $0x58] sm:$0xff]
    %v923 = vld [vmem:[%s2 + $0x60] sm:$0xff]
    %v924 = vld [vmem:[%s2 + $0x68] sm:$0xff]
    %v925 = vld [vmem:[%s2 + $0x70] sm:$0xff]
    %v926 = vld [vmem:[%s2 + $0x78] sm:$0xff]
    %v927 = vld [vmem:[%s2 + $0x80] sm:$0xff]
    %v928 = vld [vmem:[%s2 + $0x88] sm:$0xff]
    %v929 = vld [vmem:[%s2 + $0x90] sm:$0xff]
    %v930 = vld [vmem:[%s2 + $0x98] sm:$0xff]
    %v931 = vld [vmem:[%s2 + $0xa0] sm:$0xff]
    %v932 = vld [vmem:[%s2 + $0xa8] sm:$0xff]
    %v933 = vld [vmem:[%s2 + $0xb0] sm:$0xff]
    %v934 = vld [vmem:[%s2 + $0xb8] sm:$0xff]
    %v935 = vld [vmem:[%s2 + $0xc0] sm:$0xff]
    %v936 = vld [vmem:[%s2 + $0xc8] sm:$0xff]
    %v937 = vld [vmem:[%s2 + $0xd0] sm:$0xff]
    %v938 = vld [vmem:[%s2 + $0xd8] sm:$0xff]
    %v939 = vld [vmem:[%s2 + $0xe0] sm:$0xff]
    %v940 = vld [vmem:[%s2 + $0xe8] sm:$0xff]
    %v941 = vld [vmem:[%s2 + $0xf0] sm:$0xff]
    %v942 = vld [vmem:[%s2 + $0xf8] sm:$0xff]
    %v943 = vadd.f32 %v879, %v911
    %v944 = vadd.f32 %v880, %v912
    %v945 = vadd.f32 %v881, %v913
    %v946 = vadd.f32 %v882, %v914
    %v947 = vadd.f32 %v883, %v915
    %v948 = vadd.f32 %v884, %v916
    %v949 = vadd.f32 %v885, %v917
    %v950 = vadd.f32 %v886, %v918
    %v951 = vadd.f32 %v887, %v919
    %v952 = vadd.f32 %v888, %v920
    %v953 = vadd.f32 %v889, %v921
    %v954 = vadd.f32 %v890, %v922
    %v955 = vadd.f32 %v891, %v923
    %v956 = vadd.f32 %v892, %v924
    %v957 = vadd.f32 %v893, %v925
    %v958 = vadd.f32 %v894, %v926
    %v959 = vadd.f32 %v895, %v927
    %v960 = vadd.f32 %v896, %v928
    %v961 = vadd.f32 %v897, %v929
    %v962 = vadd.f32 %v898, %v930
    %v963 = vadd.f32 %v899, %v931
    %v964 = vadd.f32 %v900, %v932
    %v965 = vadd.f32 %v901, %v933
    %v966 = vadd.f32 %v902, %v934
    %v967 = vadd.f32 %v903, %v935
    %v968 = vadd.f32 %v904, %v936
    %v969 = vadd.f32 %v905, %v937
    %v970 = vadd.f32 %v906, %v938
    %v971 = vadd.f32 %v907, %v939
    %v972 = vadd.f32 %v908, %v940
    %v973 = vadd.f32 %v909, %v941
    %v974 = vadd.f32 %v910, %v942
    %v975 = vmul.f32 %v943, %v943
    %v976 = vmul.f32 %v944, %v944
    %v977 = vmul.f32 %v945, %v945
    %v978 = vmul.f32 %v946, %v946
    %v979 = vmul.f32 %v947, %v947
    %v980 = vmul.f32 %v948, %v948
    %v981 = vmul.f32 %v949, %v949
    %v982 = vmul.f32 %v950, %v950
    %v983 = vmul.f32 %v951, %v951
    %v984 = vmul.f32 %v952, %v952
    %v985 = vmul.f32 %v953, %v953
    %v986 = vmul.f32 %v954, %v954
    %v987 = vmul.f32 %v955, %v955
    %v988 = vmul.f32 %v956, %v956
    %v989 = vmul.f32 %v957, %v957
    %v990 = vmul.f32 %v958, %v958
    %v991 = vmul.f32 %v959, %v959
    %v992 = vmul.f32 %v960, %v960
    %v993 = vmul.f32 %v961, %v961
    %v994 = vmul.f32 %v962, %v962
    %v995 = vmul.f32 %v963, %v963
    %v996 = vmul.f32 %v964, %v964
    %v997 = vmul.f32 %v965, %v965
    %v998 = vmul.f32 %v966, %v966
    %v999 = vmul.f32 %v967, %v967
    %v1000 = vmul.f32 %v968, %v968
    %v1001 = vmul.f32 %v969, %v969
    %v1002 = vmul.f32 %v970, %v970
    %v1003 = vmul.f32 %v971, %v971
    %v1004 = vmul.f32 %v972, %v972
    %v1005 = vmul.f32 %v973, %v973
    %v1006 = vmul.f32 %v974, %v974
    %1007 = vadd.xlane.f32.xlu0 %v975
    %v1008 = vpop.xlane.xlu0 %1007
    %1009 = vadd.xlane.f32.xlu0 %v976
    %v1010 = vpop.xlane.xlu0 %1009
    %1011 = vadd.xlane.f32.xlu0 %v977
    %v1012 = vpop.xlane.xlu0 %1011
    %1013 = vadd.xlane.f32.xlu0 %v978
    %v1014 = vpop.xlane.xlu0 %1013
    %1015 = vadd.xlane.f32.xlu0 %v979
    %v1016 = vpop.xlane.xlu0 %1015
    %1017 = vadd.xlane.f32.xlu0 %v980
    %v1018 = vpop.xlane.xlu0 %1017
    %1019 = vadd.xlane.f32.xlu0 %v981
    %v1020 = vpop.xlane.xlu0 %1019
    %1021 = vadd.xlane.f32.xlu0 %v982
    %v1022 = vpop.xlane.xlu0 %1021
    %1023 = vadd.xlane.f32.xlu0 %v983
    %v1024 = vpop.xlane.xlu0 %1023
    %1025 = vadd.xlane.f32.xlu0 %v984
    %v1026 = vpop.xlane.xlu0 %1025
    %1027 = vadd.xlane.f32.xlu0 %v985
    %v1028 = vpop.xlane.xlu0 %1027
    %1029 = vadd.xlane.f32.xlu0 %v986
    %v1030 = vpop.xlane.xlu0 %1029
    %1031 = vadd.xlane.f32.xlu0 %v987
    %v1032 = vpop.xlane.xlu0 %1031
    %1033 = vadd.xlane.f32.xlu0 %v988
    %v1034 = vpop.xlane.xlu0 %1033
    %1035 = vadd.xlane.f32.xlu0 %v989
    %v1036 = vpop.xlane.xlu0 %1035
    %1037 = vadd.xlane.f32.xlu0 %v990
    %v1038 = vpop.xlane.xlu0 %1037
    %1039 = vadd.xlane.f32.xlu0 %v991
    %v1040 = vpop.xlane.xlu0 %1039
    %1041 = vadd.xlane.f32.xlu0 %v992
    %v1042 = vpop.xlane.xlu0 %1041
    %1043 = vadd.xlane.f32.xlu0 %v993
    %v1044 = vpop.xlane.xlu0 %1043
    %1045 = vadd.xlane.f32.xlu0 %v994
    %v1046 = vpop.xlane.xlu0 %1045
    %1047 = vadd.xlane.f32.xlu0 %v995
    %v1048 = vpop.xlane.xlu0 %1047
    %1049 = vadd.xlane.f32.xlu0 %v996
    %v1050 = vpop.xlane.xlu0 %1049
    %1051 = vadd.xlane.f32.xlu0 %v997
    %v1052 = vpop.xlane.xlu0 %1051
    %1053 = vadd.xlane.f32.xlu0 %v998
    %v1054 = vpop.xlane.xlu0 %1053
    %1055 = vadd.xlane.f32.xlu0 %v999
    %v1056 = vpop.xlane.xlu0 %1055
    %1057 = vadd.xlane.f32.xlu0 %v1000
    %v1058 = vpop.xlane.xlu0 %1057
    %1059 = vadd.xlane.f32.xlu0 %v1001
    %v1060 = vpop.xlane.xlu0 %1059
    %1061 = vadd.xlane.f32.xlu0 %v1002
    %v1062 = vpop.xlane.xlu0 %1061
    %1063 = vadd.xlane.f32.xlu0 %v1003
    %v1064 = vpop.xlane.xlu0 %1063
    %1065 = vadd.xlane.f32.xlu0 %v1004
    %v1066 = vpop.xlane.xlu0 %1065
    %1067 = vadd.xlane.f32.xlu0 %v1005
    %v1068 = vpop.xlane.xlu0 %1067
    %1069 = vadd.xlane.f32.xlu0 %v1006
    %v1070 = vpop.xlane.xlu0 %1069
    %v1071 = vrsqrt.pop %v1008
    %v1072 = vmul.f32 %v1071, %v1008
    %v1073 = vmul.f32 %v1072, %v1071
    %v1074 = vmul.f32 0.5, %v1073
    %v1075 = vsub.f32 1.5, %v1074
    %v1076 = vmul.f32 %v1071, %v1075
    %v1077 = vmul.f32 %v1008, %v1076
    %vm1078 = vcmp.eq.f32.partialorder %v1008, inf
    %v1079 = vsel %vm1078, %v1008, %v1077
    %vm1080 = vcmp.eq.f32.partialorder %v1008, 0.0
    %v1081 = vand.u32 %v1008, 2147483648
    %v1082 = vsel %vm1080, %v1081, %v1079
    %v1083 = vrsqrt.pop %v1010
    %v1084 = vmul.f32 %v1083, %v1010
    %v1085 = vmul.f32 %v1084, %v1083
    %v1086 = vmul.f32 0.5, %v1085
    %v1087 = vsub.f32 1.5, %v1086
    %v1088 = vmul.f32 %v1083, %v1087
    %v1089 = vmul.f32 %v1010, %v1088
    %vm1090 = vcmp.eq.f32.partialorder %v1010, inf
    %v1091 = vsel %vm1090, %v1010, %v1089
    %vm1092 = vcmp.eq.f32.partialorder %v1010, 0.0
    %v1093 = vand.u32 %v1010, 2147483648
    %v1094 = vsel %vm1092, %v1093, %v1091
    %v1095 = vrsqrt.pop %v1012
    %v1096 = vmul.f32 %v1095, %v1012
    %v1097 = vmul.f32 %v1096, %v1095
    %v1098 = vmul.f32 0.5, %v1097
    %v1099 = vsub.f32 1.5, %v1098
    %v1100 = vmul.f32 %v1095, %v1099
    %v1101 = vmul.f32 %v1012, %v1100
    %vm1102 = vcmp.eq.f32.partialorder %v1012, inf
    %v1103 = vsel %vm1102, %v1012, %v1101
    %vm1104 = vcmp.eq.f32.partialorder %v1012, 0.0
    %v1105 = vand.u32 %v1012, 2147483648
    %v1106 = vsel %vm1104, %v1105, %v1103
    %v1107 = vrsqrt.pop %v1014
    %v1108 = vmul.f32 %v1107, %v1014
    %v1109 = vmul.f32 %v1108, %v1107
    %v1110 = vmul.f32 0.5, %v1109
    %v1111 = vsub.f32 1.5, %v1110
    %v1112 = vmul.f32 %v1107, %v1111
    %v1113 = vmul.f32 %v1014, %v1112
    %vm1114 = vcmp.eq.f32.partialorder %v1014, inf
    %v1115 = vsel %vm1114, %v1014, %v1113
    %vm1116 = vcmp.eq.f32.partialorder %v1014, 0.0
    %v1117 = vand.u32 %v1014, 2147483648
    %v1118 = vsel %vm1116, %v1117, %v1115
    %v1119 = vrsqrt.pop %v1016
    %v1120 = vmul.f32 %v1119, %v1016
    %v1121 = vmul.f32 %v1120, %v1119
    %v1122 = vmul.f32 0.5, %v1121
    %v1123 = vsub.f32 1.5, %v1122
    %v1124 = vmul.f32 %v1119, %v1123
    %v1125 = vmul.f32 %v1016, %v1124
    %vm1126 = vcmp.eq.f32.partialorder %v1016, inf
    %v1127 = vsel %vm1126, %v1016, %v1125
    %vm1128 = vcmp.eq.f32.partialorder %v1016, 0.0
    %v1129 = vand.u32 %v1016, 2147483648
    %v1130 = vsel %vm1128, %v1129, %v1127
    %v1131 = vrsqrt.pop %v1018
    %v1132 = vmul.f32 %v1131, %v1018
    %v1133 = vmul.f32 %v1132, %v1131
    %v1134 = vmul.f32 0.5, %v1133
    %v1135 = vsub.f32 1.5, %v1134
    %v1136 = vmul.f32 %v1131, %v1135
    %v1137 = vmul.f32 %v1018, %v1136
    %vm1138 = vcmp.eq.f32.partialorder %v1018, inf
    %v1139 = vsel %vm1138, %v1018, %v1137
    %vm1140 = vcmp.eq.f32.partialorder %v1018, 0.0
    %v1141 = vand.u32 %v1018, 2147483648
    %v1142 = vsel %vm1140, %v1141, %v1139
    %v1143 = vrsqrt.pop %v1020
    %v1144 = vmul.f32 %v1143, %v1020
    %v1145 = vmul.f32 %v1144, %v1143
    %v1146 = vmul.f32 0.5, %v1145
    %v1147 = vsub.f32 1.5, %v1146
    %v1148 = vmul.f32 %v1143, %v1147
    %v1149 = vmul.f32 %v1020, %v1148
    %vm1150 = vcmp.eq.f32.partialorder %v1020, inf
    %v1151 = vsel %vm1150, %v1020, %v1149
    %vm1152 = vcmp.eq.f32.partialorder %v1020, 0.0
    %v1153 = vand.u32 %v1020, 2147483648
    %v1154 = vsel %vm1152, %v1153, %v1151
    %v1155 = vrsqrt.pop %v1022
    %v1156 = vmul.f32 %v1155, %v1022
    %v1157 = vmul.f32 %v1156, %v1155
    %v1158 = vmul.f32 0.5, %v1157
    %v1159 = vsub.f32 1.5, %v1158
    %v1160 = vmul.f32 %v1155, %v1159
    %v1161 = vmul.f32 %v1022, %v1160
    %vm1162 = vcmp.eq.f32.partialorder %v1022, inf
    %v1163 = vsel %vm1162, %v1022, %v1161
    %vm1164 = vcmp.eq.f32.partialorder %v1022, 0.0
    %v1165 = vand.u32 %v1022, 2147483648
    %v1166 = vsel %vm1164, %v1165, %v1163
    %v1167 = vrsqrt.pop %v1024
    %v1168 = vmul.f32 %v1167, %v1024
    %v1169 = vmul.f32 %v1168, %v1167
    %v1170 = vmul.f32 0.5, %v1169
    %v1171 = vsub.f32 1.5, %v1170
    %v1172 = vmul.f32 %v1167, %v1171
    %v1173 = vmul.f32 %v1024, %v1172
    %vm1174 = vcmp.eq.f32.partialorder %v1024, inf
    %v1175 = vsel %vm1174, %v1024, %v1173
    %vm1176 = vcmp.eq.f32.partialorder %v1024, 0.0
    %v1177 = vand.u32 %v1024, 2147483648
    %v1178 = vsel %vm1176, %v1177, %v1175
    %v1179 = vrsqrt.pop %v1026
    %v1180 = vmul.f32 %v1179, %v1026
    %v1181 = vmul.f32 %v1180, %v1179
    %v1182 = vmul.f32 0.5, %v1181
    %v1183 = vsub.f32 1.5, %v1182
    %v1184 = vmul.f32 %v1179, %v1183
    %v1185 = vmul.f32 %v1026, %v1184
    %vm1186 = vcmp.eq.f32.partialorder %v1026, inf
    %v1187 = vsel %vm1186, %v1026, %v1185
    %vm1188 = vcmp.eq.f32.partialorder %v1026, 0.0
    %v1189 = vand.u32 %v1026, 2147483648
    %v1190 = vsel %vm1188, %v1189, %v1187
    %v1191 = vrsqrt.pop %v1028
    %v1192 = vmul.f32 %v1191, %v1028
    %v1193 = vmul.f32 %v1192, %v1191
    %v1194 = vmul.f32 0.5, %v1193
    %v1195 = vsub.f32 1.5, %v1194
    %v1196 = vmul.f32 %v1191, %v1195
    %v1197 = vmul.f32 %v1028, %v1196
    %vm1198 = vcmp.eq.f32.partialorder %v1028, inf
    %v1199 = vsel %vm1198, %v1028, %v1197
    %vm1200 = vcmp.eq.f32.partialorder %v1028, 0.0
    %v1201 = vand.u32 %v1028, 2147483648
    %v1202 = vsel %vm1200, %v1201, %v1199
    %v1203 = vrsqrt.pop %v1030
    %v1204 = vmul.f32 %v1203, %v1030
    %v1205 = vmul.f32 %v1204, %v1203
    %v1206 = vmul.f32 0.5, %v1205
    %v1207 = vsub.f32 1.5, %v1206
    %v1208 = vmul.f32 %v1203, %v1207
    %v1209 = vmul.f32 %v1030, %v1208
    %vm1210 = vcmp.eq.f32.partialorder %v1030, inf
    %v1211 = vsel %vm1210, %v1030, %v1209
    %vm1212 = vcmp.eq.f32.partialorder %v1030, 0.0
    %v1213 = vand.u32 %v1030, 2147483648
    %v1214 = vsel %vm1212, %v1213, %v1211
    %v1215 = vrsqrt.pop %v1032
    %v1216 = vmul.f32 %v1215, %v1032
    %v1217 = vmul.f32 %v1216, %v1215
    %v1218 = vmul.f32 0.5, %v1217
    %v1219 = vsub.f32 1.5, %v1218
    %v1220 = vmul.f32 %v1215, %v1219
    %v1221 = vmul.f32 %v1032, %v1220
    %vm1222 = vcmp.eq.f32.partialorder %v1032, inf
    %v1223 = vsel %vm1222, %v1032, %v1221
    %vm1224 = vcmp.eq.f32.partialorder %v1032, 0.0
    %v1225 = vand.u32 %v1032, 2147483648
    %v1226 = vsel %vm1224, %v1225, %v1223
    %v1227 = vrsqrt.pop %v1034
    %v1228 = vmul.f32 %v1227, %v1034
    %v1229 = vmul.f32 %v1228, %v1227
    %v1230 = vmul.f32 0.5, %v1229
    %v1231 = vsub.f32 1.5, %v1230
    %v1232 = vmul.f32 %v1227, %v1231
    %v1233 = vmul.f32 %v1034, %v1232
    %vm1234 = vcmp.eq.f32.partialorder %v1034, inf
    %v1235 = vsel %vm1234, %v1034, %v1233
    %vm1236 = vcmp.eq.f32.partialorder %v1034, 0.0
    %v1237 = vand.u32 %v1034, 2147483648
    %v1238 = vsel %vm1236, %v1237, %v1235
    %v1239 = vrsqrt.pop %v1036
    %v1240 = vmul.f32 %v1239, %v1036
    %v1241 = vmul.f32 %v1240, %v1239
    %v1242 = vmul.f32 0.5, %v1241
    %v1243 = vsub.f32 1.5, %v1242
    %v1244 = vmul.f32 %v1239, %v1243
    %v1245 = vmul.f32 %v1036, %v1244
    %vm1246 = vcmp.eq.f32.partialorder %v1036, inf
    %v1247 = vsel %vm1246, %v1036, %v1245
    %vm1248 = vcmp.eq.f32.partialorder %v1036, 0.0
    %v1249 = vand.u32 %v1036, 2147483648
    %v1250 = vsel %vm1248, %v1249, %v1247
    %v1251 = vrsqrt.pop %v1038
    %v1252 = vmul.f32 %v1251, %v1038
    %v1253 = vmul.f32 %v1252, %v1251
    %v1254 = vmul.f32 0.5, %v1253
    %v1255 = vsub.f32 1.5, %v1254
    %v1256 = vmul.f32 %v1251, %v1255
    %v1257 = vmul.f32 %v1038, %v1256
    %vm1258 = vcmp.eq.f32.partialorder %v1038, inf
    %v1259 = vsel %vm1258, %v1038, %v1257
    %vm1260 = vcmp.eq.f32.partialorder %v1038, 0.0
    %v1261 = vand.u32 %v1038, 2147483648
    %v1262 = vsel %vm1260, %v1261, %v1259
    %v1263 = vrsqrt.pop %v1040
    %v1264 = vmul.f32 %v1263, %v1040
    %v1265 = vmul.f32 %v1264, %v1263
    %v1266 = vmul.f32 0.5, %v1265
    %v1267 = vsub.f32 1.5, %v1266
    %v1268 = vmul.f32 %v1263, %v1267
    %v1269 = vmul.f32 %v1040, %v1268
    %vm1270 = vcmp.eq.f32.partialorder %v1040, inf
    %v1271 = vsel %vm1270, %v1040, %v1269
    %vm1272 = vcmp.eq.f32.partialorder %v1040, 0.0
    %v1273 = vand.u32 %v1040, 2147483648
    %v1274 = vsel %vm1272, %v1273, %v1271
    %v1275 = vrsqrt.pop %v1042
    %v1276 = vmul.f32 %v1275, %v1042
    %v1277 = vmul.f32 %v1276, %v1275
    %v1278 = vmul.f32 0.5, %v1277
    %v1279 = vsub.f32 1.5, %v1278
    %v1280 = vmul.f32 %v1275, %v1279
    %v1281 = vmul.f32 %v1042, %v1280
    %vm1282 = vcmp.eq.f32.partialorder %v1042, inf
    %v1283 = vsel %vm1282, %v1042, %v1281
    %vm1284 = vcmp.eq.f32.partialorder %v1042, 0.0
    %v1285 = vand.u32 %v1042, 2147483648
    %v1286 = vsel %vm1284, %v1285, %v1283
    %v1287 = vrsqrt.pop %v1044
    %v1288 = vmul.f32 %v1287, %v1044
    %v1289 = vmul.f32 %v1288, %v1287
    %v1290 = vmul.f32 0.5, %v1289
    %v1291 = vsub.f32 1.5, %v1290
    %v1292 = vmul.f32 %v1287, %v1291
    %v1293 = vmul.f32 %v1044, %v1292
    %vm1294 = vcmp.eq.f32.partialorder %v1044, inf
    %v1295 = vsel %vm1294, %v1044, %v1293
    %vm1296 = vcmp.eq.f32.partialorder %v1044, 0.0
    %v1297 = vand.u32 %v1044, 2147483648
    %v1298 = vsel %vm1296, %v1297, %v1295
    %v1299 = vrsqrt.pop %v1046
    %v1300 = vmul.f32 %v1299, %v1046
    %v1301 = vmul.f32 %v1300, %v1299
    %v1302 = vmul.f32 0.5, %v1301
    %v1303 = vsub.f32 1.5, %v1302
    %v1304 = vmul.f32 %v1299, %v1303
    %v1305 = vmul.f32 %v1046, %v1304
    %vm1306 = vcmp.eq.f32.partialorder %v1046, inf
    %v1307 = vsel %vm1306, %v1046, %v1305
    %vm1308 = vcmp.eq.f32.partialorder %v1046, 0.0
    %v1309 = vand.u32 %v1046, 2147483648
    %v1310 = vsel %vm1308, %v1309, %v1307
    %v1311 = vrsqrt.pop %v1048
    %v1312 = vmul.f32 %v1311, %v1048
    %v1313 = vmul.f32 %v1312, %v1311
    %v1314 = vmul.f32 0.5, %v1313
    %v1315 = vsub.f32 1.5, %v1314
    %v1316 = vmul.f32 %v1311, %v1315
    %v1317 = vmul.f32 %v1048, %v1316
    %vm1318 = vcmp.eq.f32.partialorder %v1048, inf
    %v1319 = vsel %vm1318, %v1048, %v1317
    %vm1320 = vcmp.eq.f32.partialorder %v1048, 0.0
    %v1321 = vand.u32 %v1048, 2147483648
    %v1322 = vsel %vm1320, %v1321, %v1319
    %v1323 = vrsqrt.pop %v1050
    %v1324 = vmul.f32 %v1323, %v1050
    %v1325 = vmul.f32 %v1324, %v1323
    %v1326 = vmul.f32 0.5, %v1325
    %v1327 = vsub.f32 1.5, %v1326
    %v1328 = vmul.f32 %v1323, %v1327
    %v1329 = vmul.f32 %v1050, %v1328
    %vm1330 = vcmp.eq.f32.partialorder %v1050, inf
    %v1331 = vsel %vm1330, %v1050, %v1329
    %vm1332 = vcmp.eq.f32.partialorder %v1050, 0.0
    %v1333 = vand.u32 %v1050, 2147483648
    %v1334 = vsel %vm1332, %v1333, %v1331
    %v1335 = vrsqrt.pop %v1052
    %v1336 = vmul.f32 %v1335, %v1052
    %v1337 = vmul.f32 %v1336, %v1335
    %v1338 = vmul.f32 0.5, %v1337
    %v1339 = vsub.f32 1.5, %v1338
    %v1340 = vmul.f32 %v1335, %v1339
    %v1341 = vmul.f32 %v1052, %v1340
    %vm1342 = vcmp.eq.f32.partialorder %v1052, inf
    %v1343 = vsel %vm1342, %v1052, %v1341
    %vm1344 = vcmp.eq.f32.partialorder %v1052, 0.0
    %v1345 = vand.u32 %v1052, 2147483648
    %v1346 = vsel %vm1344, %v1345, %v1343
    %v1347 = vrsqrt.pop %v1054
    %v1348 = vmul.f32 %v1347, %v1054
    %v1349 = vmul.f32 %v1348, %v1347
    %v1350 = vmul.f32 0.5, %v1349
    %v1351 = vsub.f32 1.5, %v1350
    %v1352 = vmul.f32 %v1347, %v1351
    %v1353 = vmul.f32 %v1054, %v1352
    %vm1354 = vcmp.eq.f32.partialorder %v1054, inf
    %v1355 = vsel %vm1354, %v1054, %v1353
    %vm1356 = vcmp.eq.f32.partialorder %v1054, 0.0
    %v1357 = vand.u32 %v1054, 2147483648
    %v1358 = vsel %vm1356, %v1357, %v1355
    %v1359 = vrsqrt.pop %v1056
    %v1360 = vmul.f32 %v1359, %v1056
    %v1361 = vmul.f32 %v1360, %v1359
    %v1362 = vmul.f32 0.5, %v1361
    %v1363 = vsub.f32 1.5, %v1362
    %v1364 = vmul.f32 %v1359, %v1363
    %v1365 = vmul.f32 %v1056, %v1364
    %vm1366 = vcmp.eq.f32.partialorder %v1056, inf
    %v1367 = vsel %vm1366, %v1056, %v1365
    %vm1368 = vcmp.eq.f32.partialorder %v1056, 0.0
    %v1369 = vand.u32 %v1056, 2147483648
    %v1370 = vsel %vm1368, %v1369, %v1367
    %v1371 = vrsqrt.pop %v1058
    %v1372 = vmul.f32 %v1371, %v1058
    %v1373 = vmul.f32 %v1372, %v1371
    %v1374 = vmul.f32 0.5, %v1373
    %v1375 = vsub.f32 1.5, %v1374
    %v1376 = vmul.f32 %v1371, %v1375
    %v1377 = vmul.f32 %v1058, %v1376
    %vm1378 = vcmp.eq.f32.partialorder %v1058, inf
    %v1379 = vsel %vm1378, %v1058, %v1377
    %vm1380 = vcmp.eq.f32.partialorder %v1058, 0.0
    %v1381 = vand.u32 %v1058, 2147483648
    %v1382 = vsel %vm1380, %v1381, %v1379
    %v1383 = vrsqrt.pop %v1060
    %v1384 = vmul.f32 %v1383, %v1060
    %v1385 = vmul.f32 %v1384, %v1383
    %v1386 = vmul.f32 0.5, %v1385
    %v1387 = vsub.f32 1.5, %v1386
    %v1388 = vmul.f32 %v1383, %v1387
    %v1389 = vmul.f32 %v1060, %v1388
    %vm1390 = vcmp.eq.f32.partialorder %v1060, inf
    %v1391 = vsel %vm1390, %v1060, %v1389
    %vm1392 = vcmp.eq.f32.partialorder %v1060, 0.0
    %v1393 = vand.u32 %v1060, 2147483648
    %v1394 = vsel %vm1392, %v1393, %v1391
    %v1395 = vrsqrt.pop %v1062
    %v1396 = vmul.f32 %v1395, %v1062
    %v1397 = vmul.f32 %v1396, %v1395
    %v1398 = vmul.f32 0.5, %v1397
    %v1399 = vsub.f32 1.5, %v1398
    %v1400 = vmul.f32 %v1395, %v1399
    %v1401 = vmul.f32 %v1062, %v1400
    %vm1402 = vcmp.eq.f32.partialorder %v1062, inf
    %v1403 = vsel %vm1402, %v1062, %v1401
    %vm1404 = vcmp.eq.f32.partialorder %v1062, 0.0
    %v1405 = vand.u32 %v1062, 2147483648
    %v1406 = vsel %vm1404, %v1405, %v1403
    %v1407 = vrsqrt.pop %v1064
    %v1408 = vmul.f32 %v1407, %v1064
    %v1409 = vmul.f32 %v1408, %v1407
    %v1410 = vmul.f32 0.5, %v1409
    %v1411 = vsub.f32 1.5, %v1410
    %v1412 = vmul.f32 %v1407, %v1411
    %v1413 = vmul.f32 %v1064, %v1412
    %vm1414 = vcmp.eq.f32.partialorder %v1064, inf
    %v1415 = vsel %vm1414, %v1064, %v1413
    %vm1416 = vcmp.eq.f32.partialorder %v1064, 0.0
    %v1417 = vand.u32 %v1064, 2147483648
    %v1418 = vsel %vm1416, %v1417, %v1415
    %v1419 = vrsqrt.pop %v1066
    %v1420 = vmul.f32 %v1419, %v1066
    %v1421 = vmul.f32 %v1420, %v1419
    %v1422 = vmul.f32 0.5, %v1421
    %v1423 = vsub.f32 1.5, %v1422
    %v1424 = vmul.f32 %v1419, %v1423
    %v1425 = vmul.f32 %v1066, %v1424
    %vm1426 = vcmp.eq.f32.partialorder %v1066, inf
    %v1427 = vsel %vm1426, %v1066, %v1425
    %vm1428 = vcmp.eq.f32.partialorder %v1066, 0.0
    %v1429 = vand.u32 %v1066, 2147483648
    %v1430 = vsel %vm1428, %v1429, %v1427
    %v1431 = vrsqrt.pop %v1068
    %v1432 = vmul.f32 %v1431, %v1068
    %v1433 = vmul.f32 %v1432, %v1431
    %v1434 = vmul.f32 0.5, %v1433
    %v1435 = vsub.f32 1.5, %v1434
    %v1436 = vmul.f32 %v1431, %v1435
    %v1437 = vmul.f32 %v1068, %v1436
    %vm1438 = vcmp.eq.f32.partialorder %v1068, inf
    %v1439 = vsel %vm1438, %v1068, %v1437
    %vm1440 = vcmp.eq.f32.partialorder %v1068, 0.0
    %v1441 = vand.u32 %v1068, 2147483648
    %v1442 = vsel %vm1440, %v1441, %v1439
    %v1443 = vrsqrt.pop %v1070
    %v1444 = vmul.f32 %v1443, %v1070
    %v1445 = vmul.f32 %v1444, %v1443
    %v1446 = vmul.f32 0.5, %v1445
    %v1447 = vsub.f32 1.5, %v1446
    %v1448 = vmul.f32 %v1443, %v1447
    %v1449 = vmul.f32 %v1070, %v1448
    %vm1450 = vcmp.eq.f32.partialorder %v1070, inf
    %v1451 = vsel %vm1450, %v1070, %v1449
    %vm1452 = vcmp.eq.f32.partialorder %v1070, 0.0
    %v1453 = vand.u32 %v1070, 2147483648
    %v1454 = vsel %vm1452, %v1453, %v1451
    %v1455 = vmin.f32 %v1082, 80.0
    %v1456 = vmin.f32 %v1094, 80.0
    %v1457 = vmin.f32 %v1106, 80.0
    %v1458 = vmin.f32 %v1118, 80.0
    %v1459 = vmin.f32 %v1130, 80.0
    %v1460 = vmin.f32 %v1142, 80.0
    %v1461 = vmin.f32 %v1154, 80.0
    %v1462 = vmin.f32 %v1166, 80.0
    %v1463 = vmin.f32 %v1178, 80.0
    %v1464 = vmin.f32 %v1190, 80.0
    %v1465 = vmin.f32 %v1202, 80.0
    %v1466 = vmin.f32 %v1214, 80.0
    %v1467 = vmin.f32 %v1226, 80.0
    %v1468 = vmin.f32 %v1238, 80.0
    %v1469 = vmin.f32 %v1250, 80.0
    %v1470 = vmin.f32 %v1262, 80.0
    %v1471 = vmin.f32 %v1274, 80.0
    %v1472 = vmin.f32 %v1286, 80.0
    %v1473 = vmin.f32 %v1298, 80.0
    %v1474 = vmin.f32 %v1310, 80.0
    %v1475 = vmin.f32 %v1322, 80.0
    %v1476 = vmin.f32 %v1334, 80.0
    %v1477 = vmin.f32 %v1346, 80.0
    %v1478 = vmin.f32 %v1358, 80.0
    %v1479 = vmin.f32 %v1370, 80.0
    %v1480 = vmin.f32 %v1382, 80.0
    %v1481 = vmin.f32 %v1394, 80.0
    %v1482 = vmin.f32 %v1406, 80.0
    %v1483 = vmin.f32 %v1418, 80.0
    %v1484 = vmin.f32 %v1430, 80.0
    %v1485 = vmin.f32 %v1442, 80.0
    %v1486 = vmin.f32 %v1454, 80.0
    %v1487 = vmul.f32 %v1455, 1.442695
    %v1488 = vpow.pop %v1487
    %v1489 = vmul.f32 %v1456, 1.442695
    %v1490 = vpow.pop %v1489
    %v1491 = vmul.f32 %v1457, 1.442695
    %v1492 = vpow.pop %v1491
    %v1493 = vmul.f32 %v1458, 1.442695
    %v1494 = vpow.pop %v1493
    %v1495 = vmul.f32 %v1459, 1.442695
    %v1496 = vpow.pop %v1495
    %v1497 = vmul.f32 %v1460, 1.442695
    %v1498 = vpow.pop %v1497
    %v1499 = vmul.f32 %v1461, 1.442695
    %v1500 = vpow.pop %v1499
    %v1501 = vmul.f32 %v1462, 1.442695
    %v1502 = vpow.pop %v1501
    %v1503 = vmul.f32 %v1463, 1.442695
    %v1504 = vpow.pop %v1503
    %v1505 = vmul.f32 %v1464, 1.442695
    %v1506 = vpow.pop %v1505
    %v1507 = vmul.f32 %v1465, 1.442695
    %v1508 = vpow.pop %v1507
    %v1509 = vmul.f32 %v1466, 1.442695
    %v1510 = vpow.pop %v1509
    %v1511 = vmul.f32 %v1467, 1.442695
    %v1512 = vpow.pop %v1511
    %v1513 = vmul.f32 %v1468, 1.442695
    %v1514 = vpow.pop %v1513
    %v1515 = vmul.f32 %v1469, 1.442695
    %v1516 = vpow.pop %v1515
    %v1517 = vmul.f32 %v1470, 1.442695
    %v1518 = vpow.pop %v1517
    %v1519 = vmul.f32 %v1471, 1.442695
    %v1520 = vpow.pop %v1519
    %v1521 = vmul.f32 %v1472, 1.442695
    %v1522 = vpow.pop %v1521
    %v1523 = vmul.f32 %v1473, 1.442695
    %v1524 = vpow.pop %v1523
    %v1525 = vmul.f32 %v1474, 1.442695
    %v1526 = vpow.pop %v1525
    %v1527 = vmul.f32 %v1475, 1.442695
    %v1528 = vpow.pop %v1527
    %v1529 = vmul.f32 %v1476, 1.442695
    %v1530 = vpow.pop %v1529
    %v1531 = vmul.f32 %v1477, 1.442695
    %v1532 = vpow.pop %v1531
    %v1533 = vmul.f32 %v1478, 1.442695
    %v1534 = vpow.pop %v1533
    %v1535 = vmul.f32 %v1479, 1.442695
    %v1536 = vpow.pop %v1535
    %v1537 = vmul.f32 %v1480, 1.442695
    %v1538 = vpow.pop %v1537
    %v1539 = vmul.f32 %v1481, 1.442695
    %v1540 = vpow.pop %v1539
    %v1541 = vmul.f32 %v1482, 1.442695
    %v1542 = vpow.pop %v1541
    %v1543 = vmul.f32 %v1483, 1.442695
    %v1544 = vpow.pop %v1543
    %v1545 = vmul.f32 %v1484, 1.442695
    %v1546 = vpow.pop %v1545
    %v1547 = vmul.f32 %v1485, 1.442695
    %v1548 = vpow.pop %v1547
    %v1549 = vmul.f32 %v1486, 1.442695
    %v1550 = vpow.pop %v1549
    %v1551 = vsub.f32 0.0, %v1455
    %v1552 = vsub.f32 0.0, %v1456
    %v1553 = vsub.f32 0.0, %v1457
    %v1554 = vsub.f32 0.0, %v1458
    %v1555 = vsub.f32 0.0, %v1459
    %v1556 = vsub.f32 0.0, %v1460
    %v1557 = vsub.f32 0.0, %v1461
    %v1558 = vsub.f32 0.0, %v1462
    %v1559 = vsub.f32 0.0, %v1463
    %v1560 = vsub.f32 0.0, %v1464
    %v1561 = vsub.f32 0.0, %v1465
    %v1562 = vsub.f32 0.0, %v1466
    %v1563 = vsub.f32 0.0, %v1467
    %v1564 = vsub.f32 0.0, %v1468
    %v1565 = vsub.f32 0.0, %v1469
    %v1566 = vsub.f32 0.0, %v1470
    %v1567 = vsub.f32 0.0, %v1471
    %v1568 = vsub.f32 0.0, %v1472
    %v1569 = vsub.f32 0.0, %v1473
    %v1570 = vsub.f32 0.0, %v1474
    %v1571 = vsub.f32 0.0, %v1475
    %v1572 = vsub.f32 0.0, %v1476
    %v1573 = vsub.f32 0.0, %v1477
    %v1574 = vsub.f32 0.0, %v1478
    %v1575 = vsub.f32 0.0, %v1479
    %v1576 = vsub.f32 0.0, %v1480
    %v1577 = vsub.f32 0.0, %v1481
    %v1578 = vsub.f32 0.0, %v1482
    %v1579 = vsub.f32 0.0, %v1483
    %v1580 = vsub.f32 0.0, %v1484
    %v1581 = vsub.f32 0.0, %v1485
    %v1582 = vsub.f32 0.0, %v1486
    %v1583 = vmul.f32 %v1551, 1.442695
    %v1584 = vpow.pop %v1583
    %v1585 = vmul.f32 %v1552, 1.442695
    %v1586 = vpow.pop %v1585
    %v1587 = vmul.f32 %v1553, 1.442695
    %v1588 = vpow.pop %v1587
    %v1589 = vmul.f32 %v1554, 1.442695
    %v1590 = vpow.pop %v1589
    %v1591 = vmul.f32 %v1555, 1.442695
    %v1592 = vpow.pop %v1591
    %v1593 = vmul.f32 %v1556, 1.442695
    %v1594 = vpow.pop %v1593
    %v1595 = vmul.f32 %v1557, 1.442695
    %v1596 = vpow.pop %v1595
    %v1597 = vmul.f32 %v1558, 1.442695
    %v1598 = vpow.pop %v1597
    %v1599 = vmul.f32 %v1559, 1.442695
    %v1600 = vpow.pop %v1599
    %v1601 = vmul.f32 %v1560, 1.442695
    %v1602 = vpow.pop %v1601
    %v1603 = vmul.f32 %v1561, 1.442695
    %v1604 = vpow.pop %v1603
    %v1605 = vmul.f32 %v1562, 1.442695
    %v1606 = vpow.pop %v1605
    %v1607 = vmul.f32 %v1563, 1.442695
    %v1608 = vpow.pop %v1607
    %v1609 = vmul.f32 %v1564, 1.442695
    %v1610 = vpow.pop %v1609
    %v1611 = vmul.f32 %v1565, 1.442695
    %v1612 = vpow.pop %v1611
    %v1613 = vmul.f32 %v1566, 1.442695
    %v1614 = vpow.pop %v1613
    %v1615 = vmul.f32 %v1567, 1.442695
    %v1616 = vpow.pop %v1615
    %v1617 = vmul.f32 %v1568, 1.442695
    %v1618 = vpow.pop %v1617
    %v1619 = vmul.f32 %v1569, 1.442695
    %v1620 = vpow.pop %v1619
    %v1621 = vmul.f32 %v1570, 1.442695
    %v1622 = vpow.pop %v1621
    %v1623 = vmul.f32 %v1571, 1.442695
    %v1624 = vpow.pop %v1623
    %v1625 = vmul.f32 %v1572, 1.442695
    %v1626 = vpow.pop %v1625
    %v1627 = vmul.f32 %v1573, 1.442695
    %v1628 = vpow.pop %v1627
    %v1629 = vmul.f32 %v1574, 1.442695
    %v1630 = vpow.pop %v1629
    %v1631 = vmul.f32 %v1575, 1.442695
    %v1632 = vpow.pop %v1631
    %v1633 = vmul.f32 %v1576, 1.442695
    %v1634 = vpow.pop %v1633
    %v1635 = vmul.f32 %v1577, 1.442695
    %v1636 = vpow.pop %v1635
    %v1637 = vmul.f32 %v1578, 1.442695
    %v1638 = vpow.pop %v1637
    %v1639 = vmul.f32 %v1579, 1.442695
    %v1640 = vpow.pop %v1639
    %v1641 = vmul.f32 %v1580, 1.442695
    %v1642 = vpow.pop %v1641
    %v1643 = vmul.f32 %v1581, 1.442695
    %v1644 = vpow.pop %v1643
    %v1645 = vmul.f32 %v1582, 1.442695
    %v1646 = vpow.pop %v1645
    %v1647 = vsub.f32 %v1488, %v1584
    %v1648 = vsub.f32 %v1490, %v1586
    %v1649 = vsub.f32 %v1492, %v1588
    %v1650 = vsub.f32 %v1494, %v1590
    %v1651 = vsub.f32 %v1496, %v1592
    %v1652 = vsub.f32 %v1498, %v1594
    %v1653 = vsub.f32 %v1500, %v1596
    %v1654 = vsub.f32 %v1502, %v1598
    %v1655 = vsub.f32 %v1504, %v1600
    %v1656 = vsub.f32 %v1506, %v1602
    %v1657 = vsub.f32 %v1508, %v1604
    %v1658 = vsub.f32 %v1510, %v1606
    %v1659 = vsub.f32 %v1512, %v1608
    %v1660 = vsub.f32 %v1514, %v1610
    %v1661 = vsub.f32 %v1516, %v1612
    %v1662 = vsub.f32 %v1518, %v1614
    %v1663 = vsub.f32 %v1520, %v1616
    %v1664 = vsub.f32 %v1522, %v1618
    %v1665 = vsub.f32 %v1524, %v1620
    %v1666 = vsub.f32 %v1526, %v1622
    %v1667 = vsub.f32 %v1528, %v1624
    %v1668 = vsub.f32 %v1530, %v1626
    %v1669 = vsub.f32 %v1532, %v1628
    %v1670 = vsub.f32 %v1534, %v1630
    %v1671 = vsub.f32 %v1536, %v1632
    %v1672 = vsub.f32 %v1538, %v1634
    %v1673 = vsub.f32 %v1540, %v1636
    %v1674 = vsub.f32 %v1542, %v1638
    %v1675 = vsub.f32 %v1544, %v1640
    %v1676 = vsub.f32 %v1546, %v1642
    %v1677 = vsub.f32 %v1548, %v1644
    %v1678 = vsub.f32 %v1550, %v1646
    %v1679 = vmul.f32 %v1647, 0.5
    %v1680 = vmul.f32 %v1648, 0.5
    %v1681 = vmul.f32 %v1649, 0.5
    %v1682 = vmul.f32 %v1650, 0.5
    %v1683 = vmul.f32 %v1651, 0.5
    %v1684 = vmul.f32 %v1652, 0.5
    %v1685 = vmul.f32 %v1653, 0.5
    %v1686 = vmul.f32 %v1654, 0.5
    %v1687 = vmul.f32 %v1655, 0.5
    %v1688 = vmul.f32 %v1656, 0.5
    %v1689 = vmul.f32 %v1657, 0.5
    %v1690 = vmul.f32 %v1658, 0.5
    %v1691 = vmul.f32 %v1659, 0.5
    %v1692 = vmul.f32 %v1660, 0.5
    %v1693 = vmul.f32 %v1661, 0.5
    %v1694 = vmul.f32 %v1662, 0.5
    %v1695 = vmul.f32 %v1663, 0.5
    %v1696 = vmul.f32 %v1664, 0.5
    %v1697 = vmul.f32 %v1665, 0.5
    %v1698 = vmul.f32 %v1666, 0.5
    %v1699 = vmul.f32 %v1667, 0.5
    %v1700 = vmul.f32 %v1668, 0.5
    %v1701 = vmul.f32 %v1669, 0.5
    %v1702 = vmul.f32 %v1670, 0.5
    %v1703 = vmul.f32 %v1671, 0.5
    %v1704 = vmul.f32 %v1672, 0.5
    %v1705 = vmul.f32 %v1673, 0.5
    %v1706 = vmul.f32 %v1674, 0.5
    %v1707 = vmul.f32 %v1675, 0.5
    %v1708 = vmul.f32 %v1676, 0.5
    %v1709 = vmul.f32 %v1677, 0.5
    %v1710 = vmul.f32 %v1678, 0.5
    %vm1711 = vcmp.gt.f32.partialorder %v1082, 1e-07
    %vm1712 = vcmp.gt.f32.partialorder %v1094, 1e-07
    %vm1713 = vcmp.gt.f32.partialorder %v1106, 1e-07
    %vm1714 = vcmp.gt.f32.partialorder %v1118, 1e-07
    %vm1715 = vcmp.gt.f32.partialorder %v1130, 1e-07
    %vm1716 = vcmp.gt.f32.partialorder %v1142, 1e-07
    %vm1717 = vcmp.gt.f32.partialorder %v1154, 1e-07
    %vm1718 = vcmp.gt.f32.partialorder %v1166, 1e-07
    %vm1719 = vcmp.gt.f32.partialorder %v1178, 1e-07
    %vm1720 = vcmp.gt.f32.partialorder %v1190, 1e-07
    %vm1721 = vcmp.gt.f32.partialorder %v1202, 1e-07
    %vm1722 = vcmp.gt.f32.partialorder %v1214, 1e-07
    %vm1723 = vcmp.gt.f32.partialorder %v1226, 1e-07
    %vm1724 = vcmp.gt.f32.partialorder %v1238, 1e-07
    %vm1725 = vcmp.gt.f32.partialorder %v1250, 1e-07
    %vm1726 = vcmp.gt.f32.partialorder %v1262, 1e-07
    %vm1727 = vcmp.gt.f32.partialorder %v1274, 1e-07
    %vm1728 = vcmp.gt.f32.partialorder %v1286, 1e-07
    %vm1729 = vcmp.gt.f32.partialorder %v1298, 1e-07
    %vm1730 = vcmp.gt.f32.partialorder %v1310, 1e-07
    %vm1731 = vcmp.gt.f32.partialorder %v1322, 1e-07
    %vm1732 = vcmp.gt.f32.partialorder %v1334, 1e-07
    %vm1733 = vcmp.gt.f32.partialorder %v1346, 1e-07
    %vm1734 = vcmp.gt.f32.partialorder %v1358, 1e-07
    %vm1735 = vcmp.gt.f32.partialorder %v1370, 1e-07
    %vm1736 = vcmp.gt.f32.partialorder %v1382, 1e-07
    %vm1737 = vcmp.gt.f32.partialorder %v1394, 1e-07
    %vm1738 = vcmp.gt.f32.partialorder %v1406, 1e-07
    %vm1739 = vcmp.gt.f32.partialorder %v1418, 1e-07
    %vm1740 = vcmp.gt.f32.partialorder %v1430, 1e-07
    %vm1741 = vcmp.gt.f32.partialorder %v1442, 1e-07
    %vm1742 = vcmp.gt.f32.partialorder %v1454, 1e-07
    %v1743 = vmax.f32 %v1082, 1e-07
    %v1744 = vmax.f32 %v1094, 1e-07
    %v1745 = vmax.f32 %v1106, 1e-07
    %v1746 = vmax.f32 %v1118, 1e-07
    %v1747 = vmax.f32 %v1130, 1e-07
    %v1748 = vmax.f32 %v1142, 1e-07
    %v1749 = vmax.f32 %v1154, 1e-07
    %v1750 = vmax.f32 %v1166, 1e-07
    %v1751 = vmax.f32 %v1178, 1e-07
    %v1752 = vmax.f32 %v1190, 1e-07
    %v1753 = vmax.f32 %v1202, 1e-07
    %v1754 = vmax.f32 %v1214, 1e-07
    %v1755 = vmax.f32 %v1226, 1e-07
    %v1756 = vmax.f32 %v1238, 1e-07
    %v1757 = vmax.f32 %v1250, 1e-07
    %v1758 = vmax.f32 %v1262, 1e-07
    %v1759 = vmax.f32 %v1274, 1e-07
    %v1760 = vmax.f32 %v1286, 1e-07
    %v1761 = vmax.f32 %v1298, 1e-07
    %v1762 = vmax.f32 %v1310, 1e-07
    %v1763 = vmax.f32 %v1322, 1e-07
    %v1764 = vmax.f32 %v1334, 1e-07
    %v1765 = vmax.f32 %v1346, 1e-07
    %v1766 = vmax.f32 %v1358, 1e-07
    %v1767 = vmax.f32 %v1370, 1e-07
    %v1768 = vmax.f32 %v1382, 1e-07
    %v1769 = vmax.f32 %v1394, 1e-07
    %v1770 = vmax.f32 %v1406, 1e-07
    %v1771 = vmax.f32 %v1418, 1e-07
    %v1772 = vmax.f32 %v1430, 1e-07
    %v1773 = vmax.f32 %v1442, 1e-07
    %v1774 = vmax.f32 %v1454, 1e-07
    %v1775 = vrcp.pop %v1743
    %v1776 = vmul.f32 %v1743, %v1775
    %v1777 = vsub.f32 1.0, %v1776
    %v1778 = vmul.f32 %v1775, %v1777
    %v1779 = vadd.f32 %v1775, %v1778
    %vm1780 = vweird.f32 %v1743
    %vm1781 = vweird.f32 %v1775
    %vm1782 = vmor %vm1780, %vm1781
    %v1783 = vsel %vm1782, %v1775, %v1779
    %v1784 = vand.u32 2147483647, %v1743
    %vm1785 = vcmp.eq.f32.partialorder %v1784, 8.507059e+37
    %v1786 = vand.u32 %v1743, 2147483648
    %v1787 = vor.u32 1.1754944e-38, %v1786
    %v1788 = vsel %vm1785, %v1787, %v1783
    %v1789 = vmul.f32 %v1679, %v1788
    %v1790 = vrcp.pop %v1744
    %v1791 = vmul.f32 %v1744, %v1790
    %v1792 = vsub.f32 1.0, %v1791
    %v1793 = vmul.f32 %v1790, %v1792
    %v1794 = vadd.f32 %v1790, %v1793
    %vm1795 = vweird.f32 %v1744
    %vm1796 = vweird.f32 %v1790
    %vm1797 = vmor %vm1795, %vm1796
    %v1798 = vsel %vm1797, %v1790, %v1794
    %v1799 = vand.u32 2147483647, %v1744
    %vm1800 = vcmp.eq.f32.partialorder %v1799, 8.507059e+37
    %v1801 = vand.u32 %v1744, 2147483648
    %v1802 = vor.u32 1.1754944e-38, %v1801
    %v1803 = vsel %vm1800, %v1802, %v1798
    %v1804 = vmul.f32 %v1680, %v1803
    %v1805 = vrcp.pop %v1745
    %v1806 = vmul.f32 %v1745, %v1805
    %v1807 = vsub.f32 1.0, %v1806
    %v1808 = vmul.f32 %v1805, %v1807
    %v1809 = vadd.f32 %v1805, %v1808
    %vm1810 = vweird.f32 %v1745
    %vm1811 = vweird.f32 %v1805
    %vm1812 = vmor %vm1810, %vm1811
    %v1813 = vsel %vm1812, %v1805, %v1809
    %v1814 = vand.u32 2147483647, %v1745
    %vm1815 = vcmp.eq.f32.partialorder %v1814, 8.507059e+37
    %v1816 = vand.u32 %v1745, 2147483648
    %v1817 = vor.u32 1.1754944e-38, %v1816
    %v1818 = vsel %vm1815, %v1817, %v1813
    %v1819 = vmul.f32 %v1681, %v1818
    %v1820 = vrcp.pop %v1746
    %v1821 = vmul.f32 %v1746, %v1820
    %v1822 = vsub.f32 1.0, %v1821
    %v1823 = vmul.f32 %v1820, %v1822
    %v1824 = vadd.f32 %v1820, %v1823
    %vm1825 = vweird.f32 %v1746
    %vm1826 = vweird.f32 %v1820
    %vm1827 = vmor %vm1825, %vm1826
    %v1828 = vsel %vm1827, %v1820, %v1824
    %v1829 = vand.u32 2147483647, %v1746
    %vm1830 = vcmp.eq.f32.partialorder %v1829, 8.507059e+37
    %v1831 = vand.u32 %v1746, 2147483648
    %v1832 = vor.u32 1.1754944e-38, %v1831
    %v1833 = vsel %vm1830, %v1832, %v1828
    %v1834 = vmul.f32 %v1682, %v1833
    %v1835 = vrcp.pop %v1747
    %v1836 = vmul.f32 %v1747, %v1835
    %v1837 = vsub.f32 1.0, %v1836
    %v1838 = vmul.f32 %v1835, %v1837
    %v1839 = vadd.f32 %v1835, %v1838
    %vm1840 = vweird.f32 %v1747
    %vm1841 = vweird.f32 %v1835
    %vm1842 = vmor %vm1840, %vm1841
    %v1843 = vsel %vm1842, %v1835, %v1839
    %v1844 = vand.u32 2147483647, %v1747
    %vm1845 = vcmp.eq.f32.partialorder %v1844, 8.507059e+37
    %v1846 = vand.u32 %v1747, 2147483648
    %v1847 = vor.u32 1.1754944e-38, %v1846
    %v1848 = vsel %vm1845, %v1847, %v1843
    %v1849 = vmul.f32 %v1683, %v1848
    %v1850 = vrcp.pop %v1748
    %v1851 = vmul.f32 %v1748, %v1850
    %v1852 = vsub.f32 1.0, %v1851
    %v1853 = vmul.f32 %v1850, %v1852
    %v1854 = vadd.f32 %v1850, %v1853
    %vm1855 = vweird.f32 %v1748
    %vm1856 = vweird.f32 %v1850
    %vm1857 = vmor %vm1855, %vm1856
    %v1858 = vsel %vm1857, %v1850, %v1854
    %v1859 = vand.u32 2147483647, %v1748
    %vm1860 = vcmp.eq.f32.partialorder %v1859, 8.507059e+37
    %v1861 = vand.u32 %v1748, 2147483648
    %v1862 = vor.u32 1.1754944e-38, %v1861
    %v1863 = vsel %vm1860, %v1862, %v1858
    %v1864 = vmul.f32 %v1684, %v1863
    %v1865 = vrcp.pop %v1749
    %v1866 = vmul.f32 %v1749, %v1865
    %v1867 = vsub.f32 1.0, %v1866
    %v1868 = vmul.f32 %v1865, %v1867
    %v1869 = vadd.f32 %v1865, %v1868
    %vm1870 = vweird.f32 %v1749
    %vm1871 = vweird.f32 %v1865
    %vm1872 = vmor %vm1870, %vm1871
    %v1873 = vsel %vm1872, %v1865, %v1869
    %v1874 = vand.u32 2147483647, %v1749
    %vm1875 = vcmp.eq.f32.partialorder %v1874, 8.507059e+37
    %v1876 = vand.u32 %v1749, 2147483648
    %v1877 = vor.u32 1.1754944e-38, %v1876
    %v1878 = vsel %vm1875, %v1877, %v1873
    %v1879 = vmul.f32 %v1685, %v1878
    %v1880 = vrcp.pop %v1750
    %v1881 = vmul.f32 %v1750, %v1880
    %v1882 = vsub.f32 1.0, %v1881
    %v1883 = vmul.f32 %v1880, %v1882
    %v1884 = vadd.f32 %v1880, %v1883
    %vm1885 = vweird.f32 %v1750
    %vm1886 = vweird.f32 %v1880
    %vm1887 = vmor %vm1885, %vm1886
    %v1888 = vsel %vm1887, %v1880, %v1884
    %v1889 = vand.u32 2147483647, %v1750
    %vm1890 = vcmp.eq.f32.partialorder %v1889, 8.507059e+37
    %v1891 = vand.u32 %v1750, 2147483648
    %v1892 = vor.u32 1.1754944e-38, %v1891
    %v1893 = vsel %vm1890, %v1892, %v1888
    %v1894 = vmul.f32 %v1686, %v1893
    %v1895 = vrcp.pop %v1751
    %v1896 = vmul.f32 %v1751, %v1895
    %v1897 = vsub.f32 1.0, %v1896
    %v1898 = vmul.f32 %v1895, %v1897
    %v1899 = vadd.f32 %v1895, %v1898
    %vm1900 = vweird.f32 %v1751
    %vm1901 = vweird.f32 %v1895
    %vm1902 = vmor %vm1900, %vm1901
    %v1903 = vsel %vm1902, %v1895, %v1899
    %v1904 = vand.u32 2147483647, %v1751
    %vm1905 = vcmp.eq.f32.partialorder %v1904, 8.507059e+37
    %v1906 = vand.u32 %v1751, 2147483648
    %v1907 = vor.u32 1.1754944e-38, %v1906
    %v1908 = vsel %vm1905, %v1907, %v1903
    %v1909 = vmul.f32 %v1687, %v1908
    %v1910 = vrcp.pop %v1752
    %v1911 = vmul.f32 %v1752, %v1910
    %v1912 = vsub.f32 1.0, %v1911
    %v1913 = vmul.f32 %v1910, %v1912
    %v1914 = vadd.f32 %v1910, %v1913
    %vm1915 = vweird.f32 %v1752
    %vm1916 = vweird.f32 %v1910
    %vm1917 = vmor %vm1915, %vm1916
    %v1918 = vsel %vm1917, %v1910, %v1914
    %v1919 = vand.u32 2147483647, %v1752
    %vm1920 = vcmp.eq.f32.partialorder %v1919, 8.507059e+37
    %v1921 = vand.u32 %v1752, 2147483648
    %v1922 = vor.u32 1.1754944e-38, %v1921
    %v1923 = vsel %vm1920, %v1922, %v1918
    %v1924 = vmul.f32 %v1688, %v1923
    %v1925 = vrcp.pop %v1753
    %v1926 = vmul.f32 %v1753, %v1925
    %v1927 = vsub.f32 1.0, %v1926
    %v1928 = vmul.f32 %v1925, %v1927
    %v1929 = vadd.f32 %v1925, %v1928
    %vm1930 = vweird.f32 %v1753
    %vm1931 = vweird.f32 %v1925
    %vm1932 = vmor %vm1930, %vm1931
    %v1933 = vsel %vm1932, %v1925, %v1929
    %v1934 = vand.u32 2147483647, %v1753
    %vm1935 = vcmp.eq.f32.partialorder %v1934, 8.507059e+37
    %v1936 = vand.u32 %v1753, 2147483648
    %v1937 = vor.u32 1.1754944e-38, %v1936
    %v1938 = vsel %vm1935, %v1937, %v1933
    %v1939 = vmul.f32 %v1689, %v1938
    %v1940 = vrcp.pop %v1754
    %v1941 = vmul.f32 %v1754, %v1940
    %v1942 = vsub.f32 1.0, %v1941
    %v1943 = vmul.f32 %v1940, %v1942
    %v1944 = vadd.f32 %v1940, %v1943
    %vm1945 = vweird.f32 %v1754
    %vm1946 = vweird.f32 %v1940
    %vm1947 = vmor %vm1945, %vm1946
    %v1948 = vsel %vm1947, %v1940, %v1944
    %v1949 = vand.u32 2147483647, %v1754
    %vm1950 = vcmp.eq.f32.partialorder %v1949, 8.507059e+37
    %v1951 = vand.u32 %v1754, 2147483648
    %v1952 = vor.u32 1.1754944e-38, %v1951
    %v1953 = vsel %vm1950, %v1952, %v1948
    %v1954 = vmul.f32 %v1690, %v1953
    %v1955 = vrcp.pop %v1755
    %v1956 = vmul.f32 %v1755, %v1955
    %v1957 = vsub.f32 1.0, %v1956
    %v1958 = vmul.f32 %v1955, %v1957
    %v1959 = vadd.f32 %v1955, %v1958
    %vm1960 = vweird.f32 %v1755
    %vm1961 = vweird.f32 %v1955
    %vm1962 = vmor %vm1960, %vm1961
    %v1963 = vsel %vm1962, %v1955, %v1959
    %v1964 = vand.u32 2147483647, %v1755
    %vm1965 = vcmp.eq.f32.partialorder %v1964, 8.507059e+37
    %v1966 = vand.u32 %v1755, 2147483648
    %v1967 = vor.u32 1.1754944e-38, %v1966
    %v1968 = vsel %vm1965, %v1967, %v1963
    %v1969 = vmul.f32 %v1691, %v1968
    %v1970 = vrcp.pop %v1756
    %v1971 = vmul.f32 %v1756, %v1970
    %v1972 = vsub.f32 1.0, %v1971
    %v1973 = vmul.f32 %v1970, %v1972
    %v1974 = vadd.f32 %v1970, %v1973
    %vm1975 = vweird.f32 %v1756
    %vm1976 = vweird.f32 %v1970
    %vm1977 = vmor %vm1975, %vm1976
    %v1978 = vsel %vm1977, %v1970, %v1974
    %v1979 = vand.u32 2147483647, %v1756
    %vm1980 = vcmp.eq.f32.partialorder %v1979, 8.507059e+37
    %v1981 = vand.u32 %v1756, 2147483648
    %v1982 = vor.u32 1.1754944e-38, %v1981
    %v1983 = vsel %vm1980, %v1982, %v1978
    %v1984 = vmul.f32 %v1692, %v1983
    %v1985 = vrcp.pop %v1757
    %v1986 = vmul.f32 %v1757, %v1985
    %v1987 = vsub.f32 1.0, %v1986
    %v1988 = vmul.f32 %v1985, %v1987
    %v1989 = vadd.f32 %v1985, %v1988
    %vm1990 = vweird.f32 %v1757
    %vm1991 = vweird.f32 %v1985
    %vm1992 = vmor %vm1990, %vm1991
    %v1993 = vsel %vm1992, %v1985, %v1989
    %v1994 = vand.u32 2147483647, %v1757
    %vm1995 = vcmp.eq.f32.partialorder %v1994, 8.507059e+37
    %v1996 = vand.u32 %v1757, 2147483648
    %v1997 = vor.u32 1.1754944e-38, %v1996
    %v1998 = vsel %vm1995, %v1997, %v1993
    %v1999 = vmul.f32 %v1693, %v1998
    %v2000 = vrcp.pop %v1758
    %v2001 = vmul.f32 %v1758, %v2000
    %v2002 = vsub.f32 1.0, %v2001
    %v2003 = vmul.f32 %v2000, %v2002
    %v2004 = vadd.f32 %v2000, %v2003
    %vm2005 = vweird.f32 %v1758
    %vm2006 = vweird.f32 %v2000
    %vm2007 = vmor %vm2005, %vm2006
    %v2008 = vsel %vm2007, %v2000, %v2004
    %v2009 = vand.u32 2147483647, %v1758
    %vm2010 = vcmp.eq.f32.partialorder %v2009, 8.507059e+37
    %v2011 = vand.u32 %v1758, 2147483648
    %v2012 = vor.u32 1.1754944e-38, %v2011
    %v2013 = vsel %vm2010, %v2012, %v2008
    %v2014 = vmul.f32 %v1694, %v2013
    %v2015 = vrcp.pop %v1759
    %v2016 = vmul.f32 %v1759, %v2015
    %v2017 = vsub.f32 1.0, %v2016
    %v2018 = vmul.f32 %v2015, %v2017
    %v2019 = vadd.f32 %v2015, %v2018
    %vm2020 = vweird.f32 %v1759
    %vm2021 = vweird.f32 %v2015
    %vm2022 = vmor %vm2020, %vm2021
    %v2023 = vsel %vm2022, %v2015, %v2019
    %v2024 = vand.u32 2147483647, %v1759
    %vm2025 = vcmp.eq.f32.partialorder %v2024, 8.507059e+37
    %v2026 = vand.u32 %v1759, 2147483648
    %v2027 = vor.u32 1.1754944e-38, %v2026
    %v2028 = vsel %vm2025, %v2027, %v2023
    %v2029 = vmul.f32 %v1695, %v2028
    %v2030 = vrcp.pop %v1760
    %v2031 = vmul.f32 %v1760, %v2030
    %v2032 = vsub.f32 1.0, %v2031
    %v2033 = vmul.f32 %v2030, %v2032
    %v2034 = vadd.f32 %v2030, %v2033
    %vm2035 = vweird.f32 %v1760
    %vm2036 = vweird.f32 %v2030
    %vm2037 = vmor %vm2035, %vm2036
    %v2038 = vsel %vm2037, %v2030, %v2034
    %v2039 = vand.u32 2147483647, %v1760
    %vm2040 = vcmp.eq.f32.partialorder %v2039, 8.507059e+37
    %v2041 = vand.u32 %v1760, 2147483648
    %v2042 = vor.u32 1.1754944e-38, %v2041
    %v2043 = vsel %vm2040, %v2042, %v2038
    %v2044 = vmul.f32 %v1696, %v2043
    %v2045 = vrcp.pop %v1761
    %v2046 = vmul.f32 %v1761, %v2045
    %v2047 = vsub.f32 1.0, %v2046
    %v2048 = vmul.f32 %v2045, %v2047
    %v2049 = vadd.f32 %v2045, %v2048
    %vm2050 = vweird.f32 %v1761
    %vm2051 = vweird.f32 %v2045
    %vm2052 = vmor %vm2050, %vm2051
    %v2053 = vsel %vm2052, %v2045, %v2049
    %v2054 = vand.u32 2147483647, %v1761
    %vm2055 = vcmp.eq.f32.partialorder %v2054, 8.507059e+37
    %v2056 = vand.u32 %v1761, 2147483648
    %v2057 = vor.u32 1.1754944e-38, %v2056
    %v2058 = vsel %vm2055, %v2057, %v2053
    %v2059 = vmul.f32 %v1697, %v2058
    %v2060 = vrcp.pop %v1762
    %v2061 = vmul.f32 %v1762, %v2060
    %v2062 = vsub.f32 1.0, %v2061
    %v2063 = vmul.f32 %v2060, %v2062
    %v2064 = vadd.f32 %v2060, %v2063
    %vm2065 = vweird.f32 %v1762
    %vm2066 = vweird.f32 %v2060
    %vm2067 = vmor %vm2065, %vm2066
    %v2068 = vsel %vm2067, %v2060, %v2064
    %v2069 = vand.u32 2147483647, %v1762
    %vm2070 = vcmp.eq.f32.partialorder %v2069, 8.507059e+37
    %v2071 = vand.u32 %v1762, 2147483648
    %v2072 = vor.u32 1.1754944e-38, %v2071
    %v2073 = vsel %vm2070, %v2072, %v2068
    %v2074 = vmul.f32 %v1698, %v2073
    %v2075 = vrcp.pop %v1763
    %v2076 = vmul.f32 %v1763, %v2075
    %v2077 = vsub.f32 1.0, %v2076
    %v2078 = vmul.f32 %v2075, %v2077
    %v2079 = vadd.f32 %v2075, %v2078
    %vm2080 = vweird.f32 %v1763
    %vm2081 = vweird.f32 %v2075
    %vm2082 = vmor %vm2080, %vm2081
    %v2083 = vsel %vm2082, %v2075, %v2079
    %v2084 = vand.u32 2147483647, %v1763
    %vm2085 = vcmp.eq.f32.partialorder %v2084, 8.507059e+37
    %v2086 = vand.u32 %v1763, 2147483648
    %v2087 = vor.u32 1.1754944e-38, %v2086
    %v2088 = vsel %vm2085, %v2087, %v2083
    %v2089 = vmul.f32 %v1699, %v2088
    %v2090 = vrcp.pop %v1764
    %v2091 = vmul.f32 %v1764, %v2090
    %v2092 = vsub.f32 1.0, %v2091
    %v2093 = vmul.f32 %v2090, %v2092
    %v2094 = vadd.f32 %v2090, %v2093
    %vm2095 = vweird.f32 %v1764
    %vm2096 = vweird.f32 %v2090
    %vm2097 = vmor %vm2095, %vm2096
    %v2098 = vsel %vm2097, %v2090, %v2094
    %v2099 = vand.u32 2147483647, %v1764
    %vm2100 = vcmp.eq.f32.partialorder %v2099, 8.507059e+37
    %v2101 = vand.u32 %v1764, 2147483648
    %v2102 = vor.u32 1.1754944e-38, %v2101
    %v2103 = vsel %vm2100, %v2102, %v2098
    %v2104 = vmul.f32 %v1700, %v2103
    %v2105 = vrcp.pop %v1765
    %v2106 = vmul.f32 %v1765, %v2105
    %v2107 = vsub.f32 1.0, %v2106
    %v2108 = vmul.f32 %v2105, %v2107
    %v2109 = vadd.f32 %v2105, %v2108
    %vm2110 = vweird.f32 %v1765
    %vm2111 = vweird.f32 %v2105
    %vm2112 = vmor %vm2110, %vm2111
    %v2113 = vsel %vm2112, %v2105, %v2109
    %v2114 = vand.u32 2147483647, %v1765
    %vm2115 = vcmp.eq.f32.partialorder %v2114, 8.507059e+37
    %v2116 = vand.u32 %v1765, 2147483648
    %v2117 = vor.u32 1.1754944e-38, %v2116
    %v2118 = vsel %vm2115, %v2117, %v2113
    %v2119 = vmul.f32 %v1701, %v2118
    %v2120 = vrcp.pop %v1766
    %v2121 = vmul.f32 %v1766, %v2120
    %v2122 = vsub.f32 1.0, %v2121
    %v2123 = vmul.f32 %v2120, %v2122
    %v2124 = vadd.f32 %v2120, %v2123
    %vm2125 = vweird.f32 %v1766
    %vm2126 = vweird.f32 %v2120
    %vm2127 = vmor %vm2125, %vm2126
    %v2128 = vsel %vm2127, %v2120, %v2124
    %v2129 = vand.u32 2147483647, %v1766
    %vm2130 = vcmp.eq.f32.partialorder %v2129, 8.507059e+37
    %v2131 = vand.u32 %v1766, 2147483648
    %v2132 = vor.u32 1.1754944e-38, %v2131
    %v2133 = vsel %vm2130, %v2132, %v2128
    %v2134 = vmul.f32 %v1702, %v2133
    %v2135 = vrcp.pop %v1767
    %v2136 = vmul.f32 %v1767, %v2135
    %v2137 = vsub.f32 1.0, %v2136
    %v2138 = vmul.f32 %v2135, %v2137
    %v2139 = vadd.f32 %v2135, %v2138
    %vm2140 = vweird.f32 %v1767
    %vm2141 = vweird.f32 %v2135
    %vm2142 = vmor %vm2140, %vm2141
    %v2143 = vsel %vm2142, %v2135, %v2139
    %v2144 = vand.u32 2147483647, %v1767
    %vm2145 = vcmp.eq.f32.partialorder %v2144, 8.507059e+37
    %v2146 = vand.u32 %v1767, 2147483648
    %v2147 = vor.u32 1.1754944e-38, %v2146
    %v2148 = vsel %vm2145, %v2147, %v2143
    %v2149 = vmul.f32 %v1703, %v2148
    %v2150 = vrcp.pop %v1768
    %v2151 = vmul.f32 %v1768, %v2150
    %v2152 = vsub.f32 1.0, %v2151
    %v2153 = vmul.f32 %v2150, %v2152
    %v2154 = vadd.f32 %v2150, %v2153
    %vm2155 = vweird.f32 %v1768
    %vm2156 = vweird.f32 %v2150
    %vm2157 = vmor %vm2155, %vm2156
    %v2158 = vsel %vm2157, %v2150, %v2154
    %v2159 = vand.u32 2147483647, %v1768
    %vm2160 = vcmp.eq.f32.partialorder %v2159, 8.507059e+37
    %v2161 = vand.u32 %v1768, 2147483648
    %v2162 = vor.u32 1.1754944e-38, %v2161
    %v2163 = vsel %vm2160, %v2162, %v2158
    %v2164 = vmul.f32 %v1704, %v2163
    %v2165 = vrcp.pop %v1769
    %v2166 = vmul.f32 %v1769, %v2165
    %v2167 = vsub.f32 1.0, %v2166
    %v2168 = vmul.f32 %v2165, %v2167
    %v2169 = vadd.f32 %v2165, %v2168
    %vm2170 = vweird.f32 %v1769
    %vm2171 = vweird.f32 %v2165
    %vm2172 = vmor %vm2170, %vm2171
    %v2173 = vsel %vm2172, %v2165, %v2169
    %v2174 = vand.u32 2147483647, %v1769
    %vm2175 = vcmp.eq.f32.partialorder %v2174, 8.507059e+37
    %v2176 = vand.u32 %v1769, 2147483648
    %v2177 = vor.u32 1.1754944e-38, %v2176
    %v2178 = vsel %vm2175, %v2177, %v2173
    %v2179 = vmul.f32 %v1705, %v2178
    %v2180 = vrcp.pop %v1770
    %v2181 = vmul.f32 %v1770, %v2180
    %v2182 = vsub.f32 1.0, %v2181
    %v2183 = vmul.f32 %v2180, %v2182
    %v2184 = vadd.f32 %v2180, %v2183
    %vm2185 = vweird.f32 %v1770
    %vm2186 = vweird.f32 %v2180
    %vm2187 = vmor %vm2185, %vm2186
    %v2188 = vsel %vm2187, %v2180, %v2184
    %v2189 = vand.u32 2147483647, %v1770
    %vm2190 = vcmp.eq.f32.partialorder %v2189, 8.507059e+37
    %v2191 = vand.u32 %v1770, 2147483648
    %v2192 = vor.u32 1.1754944e-38, %v2191
    %v2193 = vsel %vm2190, %v2192, %v2188
    %v2194 = vmul.f32 %v1706, %v2193
    %v2195 = vrcp.pop %v1771
    %v2196 = vmul.f32 %v1771, %v2195
    %v2197 = vsub.f32 1.0, %v2196
    %v2198 = vmul.f32 %v2195, %v2197
    %v2199 = vadd.f32 %v2195, %v2198
    %vm2200 = vweird.f32 %v1771
    %vm2201 = vweird.f32 %v2195
    %vm2202 = vmor %vm2200, %vm2201
    %v2203 = vsel %vm2202, %v2195, %v2199
    %v2204 = vand.u32 2147483647, %v1771
    %vm2205 = vcmp.eq.f32.partialorder %v2204, 8.507059e+37
    %v2206 = vand.u32 %v1771, 2147483648
    %v2207 = vor.u32 1.1754944e-38, %v2206
    %v2208 = vsel %vm2205, %v2207, %v2203
    %v2209 = vmul.f32 %v1707, %v2208
    %v2210 = vrcp.pop %v1772
    %v2211 = vmul.f32 %v1772, %v2210
    %v2212 = vsub.f32 1.0, %v2211
    %v2213 = vmul.f32 %v2210, %v2212
    %v2214 = vadd.f32 %v2210, %v2213
    %vm2215 = vweird.f32 %v1772
    %vm2216 = vweird.f32 %v2210
    %vm2217 = vmor %vm2215, %vm2216
    %v2218 = vsel %vm2217, %v2210, %v2214
    %v2219 = vand.u32 2147483647, %v1772
    %vm2220 = vcmp.eq.f32.partialorder %v2219, 8.507059e+37
    %v2221 = vand.u32 %v1772, 2147483648
    %v2222 = vor.u32 1.1754944e-38, %v2221
    %v2223 = vsel %vm2220, %v2222, %v2218
    %v2224 = vmul.f32 %v1708, %v2223
    %v2225 = vrcp.pop %v1773
    %v2226 = vmul.f32 %v1773, %v2225
    %v2227 = vsub.f32 1.0, %v2226
    %v2228 = vmul.f32 %v2225, %v2227
    %v2229 = vadd.f32 %v2225, %v2228
    %vm2230 = vweird.f32 %v1773
    %vm2231 = vweird.f32 %v2225
    %vm2232 = vmor %vm2230, %vm2231
    %v2233 = vsel %vm2232, %v2225, %v2229
    %v2234 = vand.u32 2147483647, %v1773
    %vm2235 = vcmp.eq.f32.partialorder %v2234, 8.507059e+37
    %v2236 = vand.u32 %v1773, 2147483648
    %v2237 = vor.u32 1.1754944e-38, %v2236
    %v2238 = vsel %vm2235, %v2237, %v2233
    %v2239 = vmul.f32 %v1709, %v2238
    %v2240 = vrcp.pop %v1774
    %v2241 = vmul.f32 %v1774, %v2240
    %v2242 = vsub.f32 1.0, %v2241
    %v2243 = vmul.f32 %v2240, %v2242
    %v2244 = vadd.f32 %v2240, %v2243
    %vm2245 = vweird.f32 %v1774
    %vm2246 = vweird.f32 %v2240
    %vm2247 = vmor %vm2245, %vm2246
    %v2248 = vsel %vm2247, %v2240, %v2244
    %v2249 = vand.u32 2147483647, %v1774
    %vm2250 = vcmp.eq.f32.partialorder %v2249, 8.507059e+37
    %v2251 = vand.u32 %v1774, 2147483648
    %v2252 = vor.u32 1.1754944e-38, %v2251
    %v2253 = vsel %vm2250, %v2252, %v2248
    %v2254 = vmul.f32 %v1710, %v2253
    %v2255 = vsel %vm1711, %v1789, 1.0
    %v2256 = vsel %vm1712, %v1804, 1.0
    %v2257 = vsel %vm1713, %v1819, 1.0
    %v2258 = vsel %vm1714, %v1834, 1.0
    %v2259 = vsel %vm1715, %v1849, 1.0
    %v2260 = vsel %vm1716, %v1864, 1.0
    %v2261 = vsel %vm1717, %v1879, 1.0
    %v2262 = vsel %vm1718, %v1894, 1.0
    %v2263 = vsel %vm1719, %v1909, 1.0
    %v2264 = vsel %vm1720, %v1924, 1.0
    %v2265 = vsel %vm1721, %v1939, 1.0
    %v2266 = vsel %vm1722, %v1954, 1.0
    %v2267 = vsel %vm1723, %v1969, 1.0
    %v2268 = vsel %vm1724, %v1984, 1.0
    %v2269 = vsel %vm1725, %v1999, 1.0
    %v2270 = vsel %vm1726, %v2014, 1.0
    %v2271 = vsel %vm1727, %v2029, 1.0
    %v2272 = vsel %vm1728, %v2044, 1.0
    %v2273 = vsel %vm1729, %v2059, 1.0
    %v2274 = vsel %vm1730, %v2074, 1.0
    %v2275 = vsel %vm1731, %v2089, 1.0
    %v2276 = vsel %vm1732, %v2104, 1.0
    %v2277 = vsel %vm1733, %v2119, 1.0
    %v2278 = vsel %vm1734, %v2134, 1.0
    %v2279 = vsel %vm1735, %v2149, 1.0
    %v2280 = vsel %vm1736, %v2164, 1.0
    %v2281 = vsel %vm1737, %v2179, 1.0
    %v2282 = vsel %vm1738, %v2194, 1.0
    %v2283 = vsel %vm1739, %v2209, 1.0
    %v2284 = vsel %vm1740, %v2224, 1.0
    %v2285 = vsel %vm1741, %v2239, 1.0
    %v2286 = vsel %vm1742, %v2254, 1.0
    %v2287 = vmul.f32 %v2255, %v943
    %v2288 = vmul.f32 %v2256, %v944
    %v2289 = vmul.f32 %v2257, %v945
    %v2290 = vmul.f32 %v2258, %v946
    %v2291 = vmul.f32 %v2259, %v947
    %v2292 = vmul.f32 %v2260, %v948
    %v2293 = vmul.f32 %v2261, %v949
    %v2294 = vmul.f32 %v2262, %v950
    %v2295 = vmul.f32 %v2263, %v951
    %v2296 = vmul.f32 %v2264, %v952
    %v2297 = vmul.f32 %v2265, %v953
    %v2298 = vmul.f32 %v2266, %v954
    %v2299 = vmul.f32 %v2267, %v955
    %v2300 = vmul.f32 %v2268, %v956
    %v2301 = vmul.f32 %v2269, %v957
    %v2302 = vmul.f32 %v2270, %v958
    %v2303 = vmul.f32 %v2271, %v959
    %v2304 = vmul.f32 %v2272, %v960
    %v2305 = vmul.f32 %v2273, %v961
    %v2306 = vmul.f32 %v2274, %v962
    %v2307 = vmul.f32 %v2275, %v963
    %v2308 = vmul.f32 %v2276, %v964
    %v2309 = vmul.f32 %v2277, %v965
    %v2310 = vmul.f32 %v2278, %v966
    %v2311 = vmul.f32 %v2279, %v967
    %v2312 = vmul.f32 %v2280, %v968
    %v2313 = vmul.f32 %v2281, %v969
    %v2314 = vmul.f32 %v2282, %v970
    %v2315 = vmul.f32 %v2283, %v971
    %v2316 = vmul.f32 %v2284, %v972
    %v2317 = vmul.f32 %v2285, %v973
    %v2318 = vmul.f32 %v2286, %v974
    %2319 = vst [vmem:[%s4] sm:$0xff] %v2287
    %2320 = vst [vmem:[%s4 + $0x8] sm:$0xff] %v2288
    %2321 = vst [vmem:[%s4 + $0x10] sm:$0xff] %v2289
    %2322 = vst [vmem:[%s4 + $0x18] sm:$0xff] %v2290
    %2323 = vst [vmem:[%s4 + $0x20] sm:$0xff] %v2291
    %2324 = vst [vmem:[%s4 + $0x28] sm:$0xff] %v2292
    %2325 = vst [vmem:[%s4 + $0x30] sm:$0xff] %v2293
    %2326 = vst [vmem:[%s4 + $0x38] sm:$0xff] %v2294
    %2327 = vst [vmem:[%s4 + $0x40] sm:$0xff] %v2295
    %2328 = vst [vmem:[%s4 + $0x48] sm:$0xff] %v2296
    %2329 = vst [vmem:[%s4 + $0x50] sm:$0xff] %v2297
    %2330 = vst [vmem:[%s4 + $0x58] sm:$0xff] %v2298
    %2331 = vst [vmem:[%s4 + $0x60] sm:$0xff] %v2299
    %2332 = vst [vmem:[%s4 + $0x68] sm:$0xff] %v2300
    %2333 = vst [vmem:[%s4 + $0x70] sm:$0xff] %v2301
    %2334 = vst [vmem:[%s4 + $0x78] sm:$0xff] %v2302
    %2335 = vst [vmem:[%s4 + $0x80] sm:$0xff] %v2303
    %2336 = vst [vmem:[%s4 + $0x88] sm:$0xff] %v2304
    %2337 = vst [vmem:[%s4 + $0x90] sm:$0xff] %v2305
    %2338 = vst [vmem:[%s4 + $0x98] sm:$0xff] %v2306
    %2339 = vst [vmem:[%s4 + $0xa0] sm:$0xff] %v2307
    %2340 = vst [vmem:[%s4 + $0xa8] sm:$0xff] %v2308
    %2341 = vst [vmem:[%s4 + $0xb0] sm:$0xff] %v2309
    %2342 = vst [vmem:[%s4 + $0xb8] sm:$0xff] %v2310
    %2343 = vst [vmem:[%s4 + $0xc0] sm:$0xff] %v2311
    %2344 = vst [vmem:[%s4 + $0xc8] sm:$0xff] %v2312
    %2345 = vst [vmem:[%s4 + $0xd0] sm:$0xff] %v2313
    %2346 = vst [vmem:[%s4 + $0xd8] sm:$0xff] %v2314
    %2347 = vst [vmem:[%s4 + $0xe0] sm:$0xff] %v2315
    %2348 = vst [vmem:[%s4 + $0xe8] sm:$0xff] %v2316
    %2349 = vst [vmem:[%s4 + $0xf0] sm:$0xff] %v2317
    %2350 = vst [vmem:[%s4 + $0xf8] sm:$0xff] %v2318
  $region25: #{hgcn_layer.3} parent=0 // pred_fallthru
    _
  // Predicated region
  $region26: #{hgcn_layer.3} parent=0 // pred_check
    _
  $region27: #{hgcn_layer.3} parent=0 // pred_check_branch
    %2352 = sbr.rel (0) target = $region29
  $region28: #{hgcn_layer.3} parent=0 // pred_region
    _
  $region29: #{hgcn_layer.3} parent=0 // pred_fallthru
    _
  // Predicated region
  $region30: #{hgcn_layer.3} parent=0 // pred_check
    _
  $region31: #{hgcn_layer.3} parent=0 // pred_check_branch
    %2354 = sbr.rel (0) target = $region33
  $region32: #{hgcn_layer.3} parent=0 // pred_region
    _
  $region33: #{hgcn_layer.3} parent=0 // pred_fallthru
    _

</llo_original>
